<compile_context>
chip_gen: v5e
topology: v5e:2x2
jax: 0.10.0
libtpu: 0.0.40
codegen_flags: <defaults>
</compile_context>

<pallas_src>
import functools

import jax
import jax.numpy as jnp
from jax.experimental import pallas as pl
from jax.experimental.pallas import tpu as pltpu


# ----------------------------- in-kernel helpers -----------------------------

def _layer_norm(x, gamma, beta, eps=1e-6):
    # PyTorch nn.LayerNorm(eps=1e-6): biased variance over the last dim.
    mean = jnp.mean(x, axis=-1, keepdims=True)
    var = jnp.mean((x - mean) ** 2, axis=-1, keepdims=True)
    return (x - mean) * jax.lax.rsqrt(var + eps) * gamma + beta


# --------------------------- fused DecoderLayer kernel ------------------------

def decoder_layer_kernel(n_head, d_k, d_v,
                         decq_ref, deckv_ref, enc_ref, smask_ref, emask_ref,
                         swq_ref, swk_ref, swv_ref, swfc_ref, ln1g_ref, ln1b_ref,
                         cwq_ref, cwk_ref, cwv_ref, cwfc_ref, ln2g_ref, ln2b_ref,
                         w1_ref, b1_ref, w2_ref, b2_ref, ln3g_ref, ln3b_ref,
                         out_ref, sattn_ref, eattn_ref):
    f32, bf16 = jnp.float32, jnp.bfloat16

    xq0 = decq_ref[0].astype(f32)       # (Tq, D)  decoder query tile (residual path in f32)
    dec_kv = deckv_ref[0]               # (Sq, D)  full decoder input, bf16 (self-attn K/V)
    enc_kv = enc_ref[0]                 # (Sk, D)  encoder output, bf16  (cross-attn K/V)

    # Hoisted additive mask biases (computed once, reused for every head).
    slf_bias = jnp.where(smask_ref[0] == 0.0, -1000000000.0, 0.0)[None, :, :]  # (1,Tq,Sq)
    enc_bias = jnp.where(emask_ref[0] == 0.0, -1000000000.0, 0.0)[None, :, :]  # (1,1,Sk)

    def split_heads(t, d):
        # (S, H*d) -> (H, S, d) via static lane slices + leading-axis stack
        # (cheap, layout-friendly; avoids a lane-splitting reshape).
        return jnp.stack([t[:, h * d:(h + 1) * d] for h in range(n_head)],
                         axis=0).astype(bf16)

    def mha(xq_f32, xkv_bf, bias, wq_r, wk_r, wv_r, wfc_r, g_r, b_r):
        # Fused wide projections (1/sqrt(d_k) already folded into wq at init).
        q_w = jnp.dot(xq_f32.astype(bf16), wq_r[...],
                      preferred_element_type=f32)                       # (Tq, H*dk)
        k_w = jnp.dot(xkv_bf, wk_r[...], preferred_element_type=f32)    # (Sk, H*dk)
        v_w = jnp.dot(xkv_bf, wv_r[...], preferred_element_type=f32)    # (Sk, H*dv)

        qh = split_heads(q_w, d_k)                                      # (H,Tq,dk)
        kh = split_heads(k_w, d_k)                                      # (H,Sk,dk)
        vh = split_heads(v_w, d_v)                                      # (H,Sk,dv)

        s = jnp.einsum('hqd,hkd->hqk', qh, kh,
                       preferred_element_type=f32)                      # (H,Tq,Sk)
        s = s + bias
        s = s - jnp.max(s, axis=-1, keepdims=True)
        p = jnp.exp(s)
        # approx reciprocal: ~1e-3 rel error, below bf16 output precision anyway.
        p = p * pl.reciprocal(jnp.sum(p, axis=-1, keepdims=True), approx=True)

        o = jnp.einsum('hqk,hkd->hqd', p.astype(bf16), vh,
                       preferred_element_type=f32)                      # (H,Tq,dv)
        # Head merge (lane concat) + ONE wide output projection over K = H*dv.
        ctx = jnp.concatenate([o[h] for h in range(n_head)],
                              axis=-1).astype(bf16)                     # (Tq, H*dv)
        attn_out = jnp.dot(ctx, wfc_r[...], preferred_element_type=f32) # (Tq, D)
        y = _layer_norm(attn_out + xq_f32, g_r[...], b_r[...])          # residual+LN
        return y, p

    # 1) masked self-attention (K/V from the full raw decoder input)
    y1, p_slf = mha(xq0, dec_kv, slf_bias, swq_ref, swk_ref, swv_ref, swfc_ref,
                    ln1g_ref, ln1b_ref)
    # 2) encoder-decoder cross-attention
    y2, p_enc = mha(y1, enc_kv, enc_bias, cwq_ref, cwk_ref, cwv_ref, cwfc_ref,
                    ln2g_ref, ln2b_ref)
    # 3) position-wise feed-forward
    h1 = jnp.dot(y2.astype(bf16), w1_ref[...],
                 preferred_element_type=f32) + b1_ref[...]
    h1 = jnp.maximum(h1, 0.0)                                           # ReLU
    h2 = jnp.dot(h1.astype(bf16), w2_ref[...],
                 preferred_element_type=f32) + b2_ref[...]
    y3 = _layer_norm(h2 + y2, ln3g_ref[...], ln3b_ref[...])             # residual+LN

    out_ref[0] = y3.astype(out_ref.dtype)
    sattn_ref[0] = p_slf.astype(sattn_ref.dtype)
    eattn_ref[0] = p_enc.astype(eattn_ref.dtype)


# ----------------------------------- wrapper ----------------------------------

def _pick_tile_q(sq):
    if sq <= 256:
        return sq
    for cand in (256, 128, 64, 32, 16, 8):
        if sq % cand == 0:
            return cand
    return sq


def decoder_layer(dec_input, enc_output, slf_attn_mask, dec_enc_attn_mask, p,
                  *, n_head, d_k, d_v):
    B, Sq, D = dec_input.shape
    Sk = enc_output.shape[1]
    d_inner = p["w1"].shape[1]
    tile_q = _pick_tile_q(Sq)
    n_q = Sq // tile_q

    # bf16 inputs: halves per-step DMA; kernel uses bf16 on every MXU path anyway.
    dec_bf = dec_input.astype(jnp.bfloat16)
    enc_bf = enc_output.astype(jnp.bfloat16)
    smask = slf_attn_mask.astype(jnp.float32)
    emask = dec_enc_attn_mask.astype(jnp.float32)

    args = (dec_bf, dec_bf, enc_bf, smask, emask,
            p["s_wq"], p["s_wk"], p["s_wv"], p["s_wfc"], p["ln1_g"], p["ln1_b"],
            p["c_wq"], p["c_wk"], p["c_wv"], p["c_wfc"], p["ln2_g"], p["ln2_b"],
            p["w1"], p["b1"], p["w2"], p["b2"], p["ln3_g"], p["ln3_b"])

    # Advisory cost estimate for XLA's scheduler.
    flops = 0
    flops += 2 * Sq * D * n_head * (2 * d_k + d_v)        # self q,k,v projections
    flops += 2 * n_head * Sq * Sq * (d_k + d_v)           # self scores + attn@v
    flops += 2 * Sq * n_head * d_v * D                    # self output proj
    flops += 2 * Sq * D * n_head * d_k                    # cross q proj
    flops += 2 * Sk * D * n_head * (d_k + d_v)            # cross k,v projections
    flops += 2 * n_head * Sq * Sk * (d_k + d_v)           # cross scores + attn@v
    flops += 2 * Sq * n_head * d_v * D                    # cross output proj
    flops += 4 * Sq * D * d_inner                         # FFN
    flops *= B
    flops += (n_q - 1) * B * 2 * Sq * D * n_head * (d_k + d_v)  # self K/V recompute per q-tile
    transcendentals = B * n_head * Sq * (Sq + Sk)
    out_bytes = 4 * B * Sq * D + 2 * B * n_head * Sq * (Sq + Sk)
    bytes_accessed = int(sum(int(a.nbytes) for a in args) + out_bytes)

    # VMEM limit from the actual resident footprint (weights + pipelined IO blocks
    # + rough intermediate estimate), with 2x headroom, capped at v7x's 64 MiB.
    weight_bytes = sum(int(a.nbytes) for a in args[5:])
    in_step = (tile_q * D + Sq * D + Sk * D) * 2 + (tile_q * Sq + Sk) * 4
    out_step = tile_q * D * 4 + n_head * tile_q * (Sq + Sk) * 2
    interm = 4 * (4 * n_head * tile_q * (Sq + Sk)
                  + 2 * (tile_q + 2 * Sq + 2 * Sk) * n_head * max(d_k, d_v)
                  + 2 * tile_q * d_inner + 8 * tile_q * D)
    footprint = 2 * weight_bytes + 2 * (in_step + out_step) + interm
    vmem_limit = int(min(64 * 2 ** 20, max(32 * 2 ** 20, 2 * footprint)))

    kernel = functools.partial(decoder_layer_kernel, n_head, d_k, d_v)

    out_shape = (
        jax.ShapeDtypeStruct((B, Sq, D), jnp.float32),
        jax.ShapeDtypeStruct((B, n_head, Sq, Sq), jnp.bfloat16),
        jax.ShapeDtypeStruct((B, n_head, Sq, Sk), jnp.bfloat16),
    )

    def build(single_buffer_weights):
        def w_spec(shape):
            n = len(shape)
            idx = lambda b, qi, _n=n: (0,) * _n
            if single_buffer_weights:
                # Constant-index blocks: single-buffer to reclaim VMEM.
                return pl.BlockSpec(shape, idx, pipeline_mode=pl.Buffered(1))
            return pl.BlockSpec(shape, idx)

        in_specs = [
            pl.BlockSpec((1, tile_q, D), lambda b, qi: (b, qi, 0)),   # dec query tile
            pl.BlockSpec((1, Sq, D), lambda b, qi: (b, 0, 0)),        # dec full (self K/V)
            pl.BlockSpec((1, Sk, D), lambda b, qi: (b, 0, 0)),        # enc output
            pl.BlockSpec((1, tile_q, Sq), lambda b, qi: (b, qi, 0)),  # self-attn mask
            pl.BlockSpec((1, 1, Sk), lambda b, qi: (b, 0, 0)),        # dec-enc mask
            w_spec((D, n_head * d_k)), w_spec((D, n_head * d_k)),     # s_wq, s_wk
            w_spec((D, n_head * d_v)), w_spec((n_head * d_v, D)),     # s_wv, s_wfc
            w_spec((1, D)), w_spec((1, D)),                           # ln1 gamma/beta
            w_spec((D, n_head * d_k)), w_spec((D, n_head * d_k)),     # c_wq, c_wk
            w_spec((D, n_head * d_v)), w_spec((n_head * d_v, D)),     # c_wv, c_wfc
            w_spec((1, D)), w_spec((1, D)),                           # ln2 gamma/beta
            w_spec((D, d_inner)), w_spec((1, d_inner)),               # w1, b1
            w_spec((d_inner, D)), w_spec((1, D)),                     # w2, b2
            w_spec((1, D)), w_spec((1, D)),                           # ln3 gamma/beta
        ]
        out_specs = (
            pl.BlockSpec((1, tile_q, D), lambda b, qi: (b, qi, 0)),
            pl.BlockSpec((1, n_head, tile_q, Sq), lambda b, qi: (b, 0, qi, 0)),
            pl.BlockSpec((1, n_head, tile_q, Sk), lambda b, qi: (b, 0, qi, 0)),
        )
        return pl.pallas_call(
            kernel,
            out_shape=out_shape,
            grid=(B, n_q),
            in_specs=in_specs,
            out_specs=out_specs,
            compiler_params=pltpu.CompilerParams(
                dimension_semantics=("parallel", "parallel"),
                vmem_limit_bytes=vmem_limit),
            cost_estimate=pl.CostEstimate(flops=int(flops),
                                          transcendentals=int(transcendentals),
                                          bytes_accessed=bytes_accessed),
        )

    try:
        return build(True)(*args)
    except Exception:
        # pl.Buffered(1) single-buffering of constant weight blocks is not
        # supported by every JAX/Mosaic version; fall back to default
        # double-buffering (correctness unaffected).
        return build(False)(*args)


# ------------------------------ parameter setup -------------------------------

def init_decoder_layer_params(key, *, d_model, d_inner, n_head, d_k, d_v):
    ks = jax.random.split(key, 12)
    inv_temp = 1.0 / (float(d_k) ** 0.5)

    def w(k, shape, scale=0.05):
        # matmul weights stored bf16 (native MXU dtype); accumulation stays f32.
        return (scale * jax.random.normal(k, shape, jnp.float32)).astype(jnp.bfloat16)

    def wq(k, shape, scale=0.05):
        # 1/sqrt(d_k) softmax temperature folded into the query projection.
        return (scale * inv_temp *
                jax.random.normal(k, shape, jnp.float32)).astype(jnp.bfloat16)

    return {
        # self-attention (head-fused wide weights)
        "s_wq": wq(ks[0], (d_model, n_head * d_k)),
        "s_wk": w(ks[1], (d_model, n_head * d_k)),
        "s_wv": w(ks[2], (d_model, n_head * d_v)),
        "s_wfc": w(ks[3], (n_head * d_v, d_model)),
        "ln1_g": jnp.ones((1, d_model), jnp.float32),
        "ln1_b": jnp.zeros((1, d_model), jnp.float32),
        # encoder-decoder cross-attention
        "c_wq": wq(ks[4], (d_model, n_head * d_k)),
        "c_wk": w(ks[5], (d_model, n_head * d_k)),
        "c_wv": w(ks[6], (d_model, n_head * d_v)),
        "c_wfc": w(ks[7], (n_head * d_v, d_model)),
        "ln2_g": jnp.ones((1, d_model), jnp.float32),
        "ln2_b": jnp.zeros((1, d_model), jnp.float32),
        # position-wise feed-forward
        "w1": w(ks[8], (d_model, d_inner)),
        "b1": 0.01 * jax.random.normal(ks[9], (1, d_inner), jnp.float32),
        "w2": w(ks[10], (d_inner, d_model)),
        "b2": 0.01 * jax.random.normal(ks[11], (1, d_model), jnp.float32),
        "ln3_g": jnp.ones((1, d_model), jnp.float32),
        "ln3_b": jnp.zeros((1, d_model), jnp.float32),
    }


# ------------------------------------ main -------------------------------------

if __name__ == "__main__":
    # NOTE: demo shapes are a correctness-test config (lane dims < 128); for
    # production use multiples of 128/256 for D, d_inner, H*d_k and sequence tiles.
    B, Sq, Sk = 2, 8, 12                 # decoder len 8, encoder len 12
    d_model, d_inner = 32, 64
    n_head, d_k, d_v = 4, 8, 8

    key = jax.random.PRNGKey(0)
    k_par, k_dec, k_enc = jax.random.split(key, 3)

    params = init_decoder_layer_params(k_par, d_model=d_model, d_inner=d_inner,
                                       n_head=n_head, d_k=d_k, d_v=d_v)

    dec_input = jax.random.normal(k_dec, (B, Sq, d_model), jnp.float32)
    enc_output = jax.random.normal(k_enc, (B, Sk, d_model), jnp.float32)

    # Self-attn mask = causal AND decoder padding; cross-attn mask = encoder padding.
    dec_pad = jnp.ones((B, Sq), jnp.float32).at[:, -2:].set(0.0)   # last 2 dec tokens pad
    enc_pad = jnp.ones((B, Sk), jnp.float32).at[:, -3:].set(0.0)   # last 3 enc tokens pad
    causal = jnp.tril(jnp.ones((Sq, Sq), jnp.float32))
    slf_attn_mask = dec_pad[:, None, :] * causal[None, :, :]       # (B, Sq, Sq)
    dec_enc_attn_mask = enc_pad[:, None, :]                        # (B, 1, Sk)

    dec_out, dec_slf_attn, dec_enc_attn = decoder_layer(
        dec_input, enc_output, slf_attn_mask, dec_enc_attn_mask, params,
        n_head=n_head, d_k=d_k, d_v=d_v)
    dec_out = jax.block_until_ready(dec_out)

    assert dec_out.shape == (B, Sq, d_model)
    assert dec_slf_attn.shape == (B, n_head, Sq, Sq)
    assert dec_enc_attn.shape == (B, n_head, Sq, Sk)
    assert bool(jnp.all(jnp.isfinite(dec_out)))
    assert bool(jnp.all(jnp.isfinite(dec_slf_attn.astype(jnp.float32))))
    assert bool(jnp.all(jnp.isfinite(dec_enc_attn.astype(jnp.float32))))
    print("KERNEL_OK")
</pallas_src>

<mosaic_0001>
module attributes {stable_mosaic.version = 11 : i64} {
  func.func @decoder_layer_kernel(%arg0: i32, %arg1: i32, %arg2: memref<1x8x32xbf16, #tpu.memory_space<vmem>>, %arg3: memref<1x8x32xbf16, #tpu.memory_space<vmem>>, %arg4: memref<1x12x32xbf16, #tpu.memory_space<vmem>>, %arg5: memref<1x8x8xf32, #tpu.memory_space<vmem>>, %arg6: memref<1x1x12xf32, #tpu.memory_space<vmem>>, %arg7: memref<32x32xbf16, #tpu.memory_space<vmem>>, %arg8: memref<32x32xbf16, #tpu.memory_space<vmem>>, %arg9: memref<32x32xbf16, #tpu.memory_space<vmem>>, %arg10: memref<32x32xbf16, #tpu.memory_space<vmem>>, %arg11: memref<1x32xf32, #tpu.memory_space<vmem>>, %arg12: memref<1x32xf32, #tpu.memory_space<vmem>>, %arg13: memref<32x32xbf16, #tpu.memory_space<vmem>>, %arg14: memref<32x32xbf16, #tpu.memory_space<vmem>>, %arg15: memref<32x32xbf16, #tpu.memory_space<vmem>>, %arg16: memref<32x32xbf16, #tpu.memory_space<vmem>>, %arg17: memref<1x32xf32, #tpu.memory_space<vmem>>, %arg18: memref<1x32xf32, #tpu.memory_space<vmem>>, %arg19: memref<32x64xbf16, #tpu.memory_space<vmem>>, %arg20: memref<1x64xf32, #tpu.memory_space<vmem>>, %arg21: memref<64x32xbf16, #tpu.memory_space<vmem>>, %arg22: memref<1x32xf32, #tpu.memory_space<vmem>>, %arg23: memref<1x32xf32, #tpu.memory_space<vmem>>, %arg24: memref<1x32xf32, #tpu.memory_space<vmem>>, %arg25: memref<1x8x32xf32, #tpu.memory_space<vmem>>, %arg26: memref<1x4x8x8xbf16, #tpu.memory_space<vmem>>, %arg27: memref<1x4x8x12xbf16, #tpu.memory_space<vmem>>) attributes {dimension_semantics = [#tpu.dimension_semantics<parallel>, #tpu.dimension_semantics<parallel>], iteration_bounds = array<i64: 2, 1>, scalar_prefetch = 0 : i64, scratch_operands = 0 : i64, tpu.core_type = #tpu.core_type<tc>, window_params = [{transform_indices = @transform_0, window_bounds = array<i64: 1, 8, 32>}, {transform_indices = @transform_1, window_bounds = array<i64: 1, 8, 32>}, {transform_indices = @transform_2, window_bounds = array<i64: 1, 12, 32>}, {transform_indices = @transform_3, window_bounds = array<i64: 1, 8, 8>}, {transform_indices = @transform_4, window_bounds = array<i64: 1, 1, 12>}, {pipeline_mode = #tpu.pipeline_mode<synchronous>, transform_indices = @transform_5, window_bounds = array<i64: 32, 32>}, {pipeline_mode = #tpu.pipeline_mode<synchronous>, transform_indices = @transform_6, window_bounds = array<i64: 32, 32>}, {pipeline_mode = #tpu.pipeline_mode<synchronous>, transform_indices = @transform_7, window_bounds = array<i64: 32, 32>}, {pipeline_mode = #tpu.pipeline_mode<synchronous>, transform_indices = @transform_8, window_bounds = array<i64: 32, 32>}, {pipeline_mode = #tpu.pipeline_mode<synchronous>, transform_indices = @transform_9, window_bounds = array<i64: 1, 32>}, {pipeline_mode = #tpu.pipeline_mode<synchronous>, transform_indices = @transform_10, window_bounds = array<i64: 1, 32>}, {pipeline_mode = #tpu.pipeline_mode<synchronous>, transform_indices = @transform_11, window_bounds = array<i64: 32, 32>}, {pipeline_mode = #tpu.pipeline_mode<synchronous>, transform_indices = @transform_12, window_bounds = array<i64: 32, 32>}, {pipeline_mode = #tpu.pipeline_mode<synchronous>, transform_indices = @transform_13, window_bounds = array<i64: 32, 32>}, {pipeline_mode = #tpu.pipeline_mode<synchronous>, transform_indices = @transform_14, window_bounds = array<i64: 32, 32>}, {pipeline_mode = #tpu.pipeline_mode<synchronous>, transform_indices = @transform_15, window_bounds = array<i64: 1, 32>}, {pipeline_mode = #tpu.pipeline_mode<synchronous>, transform_indices = @transform_16, window_bounds = array<i64: 1, 32>}, {pipeline_mode = #tpu.pipeline_mode<synchronous>, transform_indices = @transform_17, window_bounds = array<i64: 32, 64>}, {pipeline_mode = #tpu.pipeline_mode<synchronous>, transform_indices = @transform_18, window_bounds = array<i64: 1, 64>}, {pipeline_mode = #tpu.pipeline_mode<synchronous>, transform_indices = @transform_19, window_bounds = array<i64: 64, 32>}, {pipeline_mode = #tpu.pipeline_mode<synchronous>, transform_indices = @transform_20, window_bounds = array<i64: 1, 32>}, {pipeline_mode = #tpu.pipeline_mode<synchronous>, transform_indices = @transform_21, window_bounds = array<i64: 1, 32>}, {pipeline_mode = #tpu.pipeline_mode<synchronous>, transform_indices = @transform_22, window_bounds = array<i64: 1, 32>}, {transform_indices = @transform_23, window_bounds = array<i64: 1, 8, 32>}, {transform_indices = @transform_24, window_bounds = array<i64: 1, 4, 8, 8>}, {transform_indices = @transform_25, window_bounds = array<i64: 1, 4, 8, 12>}]} {
    %c0 = arith.constant 0 : index
    %c0_0 = arith.constant 0 : index
    %c0_1 = arith.constant 0 : index
    %0 = vector.load %arg2[%c0, %c0_0, %c0_1] : memref<1x8x32xbf16, #tpu.memory_space<vmem>>, vector<1x8x32xbf16>
    %1 = vector.shape_cast %0 : vector<1x8x32xbf16> to vector<8x32xbf16>
    %2 = arith.extf %1 : vector<8x32xbf16> to vector<8x32xf32>
    %c0_2 = arith.constant 0 : index
    %c0_3 = arith.constant 0 : index
    %c0_4 = arith.constant 0 : index
    %3 = vector.load %arg3[%c0_2, %c0_3, %c0_4] : memref<1x8x32xbf16, #tpu.memory_space<vmem>>, vector<1x8x32xbf16>
    %4 = vector.shape_cast %3 : vector<1x8x32xbf16> to vector<8x32xbf16>
    %c0_5 = arith.constant 0 : index
    %c0_6 = arith.constant 0 : index
    %c0_7 = arith.constant 0 : index
    %5 = vector.load %arg4[%c0_5, %c0_6, %c0_7] : memref<1x12x32xbf16, #tpu.memory_space<vmem>>, vector<1x12x32xbf16>
    %6 = vector.shape_cast %5 : vector<1x12x32xbf16> to vector<12x32xbf16>
    %c0_8 = arith.constant 0 : index
    %c0_9 = arith.constant 0 : index
    %c0_10 = arith.constant 0 : index
    %7 = vector.load %arg5[%c0_8, %c0_9, %c0_10] : memref<1x8x8xf32, #tpu.memory_space<vmem>>, vector<1x8x8xf32>
    %8 = vector.shape_cast %7 : vector<1x8x8xf32> to vector<8x8xf32>
    %cst = arith.constant 0.000000e+00 : f32
    %9 = vector.broadcast %cst : f32 to vector<8x8xf32>
    %10 = arith.cmpf oeq, %8, %9 : vector<8x8xf32>
    %cst_11 = arith.constant -1.000000e+09 : f32
    %cst_12 = arith.constant 0.000000e+00 : f32
    %11 = vector.broadcast %cst_11 : f32 to vector<8x8xf32>
    %12 = vector.broadcast %cst_12 : f32 to vector<8x8xf32>
    %13 = arith.select %10, %11, %12 : vector<8x8xi1>, vector<8x8xf32>
    %14 = vector.shape_cast %13 : vector<8x8xf32> to vector<1x8x8xf32>
    %c0_13 = arith.constant 0 : index
    %c0_14 = arith.constant 0 : index
    %c0_15 = arith.constant 0 : index
    %15 = vector.load %arg6[%c0_13, %c0_14, %c0_15] : memref<1x1x12xf32, #tpu.memory_space<vmem>>, vector<1x1x12xf32>
    %16 = vector.shape_cast %15 : vector<1x1x12xf32> to vector<1x12xf32>
    %cst_16 = arith.constant 0.000000e+00 : f32
    %17 = vector.broadcast %cst_16 : f32 to vector<1x12xf32>
    %18 = arith.cmpf oeq, %16, %17 : vector<1x12xf32>
    %cst_17 = arith.constant -1.000000e+09 : f32
    %cst_18 = arith.constant 0.000000e+00 : f32
    %19 = vector.broadcast %cst_17 : f32 to vector<1x12xf32>
    %20 = vector.broadcast %cst_18 : f32 to vector<1x12xf32>
    %21 = arith.select %18, %19, %20 : vector<1x12xi1>, vector<1x12xf32>
    %22 = vector.shape_cast %21 : vector<1x12xf32> to vector<1x1x12xf32>
    %23 = arith.truncf %2 : vector<8x32xf32> to vector<8x32xbf16>
    %c0_19 = arith.constant 0 : index
    %c0_20 = arith.constant 0 : index
    %24 = vector.load %arg7[%c0_19, %c0_20] : memref<32x32xbf16, #tpu.memory_space<vmem>>, vector<32x32xbf16>
    %cst_21 = arith.constant dense<0.000000e+00> : vector<8x32xf32>
    %25 = tpu.matmul %23, %24, %cst_21 {dimension_numbers = #tpu.dot_dimension_numbers<[1], [0], [0], [1], [0, 0, 1, 1], [], []>} : vector<8x32xbf16>, vector<32x32xbf16>, vector<8x32xf32> -> vector<8x32xf32>
    %c0_22 = arith.constant 0 : index
    %c0_23 = arith.constant 0 : index
    %26 = vector.load %arg8[%c0_22, %c0_23] : memref<32x32xbf16, #tpu.memory_space<vmem>>, vector<32x32xbf16>
    %cst_24 = arith.constant dense<0.000000e+00> : vector<8x32xf32>
    %27 = tpu.matmul %4, %26, %cst_24 {dimension_numbers = #tpu.dot_dimension_numbers<[1], [0], [0], [1], [0, 0, 1, 1], [], []>} : vector<8x32xbf16>, vector<32x32xbf16>, vector<8x32xf32> -> vector<8x32xf32>
    %c0_25 = arith.constant 0 : index
    %c0_26 = arith.constant 0 : index
    %28 = vector.load %arg9[%c0_25, %c0_26] : memref<32x32xbf16, #tpu.memory_space<vmem>>, vector<32x32xbf16>
    %cst_27 = arith.constant dense<0.000000e+00> : vector<8x32xf32>
    %29 = tpu.matmul %4, %28, %cst_27 {dimension_numbers = #tpu.dot_dimension_numbers<[1], [0], [0], [1], [0, 0, 1, 1], [], []>} : vector<8x32xbf16>, vector<32x32xbf16>, vector<8x32xf32> -> vector<8x32xf32>
    %30 = vector.extract_strided_slice %25 {offsets = [0, 0], sizes = [8, 8], strides = [1, 1]} : vector<8x32xf32> to vector<8x8xf32>
    %31 = vector.extract_strided_slice %25 {offsets = [0, 8], sizes = [8, 8], strides = [1, 1]} : vector<8x32xf32> to vector<8x8xf32>
    %32 = vector.extract_strided_slice %25 {offsets = [0, 16], sizes = [8, 8], strides = [1, 1]} : vector<8x32xf32> to vector<8x8xf32>
    %33 = vector.extract_strided_slice %25 {offsets = [0, 24], sizes = [8, 8], strides = [1, 1]} : vector<8x32xf32> to vector<8x8xf32>
    %34 = vector.shape_cast %30 : vector<8x8xf32> to vector<1x8x8xf32>
    %35 = vector.shape_cast %31 : vector<8x8xf32> to vector<1x8x8xf32>
    %36 = vector.shape_cast %32 : vector<8x8xf32> to vector<1x8x8xf32>
    %37 = vector.shape_cast %33 : vector<8x8xf32> to vector<1x8x8xf32>
    %38 = tpu.concatenate %34, %35, %36, %37 in 0 : vector<1x8x8xf32>, vector<1x8x8xf32>, vector<1x8x8xf32>, vector<1x8x8xf32> -> vector<4x8x8xf32>
    %39 = arith.truncf %38 : vector<4x8x8xf32> to vector<4x8x8xbf16>
    %40 = vector.extract_strided_slice %27 {offsets = [0, 0], sizes = [8, 8], strides = [1, 1]} : vector<8x32xf32> to vector<8x8xf32>
    %41 = vector.extract_strided_slice %27 {offsets = [0, 8], sizes = [8, 8], strides = [1, 1]} : vector<8x32xf32> to vector<8x8xf32>
    %42 = vector.extract_strided_slice %27 {offsets = [0, 16], sizes = [8, 8], strides = [1, 1]} : vector<8x32xf32> to vector<8x8xf32>
    %43 = vector.extract_strided_slice %27 {offsets = [0, 24], sizes = [8, 8], strides = [1, 1]} : vector<8x32xf32> to vector<8x8xf32>
    %44 = vector.shape_cast %40 : vector<8x8xf32> to vector<1x8x8xf32>
    %45 = vector.shape_cast %41 : vector<8x8xf32> to vector<1x8x8xf32>
    %46 = vector.shape_cast %42 : vector<8x8xf32> to vector<1x8x8xf32>
    %47 = vector.shape_cast %43 : vector<8x8xf32> to vector<1x8x8xf32>
    %48 = tpu.concatenate %44, %45, %46, %47 in 0 : vector<1x8x8xf32>, vector<1x8x8xf32>, vector<1x8x8xf32>, vector<1x8x8xf32> -> vector<4x8x8xf32>
    %49 = arith.truncf %48 : vector<4x8x8xf32> to vector<4x8x8xbf16>
    %50 = vector.extract_strided_slice %29 {offsets = [0, 0], sizes = [8, 8], strides = [1, 1]} : vector<8x32xf32> to vector<8x8xf32>
    %51 = vector.extract_strided_slice %29 {offsets = [0, 8], sizes = [8, 8], strides = [1, 1]} : vector<8x32xf32> to vector<8x8xf32>
    %52 = vector.extract_strided_slice %29 {offsets = [0, 16], sizes = [8, 8], strides = [1, 1]} : vector<8x32xf32> to vector<8x8xf32>
    %53 = vector.extract_strided_slice %29 {offsets = [0, 24], sizes = [8, 8], strides = [1, 1]} : vector<8x32xf32> to vector<8x8xf32>
    %54 = vector.shape_cast %50 : vector<8x8xf32> to vector<1x8x8xf32>
    %55 = vector.shape_cast %51 : vector<8x8xf32> to vector<1x8x8xf32>
    %56 = vector.shape_cast %52 : vector<8x8xf32> to vector<1x8x8xf32>
    %57 = vector.shape_cast %53 : vector<8x8xf32> to vector<1x8x8xf32>
    %58 = tpu.concatenate %54, %55, %56, %57 in 0 : vector<1x8x8xf32>, vector<1x8x8xf32>, vector<1x8x8xf32>, vector<1x8x8xf32> -> vector<4x8x8xf32>
    %59 = arith.truncf %58 : vector<4x8x8xf32> to vector<4x8x8xbf16>
    "tpu.trace_start"() <{level = 10 : i32, message = "hqd,hkd->hqk"}> : () -> ()
    %cst_28 = arith.constant dense<0.000000e+00> : vector<4x8x8xf32>
    %60 = tpu.matmul %39, %49, %cst_28 {dimension_numbers = #tpu.dot_dimension_numbers<[2], [2], [1], [1], [0, 0, 0, 1, 1, 1], [0], [0]>} : vector<4x8x8xbf16>, vector<4x8x8xbf16>, vector<4x8x8xf32> -> vector<4x8x8xf32>
    "tpu.trace_stop"() : () -> ()
    %61 = vector.broadcast %14 : vector<1x8x8xf32> to vector<4x8x8xf32>
    %62 = arith.addf %60, %61 : vector<4x8x8xf32>
    %cst_29 = arith.constant dense<0xFF800000> : vector<4x8xf32>
    %63 = vector.multi_reduction <maximumf>, %62, %cst_29 [2] : vector<4x8x8xf32> to vector<4x8xf32>
    %64 = vector.shape_cast %63 : vector<4x8xf32> to vector<4x8x1xf32>
    %65 = vector.broadcast %64 : vector<4x8x1xf32> to vector<4x8x8xf32>
    %66 = arith.subf %62, %65 : vector<4x8x8xf32>
    %67 = math.exp %66 : vector<4x8x8xf32>
    %cst_30 = arith.constant dense<0.000000e+00> : vector<4x8xf32>
    %68 = vector.multi_reduction <add>, %67, %cst_30 [2] : vector<4x8x8xf32> to vector<4x8xf32>
    %69 = vector.shape_cast %68 : vector<4x8xf32> to vector<4x8x1xf32>
    %70 = tpu.reciprocal %69 {approx = true} : vector<4x8x1xf32> -> vector<4x8x1xf32>
    %71 = vector.broadcast %70 : vector<4x8x1xf32> to vector<4x8x8xf32>
    %72 = arith.mulf %67, %71 : vector<4x8x8xf32>
    %73 = arith.truncf %72 : vector<4x8x8xf32> to vector<4x8x8xbf16>
    "tpu.trace_start"() <{level = 10 : i32, message = "hqk,hkd->hqd"}> : () -> ()
    %cst_31 = arith.constant dense<0.000000e+00> : vector<4x8x8xf32>
    %74 = tpu.matmul %73, %59, %cst_31 {dimension_numbers = #tpu.dot_dimension_numbers<[2], [1], [1], [2], [0, 0, 0, 1, 1, 2], [0], [0]>} : vector<4x8x8xbf16>, vector<4x8x8xbf16>, vector<4x8x8xf32> -> vector<4x8x8xf32>
    "tpu.trace_stop"() : () -> ()
    %75 = vector.extract_strided_slice %74 {offsets = [0, 0, 0], sizes = [1, 8, 8], strides = [1, 1, 1]} : vector<4x8x8xf32> to vector<1x8x8xf32>
    %76 = vector.shape_cast %75 : vector<1x8x8xf32> to vector<8x8xf32>
    %77 = vector.extract_strided_slice %74 {offsets = [1, 0, 0], sizes = [1, 8, 8], strides = [1, 1, 1]} : vector<4x8x8xf32> to vector<1x8x8xf32>
    %78 = vector.shape_cast %77 : vector<1x8x8xf32> to vector<8x8xf32>
    %79 = vector.extract_strided_slice %74 {offsets = [2, 0, 0], sizes = [1, 8, 8], strides = [1, 1, 1]} : vector<4x8x8xf32> to vector<1x8x8xf32>
    %80 = vector.shape_cast %79 : vector<1x8x8xf32> to vector<8x8xf32>
    %81 = vector.extract_strided_slice %74 {offsets = [3, 0, 0], sizes = [1, 8, 8], strides = [1, 1, 1]} : vector<4x8x8xf32> to vector<1x8x8xf32>
    %82 = vector.shape_cast %81 : vector<1x8x8xf32> to vector<8x8xf32>
    %83 = tpu.concatenate %76, %78, %80, %82 in 1 : vector<8x8xf32>, vector<8x8xf32>, vector<8x8xf32>, vector<8x8xf32> -> vector<8x32xf32>
    %84 = arith.truncf %83 : vector<8x32xf32> to vector<8x32xbf16>
    %c0_32 = arith.constant 0 : index
    %c0_33 = arith.constant 0 : index
    %85 = vector.load %arg10[%c0_32, %c0_33] : memref<32x32xbf16, #tpu.memory_space<vmem>>, vector<32x32xbf16>
    %cst_34 = arith.constant dense<0.000000e+00> : vector<8x32xf32>
    %86 = tpu.matmul %84, %85, %cst_34 {dimension_numbers = #tpu.dot_dimension_numbers<[1], [0], [0], [1], [0, 0, 1, 1], [], []>} : vector<8x32xbf16>, vector<32x32xbf16>, vector<8x32xf32> -> vector<8x32xf32>
    %87 = arith.addf %86, %2 : vector<8x32xf32>
    %c0_35 = arith.constant 0 : index
    %c0_36 = arith.constant 0 : index
    %88 = vector.load %arg11[%c0_35, %c0_36] : memref<1x32xf32, #tpu.memory_space<vmem>>, vector<1x32xf32>
    %c0_37 = arith.constant 0 : index
    %c0_38 = arith.constant 0 : index
    %89 = vector.load %arg12[%c0_37, %c0_38] : memref<1x32xf32, #tpu.memory_space<vmem>>, vector<1x32xf32>
    %cst_39 = arith.constant dense<0.000000e+00> : vector<8xf32>
    %90 = vector.multi_reduction <add>, %87, %cst_39 [1] : vector<8x32xf32> to vector<8xf32>
    %91 = vector.shape_cast %90 : vector<8xf32> to vector<8x1xf32>
    %cst_40 = arith.constant 3.200000e+01 : f32
    %92 = vector.broadcast %cst_40 : f32 to vector<8x1xf32>
    %93 = arith.divf %91, %92 : vector<8x1xf32>
    %94 = vector.broadcast %93 : vector<8x1xf32> to vector<8x32xf32>
    %95 = arith.subf %87, %94 : vector<8x32xf32>
    %96 = arith.mulf %95, %95 : vector<8x32xf32>
    %cst_41 = arith.constant dense<0.000000e+00> : vector<8xf32>
    %97 = vector.multi_reduction <add>, %96, %cst_41 [1] : vector<8x32xf32> to vector<8xf32>
    %98 = vector.shape_cast %97 : vector<8xf32> to vector<8x1xf32>
    %cst_42 = arith.constant 3.200000e+01 : f32
    %99 = vector.broadcast %cst_42 : f32 to vector<8x1xf32>
    %100 = arith.divf %98, %99 : vector<8x1xf32>
    %101 = vector.broadcast %93 : vector<8x1xf32> to vector<8x32xf32>
    %102 = arith.subf %87, %101 : vector<8x32xf32>
    %cst_43 = arith.constant 9.99999997E-7 : f32
    %103 = vector.broadcast %cst_43 : f32 to vector<8x1xf32>
    %104 = arith.addf %100, %103 : vector<8x1xf32>
    %105 = math.rsqrt %104 : vector<8x1xf32>
    %106 = vector.broadcast %105 : vector<8x1xf32> to vector<8x32xf32>
    %107 = arith.mulf %102, %106 : vector<8x32xf32>
    %108 = vector.broadcast %88 : vector<1x32xf32> to vector<8x32xf32>
    %109 = arith.mulf %107, %108 : vector<8x32xf32>
    %110 = vector.broadcast %89 : vector<1x32xf32> to vector<8x32xf32>
    %111 = arith.addf %109, %110 : vector<8x32xf32>
    %112 = arith.truncf %111 : vector<8x32xf32> to vector<8x32xbf16>
    %c0_44 = arith.constant 0 : index
    %c0_45 = arith.constant 0 : index
    %113 = vector.load %arg13[%c0_44, %c0_45] : memref<32x32xbf16, #tpu.memory_space<vmem>>, vector<32x32xbf16>
    %cst_46 = arith.constant dense<0.000000e+00> : vector<8x32xf32>
    %114 = tpu.matmul %112, %113, %cst_46 {dimension_numbers = #tpu.dot_dimension_numbers<[1], [0], [0], [1], [0, 0, 1, 1], [], []>} : vector<8x32xbf16>, vector<32x32xbf16>, vector<8x32xf32> -> vector<8x32xf32>
    %c0_47 = arith.constant 0 : index
    %c0_48 = arith.constant 0 : index
    %115 = vector.load %arg14[%c0_47, %c0_48] : memref<32x32xbf16, #tpu.memory_space<vmem>>, vector<32x32xbf16>
    %cst_49 = arith.constant dense<0.000000e+00> : vector<12x32xf32>
    %116 = tpu.matmul %6, %115, %cst_49 {dimension_numbers = #tpu.dot_dimension_numbers<[1], [0], [0], [1], [0, 0, 1, 1], [], []>} : vector<12x32xbf16>, vector<32x32xbf16>, vector<12x32xf32> -> vector<12x32xf32>
    %c0_50 = arith.constant 0 : index
    %c0_51 = arith.constant 0 : index
    %117 = vector.load %arg15[%c0_50, %c0_51] : memref<32x32xbf16, #tpu.memory_space<vmem>>, vector<32x32xbf16>
    %cst_52 = arith.constant dense<0.000000e+00> : vector<12x32xf32>
    %118 = tpu.matmul %6, %117, %cst_52 {dimension_numbers = #tpu.dot_dimension_numbers<[1], [0], [0], [1], [0, 0, 1, 1], [], []>} : vector<12x32xbf16>, vector<32x32xbf16>, vector<12x32xf32> -> vector<12x32xf32>
    %119 = vector.extract_strided_slice %114 {offsets = [0, 0], sizes = [8, 8], strides = [1, 1]} : vector<8x32xf32> to vector<8x8xf32>
    %120 = vector.extract_strided_slice %114 {offsets = [0, 8], sizes = [8, 8], strides = [1, 1]} : vector<8x32xf32> to vector<8x8xf32>
    %121 = vector.extract_strided_slice %114 {offsets = [0, 16], sizes = [8, 8], strides = [1, 1]} : vector<8x32xf32> to vector<8x8xf32>
    %122 = vector.extract_strided_slice %114 {offsets = [0, 24], sizes = [8, 8], strides = [1, 1]} : vector<8x32xf32> to vector<8x8xf32>
    %123 = vector.shape_cast %119 : vector<8x8xf32> to vector<1x8x8xf32>
    %124 = vector.shape_cast %120 : vector<8x8xf32> to vector<1x8x8xf32>
    %125 = vector.shape_cast %121 : vector<8x8xf32> to vector<1x8x8xf32>
    %126 = vector.shape_cast %122 : vector<8x8xf32> to vector<1x8x8xf32>
    %127 = tpu.concatenate %123, %124, %125, %126 in 0 : vector<1x8x8xf32>, vector<1x8x8xf32>, vector<1x8x8xf32>, vector<1x8x8xf32> -> vector<4x8x8xf32>
    %128 = arith.truncf %127 : vector<4x8x8xf32> to vector<4x8x8xbf16>
    %129 = vector.extract_strided_slice %116 {offsets = [0, 0], sizes = [12, 8], strides = [1, 1]} : vector<12x32xf32> to vector<12x8xf32>
    %130 = vector.extract_strided_slice %116 {offsets = [0, 8], sizes = [12, 8], strides = [1, 1]} : vector<12x32xf32> to vector<12x8xf32>
    %131 = vector.extract_strided_slice %116 {offsets = [0, 16], sizes = [12, 8], strides = [1, 1]} : vector<12x32xf32> to vector<12x8xf32>
    %132 = vector.extract_strided_slice %116 {offsets = [0, 24], sizes = [12, 8], strides = [1, 1]} : vector<12x32xf32> to vector<12x8xf32>
    %133 = vector.shape_cast %129 : vector<12x8xf32> to vector<1x12x8xf32>
    %134 = vector.shape_cast %130 : vector<12x8xf32> to vector<1x12x8xf32>
    %135 = vector.shape_cast %131 : vector<12x8xf32> to vector<1x12x8xf32>
    %136 = vector.shape_cast %132 : vector<12x8xf32> to vector<1x12x8xf32>
    %137 = tpu.concatenate %133, %134, %135, %136 in 0 : vector<1x12x8xf32>, vector<1x12x8xf32>, vector<1x12x8xf32>, vector<1x12x8xf32> -> vector<4x12x8xf32>
    %138 = arith.truncf %137 : vector<4x12x8xf32> to vector<4x12x8xbf16>
    %139 = vector.extract_strided_slice %118 {offsets = [0, 0], sizes = [12, 8], strides = [1, 1]} : vector<12x32xf32> to vector<12x8xf32>
    %140 = vector.extract_strided_slice %118 {offsets = [0, 8], sizes = [12, 8], strides = [1, 1]} : vector<12x32xf32> to vector<12x8xf32>
    %141 = vector.extract_strided_slice %118 {offsets = [0, 16], sizes = [12, 8], strides = [1, 1]} : vector<12x32xf32> to vector<12x8xf32>
    %142 = vector.extract_strided_slice %118 {offsets = [0, 24], sizes = [12, 8], strides = [1, 1]} : vector<12x32xf32> to vector<12x8xf32>
    %143 = vector.shape_cast %139 : vector<12x8xf32> to vector<1x12x8xf32>
    %144 = vector.shape_cast %140 : vector<12x8xf32> to vector<1x12x8xf32>
    %145 = vector.shape_cast %141 : vector<12x8xf32> to vector<1x12x8xf32>
    %146 = vector.shape_cast %142 : vector<12x8xf32> to vector<1x12x8xf32>
    %147 = tpu.concatenate %143, %144, %145, %146 in 0 : vector<1x12x8xf32>, vector<1x12x8xf32>, vector<1x12x8xf32>, vector<1x12x8xf32> -> vector<4x12x8xf32>
    %148 = arith.truncf %147 : vector<4x12x8xf32> to vector<4x12x8xbf16>
    "tpu.trace_start"() <{level = 10 : i32, message = "hqd,hkd->hqk"}> : () -> ()
    %cst_53 = arith.constant dense<0.000000e+00> : vector<4x8x12xf32>
    %149 = tpu.matmul %128, %138, %cst_53 {dimension_numbers = #tpu.dot_dimension_numbers<[2], [2], [1], [1], [0, 0, 0, 1, 1, 1], [0], [0]>} : vector<4x8x8xbf16>, vector<4x12x8xbf16>, vector<4x8x12xf32> -> vector<4x8x12xf32>
    "tpu.trace_stop"() : () -> ()
    %150 = vector.broadcast %22 : vector<1x1x12xf32> to vector<4x8x12xf32>
    %151 = arith.addf %149, %150 : vector<4x8x12xf32>
    %cst_54 = arith.constant dense<0xFF800000> : vector<4x8xf32>
    %152 = vector.multi_reduction <maximumf>, %151, %cst_54 [2] : vector<4x8x12xf32> to vector<4x8xf32>
    %153 = vector.shape_cast %152 : vector<4x8xf32> to vector<4x8x1xf32>
    %154 = vector.broadcast %153 : vector<4x8x1xf32> to vector<4x8x12xf32>
    %155 = arith.subf %151, %154 : vector<4x8x12xf32>
    %156 = math.exp %155 : vector<4x8x12xf32>
    %cst_55 = arith.constant dense<0.000000e+00> : vector<4x8xf32>
    %157 = vector.multi_reduction <add>, %156, %cst_55 [2] : vector<4x8x12xf32> to vector<4x8xf32>
    %158 = vector.shape_cast %157 : vector<4x8xf32> to vector<4x8x1xf32>
    %159 = tpu.reciprocal %158 {approx = true} : vector<4x8x1xf32> -> vector<4x8x1xf32>
    %160 = vector.broadcast %159 : vector<4x8x1xf32> to vector<4x8x12xf32>
    %161 = arith.mulf %156, %160 : vector<4x8x12xf32>
    %162 = arith.truncf %161 : vector<4x8x12xf32> to vector<4x8x12xbf16>
    "tpu.trace_start"() <{level = 10 : i32, message = "hqk,hkd->hqd"}> : () -> ()
    %cst_56 = arith.constant dense<0.000000e+00> : vector<4x8x8xf32>
    %163 = tpu.matmul %162, %148, %cst_56 {dimension_numbers = #tpu.dot_dimension_numbers<[2], [1], [1], [2], [0, 0, 0, 1, 1, 2], [0], [0]>} : vector<4x8x12xbf16>, vector<4x12x8xbf16>, vector<4x8x8xf32> -> vector<4x8x8xf32>
    "tpu.trace_stop"() : () -> ()
    %164 = vector.extract_strided_slice %163 {offsets = [0, 0, 0], sizes = [1, 8, 8], strides = [1, 1, 1]} : vector<4x8x8xf32> to vector<1x8x8xf32>
    %165 = vector.shape_cast %164 : vector<1x8x8xf32> to vector<8x8xf32>
    %166 = vector.extract_strided_slice %163 {offsets = [1, 0, 0], sizes = [1, 8, 8], strides = [1, 1, 1]} : vector<4x8x8xf32> to vector<1x8x8xf32>
    %167 = vector.shape_cast %166 : vector<1x8x8xf32> to vector<8x8xf32>
    %168 = vector.extract_strided_slice %163 {offsets = [2, 0, 0], sizes = [1, 8, 8], strides = [1, 1, 1]} : vector<4x8x8xf32> to vector<1x8x8xf32>
    %169 = vector.shape_cast %168 : vector<1x8x8xf32> to vector<8x8xf32>
    %170 = vector.extract_strided_slice %163 {offsets = [3, 0, 0], sizes = [1, 8, 8], strides = [1, 1, 1]} : vector<4x8x8xf32> to vector<1x8x8xf32>
    %171 = vector.shape_cast %170 : vector<1x8x8xf32> to vector<8x8xf32>
    %172 = tpu.concatenate %165, %167, %169, %171 in 1 : vector<8x8xf32>, vector<8x8xf32>, vector<8x8xf32>, vector<8x8xf32> -> vector<8x32xf32>
    %173 = arith.truncf %172 : vector<8x32xf32> to vector<8x32xbf16>
    %c0_57 = arith.constant 0 : index
    %c0_58 = arith.constant 0 : index
    %174 = vector.load %arg16[%c0_57, %c0_58] : memref<32x32xbf16, #tpu.memory_space<vmem>>, vector<32x32xbf16>
    %cst_59 = arith.constant dense<0.000000e+00> : vector<8x32xf32>
    %175 = tpu.matmul %173, %174, %cst_59 {dimension_numbers = #tpu.dot_dimension_numbers<[1], [0], [0], [1], [0, 0, 1, 1], [], []>} : vector<8x32xbf16>, vector<32x32xbf16>, vector<8x32xf32> -> vector<8x32xf32>
    %176 = arith.addf %175, %111 : vector<8x32xf32>
    %c0_60 = arith.constant 0 : index
    %c0_61 = arith.constant 0 : index
    %177 = vector.load %arg17[%c0_60, %c0_61] : memref<1x32xf32, #tpu.memory_space<vmem>>, vector<1x32xf32>
    %c0_62 = arith.constant 0 : index
    %c0_63 = arith.constant 0 : index
    %178 = vector.load %arg18[%c0_62, %c0_63] : memref<1x32xf32, #tpu.memory_space<vmem>>, vector<1x32xf32>
    %cst_64 = arith.constant dense<0.000000e+00> : vector<8xf32>
    %179 = vector.multi_reduction <add>, %176, %cst_64 [1] : vector<8x32xf32> to vector<8xf32>
    %180 = vector.shape_cast %179 : vector<8xf32> to vector<8x1xf32>
    %cst_65 = arith.constant 3.200000e+01 : f32
    %181 = vector.broadcast %cst_65 : f32 to vector<8x1xf32>
    %182 = arith.divf %180, %181 : vector<8x1xf32>
    %183 = vector.broadcast %182 : vector<8x1xf32> to vector<8x32xf32>
    %184 = arith.subf %176, %183 : vector<8x32xf32>
    %185 = arith.mulf %184, %184 : vector<8x32xf32>
    %cst_66 = arith.constant dense<0.000000e+00> : vector<8xf32>
    %186 = vector.multi_reduction <add>, %185, %cst_66 [1] : vector<8x32xf32> to vector<8xf32>
    %187 = vector.shape_cast %186 : vector<8xf32> to vector<8x1xf32>
    %cst_67 = arith.constant 3.200000e+01 : f32
    %188 = vector.broadcast %cst_67 : f32 to vector<8x1xf32>
    %189 = arith.divf %187, %188 : vector<8x1xf32>
    %190 = vector.broadcast %182 : vector<8x1xf32> to vector<8x32xf32>
    %191 = arith.subf %176, %190 : vector<8x32xf32>
    %cst_68 = arith.constant 9.99999997E-7 : f32
    %192 = vector.broadcast %cst_68 : f32 to vector<8x1xf32>
    %193 = arith.addf %189, %192 : vector<8x1xf32>
    %194 = math.rsqrt %193 : vector<8x1xf32>
    %195 = vector.broadcast %194 : vector<8x1xf32> to vector<8x32xf32>
    %196 = arith.mulf %191, %195 : vector<8x32xf32>
    %197 = vector.broadcast %177 : vector<1x32xf32> to vector<8x32xf32>
    %198 = arith.mulf %196, %197 : vector<8x32xf32>
    %199 = vector.broadcast %178 : vector<1x32xf32> to vector<8x32xf32>
    %200 = arith.addf %198, %199 : vector<8x32xf32>
    %201 = arith.truncf %200 : vector<8x32xf32> to vector<8x32xbf16>
    %c0_69 = arith.constant 0 : index
    %c0_70 = arith.constant 0 : index
    %202 = vector.load %arg19[%c0_69, %c0_70] : memref<32x64xbf16, #tpu.memory_space<vmem>>, vector<32x64xbf16>
    %cst_71 = arith.constant dense<0.000000e+00> : vector<8x64xf32>
    %203 = tpu.matmul %201, %202, %cst_71 {dimension_numbers = #tpu.dot_dimension_numbers<[1], [0], [0], [1], [0, 0, 1, 1], [], []>} : vector<8x32xbf16>, vector<32x64xbf16>, vector<8x64xf32> -> vector<8x64xf32>
    %c0_72 = arith.constant 0 : index
    %c0_73 = arith.constant 0 : index
    %204 = vector.load %arg20[%c0_72, %c0_73] : memref<1x64xf32, #tpu.memory_space<vmem>>, vector<1x64xf32>
    %205 = vector.broadcast %204 : vector<1x64xf32> to vector<8x64xf32>
    %206 = arith.addf %203, %205 : vector<8x64xf32>
    %cst_74 = arith.constant 0.000000e+00 : f32
    %207 = vector.broadcast %cst_74 : f32 to vector<8x64xf32>
    %208 = arith.maximumf %206, %207 : vector<8x64xf32>
    %209 = arith.truncf %208 : vector<8x64xf32> to vector<8x64xbf16>
    %c0_75 = arith.constant 0 : index
    %c0_76 = arith.constant 0 : index
    %210 = vector.load %arg21[%c0_75, %c0_76] : memref<64x32xbf16, #tpu.memory_space<vmem>>, vector<64x32xbf16>
    %cst_77 = arith.constant dense<0.000000e+00> : vector<8x32xf32>
    %211 = tpu.matmul %209, %210, %cst_77 {dimension_numbers = #tpu.dot_dimension_numbers<[1], [0], [0], [1], [0, 0, 1, 1], [], []>} : vector<8x64xbf16>, vector<64x32xbf16>, vector<8x32xf32> -> vector<8x32xf32>
    %c0_78 = arith.constant 0 : index
    %c0_79 = arith.constant 0 : index
    %212 = vector.load %arg22[%c0_78, %c0_79] : memref<1x32xf32, #tpu.memory_space<vmem>>, vector<1x32xf32>
    %213 = vector.broadcast %212 : vector<1x32xf32> to vector<8x32xf32>
    %214 = arith.addf %211, %213 : vector<8x32xf32>
    %215 = arith.addf %214, %200 : vector<8x32xf32>
    %c0_80 = arith.constant 0 : index
    %c0_81 = arith.constant 0 : index
    %216 = vector.load %arg23[%c0_80, %c0_81] : memref<1x32xf32, #tpu.memory_space<vmem>>, vector<1x32xf32>
    %c0_82 = arith.constant 0 : index
    %c0_83 = arith.constant 0 : index
    %217 = vector.load %arg24[%c0_82, %c0_83] : memref<1x32xf32, #tpu.memory_space<vmem>>, vector<1x32xf32>
    %cst_84 = arith.constant dense<0.000000e+00> : vector<8xf32>
    %218 = vector.multi_reduction <add>, %215, %cst_84 [1] : vector<8x32xf32> to vector<8xf32>
    %219 = vector.shape_cast %218 : vector<8xf32> to vector<8x1xf32>
    %cst_85 = arith.constant 3.200000e+01 : f32
    %220 = vector.broadcast %cst_85 : f32 to vector<8x1xf32>
    %221 = arith.divf %219, %220 : vector<8x1xf32>
    %222 = vector.broadcast %221 : vector<8x1xf32> to vector<8x32xf32>
    %223 = arith.subf %215, %222 : vector<8x32xf32>
    %224 = arith.mulf %223, %223 : vector<8x32xf32>
    %cst_86 = arith.constant dense<0.000000e+00> : vector<8xf32>
    %225 = vector.multi_reduction <add>, %224, %cst_86 [1] : vector<8x32xf32> to vector<8xf32>
    %226 = vector.shape_cast %225 : vector<8xf32> to vector<8x1xf32>
    %cst_87 = arith.constant 3.200000e+01 : f32
    %227 = vector.broadcast %cst_87 : f32 to vector<8x1xf32>
    %228 = arith.divf %226, %227 : vector<8x1xf32>
    %229 = vector.broadcast %221 : vector<8x1xf32> to vector<8x32xf32>
    %230 = arith.subf %215, %229 : vector<8x32xf32>
    %cst_88 = arith.constant 9.99999997E-7 : f32
    %231 = vector.broadcast %cst_88 : f32 to vector<8x1xf32>
    %232 = arith.addf %228, %231 : vector<8x1xf32>
    %233 = math.rsqrt %232 : vector<8x1xf32>
    %234 = vector.broadcast %233 : vector<8x1xf32> to vector<8x32xf32>
    %235 = arith.mulf %230, %234 : vector<8x32xf32>
    %236 = vector.broadcast %216 : vector<1x32xf32> to vector<8x32xf32>
    %237 = arith.mulf %235, %236 : vector<8x32xf32>
    %238 = vector.broadcast %217 : vector<1x32xf32> to vector<8x32xf32>
    %239 = arith.addf %237, %238 : vector<8x32xf32>
    %c0_89 = arith.constant 0 : index
    %c0_90 = arith.constant 0 : index
    %c0_91 = arith.constant 0 : index
    %240 = vector.load %arg25[%c0_89, %c0_90, %c0_91] : memref<1x8x32xf32, #tpu.memory_space<vmem>>, vector<1x8x32xf32>
    %241 = vector.shape_cast %240 : vector<1x8x32xf32> to vector<8x32xf32>
    %242 = vector.shape_cast %239 : vector<8x32xf32> to vector<1x8x32xf32>
    tpu.vector_store %arg25[%c0_89, %c0_90, %c0_91], %242 {strides = array<i32>} : memref<1x8x32xf32, #tpu.memory_space<vmem>>, vector<1x8x32xf32>,
    %243 = arith.truncf %72 : vector<4x8x8xf32> to vector<4x8x8xbf16>
    %c0_92 = arith.constant 0 : index
    %c0_93 = arith.constant 0 : index
    %c0_94 = arith.constant 0 : index
    %c0_95 = arith.constant 0 : index
    %244 = vector.load %arg26[%c0_92, %c0_93, %c0_94, %c0_95] : memref<1x4x8x8xbf16, #tpu.memory_space<vmem>>, vector<1x4x8x8xbf16>
    %245 = vector.shape_cast %244 : vector<1x4x8x8xbf16> to vector<4x8x8xbf16>
    %246 = vector.shape_cast %243 : vector<4x8x8xbf16> to vector<1x4x8x8xbf16>
    tpu.vector_store %arg26[%c0_92, %c0_93, %c0_94, %c0_95], %246 {strides = array<i32>} : memref<1x4x8x8xbf16, #tpu.memory_space<vmem>>, vector<1x4x8x8xbf16>,
    %247 = arith.truncf %161 : vector<4x8x12xf32> to vector<4x8x12xbf16>
    %c0_96 = arith.constant 0 : index
    %c0_97 = arith.constant 0 : index
    %c0_98 = arith.constant 0 : index
    %c0_99 = arith.constant 0 : index
    %248 = vector.load %arg27[%c0_96, %c0_97, %c0_98, %c0_99] : memref<1x4x8x12xbf16, #tpu.memory_space<vmem>>, vector<1x4x8x12xbf16>
    %249 = vector.shape_cast %248 : vector<1x4x8x12xbf16> to vector<4x8x12xbf16>
    %250 = vector.shape_cast %247 : vector<4x8x12xbf16> to vector<1x4x8x12xbf16>
    tpu.vector_store %arg27[%c0_96, %c0_97, %c0_98, %c0_99], %250 {strides = array<i32>} : memref<1x4x8x12xbf16, #tpu.memory_space<vmem>>, vector<1x4x8x12xbf16>,
    return
  }
  func.func @transform_0(%arg0: i32, %arg1: i32) -> (i32, i32, i32) {
    %c0_i32 = arith.constant 0 : i32
    %c0_i32_0 = arith.constant 0 : i32
    return %arg0, %arg1, %c0_i32 : i32, i32, i32
  }
  func.func @transform_1(%arg0: i32, %arg1: i32) -> (i32, i32, i32) {
    %c0_i32 = arith.constant 0 : i32
    %c0_i32_0 = arith.constant 0 : i32
    %c0_i32_1 = arith.constant 0 : i32
    return %arg0, %c0_i32, %c0_i32_0 : i32, i32, i32
  }
  func.func @transform_2(%arg0: i32, %arg1: i32) -> (i32, i32, i32) {
    %c0_i32 = arith.constant 0 : i32
    %c0_i32_0 = arith.constant 0 : i32
    %c0_i32_1 = arith.constant 0 : i32
    return %arg0, %c0_i32, %c0_i32_0 : i32, i32, i32
  }
  func.func @transform_3(%arg0: i32, %arg1: i32) -> (i32, i32, i32) {
    %c0_i32 = arith.constant 0 : i32
    %c0_i32_0 = arith.constant 0 : i32
    return %arg0, %arg1, %c0_i32 : i32, i32, i32
  }
  func.func @transform_4(%arg0: i32, %arg1: i32) -> (i32, i32, i32) {
    %c0_i32 = arith.constant 0 : i32
    %c0_i32_0 = arith.constant 0 : i32
    %c0_i32_1 = arith.constant 0 : i32
    return %arg0, %c0_i32, %c0_i32_0 : i32, i32, i32
  }
  func.func @transform_5(%arg0: i32, %arg1: i32) -> (i32, i32) {
    %c0_i32 = arith.constant 0 : i32
    %c0_i32_0 = arith.constant 0 : i32
    %c0_i32_1 = arith.constant 0 : i32
    return %c0_i32, %c0_i32_0 : i32, i32
  }
  func.func @transform_6(%arg0: i32, %arg1: i32) -> (i32, i32) {
    %c0_i32 = arith.constant 0 : i32
    %c0_i32_0 = arith.constant 0 : i32
    %c0_i32_1 = arith.constant 0 : i32
    return %c0_i32, %c0_i32_0 : i32, i32
  }
  func.func @transform_7(%arg0: i32, %arg1: i32) -> (i32, i32) {
    %c0_i32 = arith.constant 0 : i32
    %c0_i32_0 = arith.constant 0 : i32
    %c0_i32_1 = arith.constant 0 : i32
    return %c0_i32, %c0_i32_0 : i32, i32
  }
  func.func @transform_8(%arg0: i32, %arg1: i32) -> (i32, i32) {
    %c0_i32 = arith.constant 0 : i32
    %c0_i32_0 = arith.constant 0 : i32
    %c0_i32_1 = arith.constant 0 : i32
    return %c0_i32, %c0_i32_0 : i32, i32
  }
  func.func @transform_9(%arg0: i32, %arg1: i32) -> (i32, i32) {
    %c0_i32 = arith.constant 0 : i32
    %c0_i32_0 = arith.constant 0 : i32
    %c0_i32_1 = arith.constant 0 : i32
    return %c0_i32, %c0_i32_0 : i32, i32
  }
  func.func @transform_10(%arg0: i32, %arg1: i32) -> (i32, i32) {
    %c0_i32 = arith.constant 0 : i32
    %c0_i32_0 = arith.constant 0 : i32
    %c0_i32_1 = arith.constant 0 : i32
    return %c0_i32, %c0_i32_0 : i32, i32
  }
  func.func @transform_11(%arg0: i32, %arg1: i32) -> (i32, i32) {
    %c0_i32 = arith.constant 0 : i32
    %c0_i32_0 = arith.constant 0 : i32
    %c0_i32_1 = arith.constant 0 : i32
    return %c0_i32, %c0_i32_0 : i32, i32
  }
  func.func @transform_12(%arg0: i32, %arg1: i32) -> (i32, i32) {
    %c0_i32 = arith.constant 0 : i32
    %c0_i32_0 = arith.constant 0 : i32
    %c0_i32_1 = arith.constant 0 : i32
    return %c0_i32, %c0_i32_0 : i32, i32
  }
  func.func @transform_13(%arg0: i32, %arg1: i32) -> (i32, i32) {
    %c0_i32 = arith.constant 0 : i32
    %c0_i32_0 = arith.constant 0 : i32
    %c0_i32_1 = arith.constant 0 : i32
    return %c0_i32, %c0_i32_0 : i32, i32
  }
  func.func @transform_14(%arg0: i32, %arg1: i32) -> (i32, i32) {
    %c0_i32 = arith.constant 0 : i32
    %c0_i32_0 = arith.constant 0 : i32
    %c0_i32_1 = arith.constant 0 : i32
    return %c0_i32, %c0_i32_0 : i32, i32
  }
  func.func @transform_15(%arg0: i32, %arg1: i32) -> (i32, i32) {
    %c0_i32 = arith.constant 0 : i32
    %c0_i32_0 = arith.constant 0 : i32
    %c0_i32_1 = arith.constant 0 : i32
    return %c0_i32, %c0_i32_0 : i32, i32
  }
  func.func @transform_16(%arg0: i32, %arg1: i32) -> (i32, i32) {
    %c0_i32 = arith.constant 0 : i32
    %c0_i32_0 = arith.constant 0 : i32
    %c0_i32_1 = arith.constant 0 : i32
    return %c0_i32, %c0_i32_0 : i32, i32
  }
  func.func @transform_17(%arg0: i32, %arg1: i32) -> (i32, i32) {
    %c0_i32 = arith.constant 0 : i32
    %c0_i32_0 = arith.constant 0 : i32
    %c0_i32_1 = arith.constant 0 : i32
    return %c0_i32, %c0_i32_0 : i32, i32
  }
  func.func @transform_18(%arg0: i32, %arg1: i32) -> (i32, i32) {
    %c0_i32 = arith.constant 0 : i32
    %c0_i32_0 = arith.constant 0 : i32
    %c0_i32_1 = arith.constant 0 : i32
    return %c0_i32, %c0_i32_0 : i32, i32
  }
  func.func @transform_19(%arg0: i32, %arg1: i32) -> (i32, i32) {
    %c0_i32 = arith.constant 0 : i32
    %c0_i32_0 = arith.constant 0 : i32
    %c0_i32_1 = arith.constant 0 : i32
    return %c0_i32, %c0_i32_0 : i32, i32
  }
  func.func @transform_20(%arg0: i32, %arg1: i32) -> (i32, i32) {
    %c0_i32 = arith.constant 0 : i32
    %c0_i32_0 = arith.constant 0 : i32
    %c0_i32_1 = arith.constant 0 : i32
    return %c0_i32, %c0_i32_0 : i32, i32
  }
  func.func @transform_21(%arg0: i32, %arg1: i32) -> (i32, i32) {
    %c0_i32 = arith.constant 0 : i32
    %c0_i32_0 = arith.constant 0 : i32
    %c0_i32_1 = arith.constant 0 : i32
    return %c0_i32, %c0_i32_0 : i32, i32
  }
  func.func @transform_22(%arg0: i32, %arg1: i32) -> (i32, i32) {
    %c0_i32 = arith.constant 0 : i32
    %c0_i32_0 = arith.constant 0 : i32
    %c0_i32_1 = arith.constant 0 : i32
    return %c0_i32, %c0_i32_0 : i32, i32
  }
  func.func @transform_23(%arg0: i32, %arg1: i32) -> (i32, i32, i32) {
    %c0_i32 = arith.constant 0 : i32
    %c0_i32_0 = arith.constant 0 : i32
    return %arg0, %arg1, %c0_i32 : i32, i32, i32
  }
  func.func @transform_24(%arg0: i32, %arg1: i32) -> (i32, i32, i32, i32) {
    %c0_i32 = arith.constant 0 : i32
    %c0_i32_0 = arith.constant 0 : i32
    %c0_i32_1 = arith.constant 0 : i32
    return %arg0, %c0_i32, %arg1, %c0_i32_0 : i32, i32, i32, i32
  }
  func.func @transform_25(%arg0: i32, %arg1: i32) -> (i32, i32, i32, i32) {
    %c0_i32 = arith.constant 0 : i32
    %c0_i32_0 = arith.constant 0 : i32
    %c0_i32_1 = arith.constant 0 : i32
    return %arg0, %c0_i32, %arg1, %c0_i32_0 : i32, i32, i32, i32
  }
}

module attributes {stable_mosaic.version = 11 : i64} {
  func.func @decoder_layer_kernel(%arg0: i32, %arg1: i32, %arg2: memref<1x8x32xbf16, #tpu.memory_space<vmem>>, %arg3: memref<1x8x32xbf16, #tpu.memory_space<vmem>>, %arg4: memref<1x12x32xbf16, #tpu.memory_space<vmem>>, %arg5: memref<1x8x8xf32, #tpu.memory_space<vmem>>, %arg6: memref<1x1x12xf32, #tpu.memory_space<vmem>>, %arg7: memref<32x32xbf16, #tpu.memory_space<vmem>>, %arg8: memref<32x32xbf16, #tpu.memory_space<vmem>>, %arg9: memref<32x32xbf16, #tpu.memory_space<vmem>>, %arg10: memref<32x32xbf16, #tpu.memory_space<vmem>>, %arg11: memref<1x32xf32, #tpu.memory_space<vmem>>, %arg12: memref<1x32xf32, #tpu.memory_space<vmem>>, %arg13: memref<32x32xbf16, #tpu.memory_space<vmem>>, %arg14: memref<32x32xbf16, #tpu.memory_space<vmem>>, %arg15: memref<32x32xbf16, #tpu.memory_space<vmem>>, %arg16: memref<32x32xbf16, #tpu.memory_space<vmem>>, %arg17: memref<1x32xf32, #tpu.memory_space<vmem>>, %arg18: memref<1x32xf32, #tpu.memory_space<vmem>>, %arg19: memref<32x64xbf16, #tpu.memory_space<vmem>>, %arg20: memref<1x64xf32, #tpu.memory_space<vmem>>, %arg21: memref<64x32xbf16, #tpu.memory_space<vmem>>, %arg22: memref<1x32xf32, #tpu.memory_space<vmem>>, %arg23: memref<1x32xf32, #tpu.memory_space<vmem>>, %arg24: memref<1x32xf32, #tpu.memory_space<vmem>>, %arg25: memref<1x8x32xf32, #tpu.memory_space<vmem>>, %arg26: memref<1x4x8x8xbf16, #tpu.memory_space<vmem>>, %arg27: memref<1x4x8x12xbf16, #tpu.memory_space<vmem>>) attributes {dimension_semantics = [#tpu.dimension_semantics<parallel>, #tpu.dimension_semantics<parallel>], iteration_bounds = array<i64: 2, 1>, scalar_prefetch = 0 : i64, scratch_operands = 0 : i64, tpu.core_type = #tpu.core_type<tc>, window_params = [{transform_indices = @transform_0, window_bounds = array<i64: 1, 8, 32>}, {transform_indices = @transform_1, window_bounds = array<i64: 1, 8, 32>}, {transform_indices = @transform_2, window_bounds = array<i64: 1, 12, 32>}, {transform_indices = @transform_3, window_bounds = array<i64: 1, 8, 8>}, {transform_indices = @transform_4, window_bounds = array<i64: 1, 1, 12>}, {pipeline_mode = #tpu.pipeline_mode<synchronous>, transform_indices = @transform_5, window_bounds = array<i64: 32, 32>}, {pipeline_mode = #tpu.pipeline_mode<synchronous>, transform_indices = @transform_6, window_bounds = array<i64: 32, 32>}, {pipeline_mode = #tpu.pipeline_mode<synchronous>, transform_indices = @transform_7, window_bounds = array<i64: 32, 32>}, {pipeline_mode = #tpu.pipeline_mode<synchronous>, transform_indices = @transform_8, window_bounds = array<i64: 32, 32>}, {pipeline_mode = #tpu.pipeline_mode<synchronous>, transform_indices = @transform_9, window_bounds = array<i64: 1, 32>}, {pipeline_mode = #tpu.pipeline_mode<synchronous>, transform_indices = @transform_10, window_bounds = array<i64: 1, 32>}, {pipeline_mode = #tpu.pipeline_mode<synchronous>, transform_indices = @transform_11, window_bounds = array<i64: 32, 32>}, {pipeline_mode = #tpu.pipeline_mode<synchronous>, transform_indices = @transform_12, window_bounds = array<i64: 32, 32>}, {pipeline_mode = #tpu.pipeline_mode<synchronous>, transform_indices = @transform_13, window_bounds = array<i64: 32, 32>}, {pipeline_mode = #tpu.pipeline_mode<synchronous>, transform_indices = @transform_14, window_bounds = array<i64: 32, 32>}, {pipeline_mode = #tpu.pipeline_mode<synchronous>, transform_indices = @transform_15, window_bounds = array<i64: 1, 32>}, {pipeline_mode = #tpu.pipeline_mode<synchronous>, transform_indices = @transform_16, window_bounds = array<i64: 1, 32>}, {pipeline_mode = #tpu.pipeline_mode<synchronous>, transform_indices = @transform_17, window_bounds = array<i64: 32, 64>}, {pipeline_mode = #tpu.pipeline_mode<synchronous>, transform_indices = @transform_18, window_bounds = array<i64: 1, 64>}, {pipeline_mode = #tpu.pipeline_mode<synchronous>, transform_indices = @transform_19, window_bounds = array<i64: 64, 32>}, {pipeline_mode = #tpu.pipeline_mode<synchronous>, transform_indices = @transform_20, window_bounds = array<i64: 1, 32>}, {pipeline_mode = #tpu.pipeline_mode<synchronous>, transform_indices = @transform_21, window_bounds = array<i64: 1, 32>}, {pipeline_mode = #tpu.pipeline_mode<synchronous>, transform_indices = @transform_22, window_bounds = array<i64: 1, 32>}, {transform_indices = @transform_23, window_bounds = array<i64: 1, 8, 32>}, {transform_indices = @transform_24, window_bounds = array<i64: 1, 4, 8, 8>}, {transform_indices = @transform_25, window_bounds = array<i64: 1, 4, 8, 12>}]} {
    %c0 = arith.constant 0 : index
    %c0_0 = arith.constant 0 : index
    %c0_1 = arith.constant 0 : index
    %0 = vector.load %arg2[%c0, %c0_0, %c0_1] : memref<1x8x32xbf16, #tpu.memory_space<vmem>>, vector<1x8x32xbf16>
    %1 = vector.shape_cast %0 : vector<1x8x32xbf16> to vector<8x32xbf16>
    %2 = arith.extf %1 : vector<8x32xbf16> to vector<8x32xf32>
    %c0_2 = arith.constant 0 : index
    %c0_3 = arith.constant 0 : index
    %c0_4 = arith.constant 0 : index
    %3 = vector.load %arg3[%c0_2, %c0_3, %c0_4] : memref<1x8x32xbf16, #tpu.memory_space<vmem>>, vector<1x8x32xbf16>
    %4 = vector.shape_cast %3 : vector<1x8x32xbf16> to vector<8x32xbf16>
    %c0_5 = arith.constant 0 : index
    %c0_6 = arith.constant 0 : index
    %c0_7 = arith.constant 0 : index
    %5 = vector.load %arg4[%c0_5, %c0_6, %c0_7] : memref<1x12x32xbf16, #tpu.memory_space<vmem>>, vector<1x12x32xbf16>
    %6 = vector.shape_cast %5 : vector<1x12x32xbf16> to vector<12x32xbf16>
    %c0_8 = arith.constant 0 : index
    %c0_9 = arith.constant 0 : index
    %c0_10 = arith.constant 0 : index
    %7 = vector.load %arg5[%c0_8, %c0_9, %c0_10] : memref<1x8x8xf32, #tpu.memory_space<vmem>>, vector<1x8x8xf32>
    %8 = vector.shape_cast %7 : vector<1x8x8xf32> to vector<8x8xf32>
    %cst = arith.constant 0.000000e+00 : f32
    %9 = vector.broadcast %cst : f32 to vector<8x8xf32>
    %10 = arith.cmpf oeq, %8, %9 : vector<8x8xf32>
    %cst_11 = arith.constant -1.000000e+09 : f32
    %cst_12 = arith.constant 0.000000e+00 : f32
    %11 = vector.broadcast %cst_11 : f32 to vector<8x8xf32>
    %12 = vector.broadcast %cst_12 : f32 to vector<8x8xf32>
    %13 = arith.select %10, %11, %12 : vector<8x8xi1>, vector<8x8xf32>
    %14 = vector.shape_cast %13 : vector<8x8xf32> to vector<1x8x8xf32>
    %c0_13 = arith.constant 0 : index
    %c0_14 = arith.constant 0 : index
    %c0_15 = arith.constant 0 : index
    %15 = vector.load %arg6[%c0_13, %c0_14, %c0_15] : memref<1x1x12xf32, #tpu.memory_space<vmem>>, vector<1x1x12xf32>
    %16 = vector.shape_cast %15 : vector<1x1x12xf32> to vector<1x12xf32>
    %cst_16 = arith.constant 0.000000e+00 : f32
    %17 = vector.broadcast %cst_16 : f32 to vector<1x12xf32>
    %18 = arith.cmpf oeq, %16, %17 : vector<1x12xf32>
    %cst_17 = arith.constant -1.000000e+09 : f32
    %cst_18 = arith.constant 0.000000e+00 : f32
    %19 = vector.broadcast %cst_17 : f32 to vector<1x12xf32>
    %20 = vector.broadcast %cst_18 : f32 to vector<1x12xf32>
    %21 = arith.select %18, %19, %20 : vector<1x12xi1>, vector<1x12xf32>
    %22 = vector.shape_cast %21 : vector<1x12xf32> to vector<1x1x12xf32>
    %23 = arith.truncf %2 : vector<8x32xf32> to vector<8x32xbf16>
    %c0_19 = arith.constant 0 : index
    %c0_20 = arith.constant 0 : index
    %24 = vector.load %arg7[%c0_19, %c0_20] : memref<32x32xbf16, #tpu.memory_space<vmem>>, vector<32x32xbf16>
    %cst_21 = arith.constant dense<0.000000e+00> : vector<8x32xf32>
    %25 = tpu.matmul %23, %24, %cst_21 {dimension_numbers = #tpu.dot_dimension_numbers<[1], [0], [0], [1], [0, 0, 1, 1], [], []>} : vector<8x32xbf16>, vector<32x32xbf16>, vector<8x32xf32> -> vector<8x32xf32>
    %c0_22 = arith.constant 0 : index
    %c0_23 = arith.constant 0 : index
    %26 = vector.load %arg8[%c0_22, %c0_23] : memref<32x32xbf16, #tpu.memory_space<vmem>>, vector<32x32xbf16>
    %cst_24 = arith.constant dense<0.000000e+00> : vector<8x32xf32>
    %27 = tpu.matmul %4, %26, %cst_24 {dimension_numbers = #tpu.dot_dimension_numbers<[1], [0], [0], [1], [0, 0, 1, 1], [], []>} : vector<8x32xbf16>, vector<32x32xbf16>, vector<8x32xf32> -> vector<8x32xf32>
    %c0_25 = arith.constant 0 : index
    %c0_26 = arith.constant 0 : index
    %28 = vector.load %arg9[%c0_25, %c0_26] : memref<32x32xbf16, #tpu.memory_space<vmem>>, vector<32x32xbf16>
    %cst_27 = arith.constant dense<0.000000e+00> : vector<8x32xf32>
    %29 = tpu.matmul %4, %28, %cst_27 {dimension_numbers = #tpu.dot_dimension_numbers<[1], [0], [0], [1], [0, 0, 1, 1], [], []>} : vector<8x32xbf16>, vector<32x32xbf16>, vector<8x32xf32> -> vector<8x32xf32>
    %30 = vector.extract_strided_slice %25 {offsets = [0, 0], sizes = [8, 8], strides = [1, 1]} : vector<8x32xf32> to vector<8x8xf32>
    %31 = vector.extract_strided_slice %25 {offsets = [0, 8], sizes = [8, 8], strides = [1, 1]} : vector<8x32xf32> to vector<8x8xf32>
    %32 = vector.extract_strided_slice %25 {offsets = [0, 16], sizes = [8, 8], strides = [1, 1]} : vector<8x32xf32> to vector<8x8xf32>
    %33 = vector.extract_strided_slice %25 {offsets = [0, 24], sizes = [8, 8], strides = [1, 1]} : vector<8x32xf32> to vector<8x8xf32>
    %34 = vector.shape_cast %30 : vector<8x8xf32> to vector<1x8x8xf32>
    %35 = vector.shape_cast %31 : vector<8x8xf32> to vector<1x8x8xf32>
    %36 = vector.shape_cast %32 : vector<8x8xf32> to vector<1x8x8xf32>
    %37 = vector.shape_cast %33 : vector<8x8xf32> to vector<1x8x8xf32>
    %38 = tpu.concatenate %34, %35, %36, %37 in 0 : vector<1x8x8xf32>, vector<1x8x8xf32>, vector<1x8x8xf32>, vector<1x8x8xf32> -> vector<4x8x8xf32>
    %39 = arith.truncf %38 : vector<4x8x8xf32> to vector<4x8x8xbf16>
    %40 = vector.extract_strided_slice %27 {offsets = [0, 0], sizes = [8, 8], strides = [1, 1]} : vector<8x32xf32> to vector<8x8xf32>
    %41 = vector.extract_strided_slice %27 {offsets = [0, 8], sizes = [8, 8], strides = [1, 1]} : vector<8x32xf32> to vector<8x8xf32>
    %42 = vector.extract_strided_slice %27 {offsets = [0, 16], sizes = [8, 8], strides = [1, 1]} : vector<8x32xf32> to vector<8x8xf32>
    %43 = vector.extract_strided_slice %27 {offsets = [0, 24], sizes = [8, 8], strides = [1, 1]} : vector<8x32xf32> to vector<8x8xf32>
    %44 = vector.shape_cast %40 : vector<8x8xf32> to vector<1x8x8xf32>
    %45 = vector.shape_cast %41 : vector<8x8xf32> to vector<1x8x8xf32>
    %46 = vector.shape_cast %42 : vector<8x8xf32> to vector<1x8x8xf32>
    %47 = vector.shape_cast %43 : vector<8x8xf32> to vector<1x8x8xf32>
    %48 = tpu.concatenate %44, %45, %46, %47 in 0 : vector<1x8x8xf32>, vector<1x8x8xf32>, vector<1x8x8xf32>, vector<1x8x8xf32> -> vector<4x8x8xf32>
    %49 = arith.truncf %48 : vector<4x8x8xf32> to vector<4x8x8xbf16>
    %50 = vector.extract_strided_slice %29 {offsets = [0, 0], sizes = [8, 8], strides = [1, 1]} : vector<8x32xf32> to vector<8x8xf32>
    %51 = vector.extract_strided_slice %29 {offsets = [0, 8], sizes = [8, 8], strides = [1, 1]} : vector<8x32xf32> to vector<8x8xf32>
    %52 = vector.extract_strided_slice %29 {offsets = [0, 16], sizes = [8, 8], strides = [1, 1]} : vector<8x32xf32> to vector<8x8xf32>
    %53 = vector.extract_strided_slice %29 {offsets = [0, 24], sizes = [8, 8], strides = [1, 1]} : vector<8x32xf32> to vector<8x8xf32>
    %54 = vector.shape_cast %50 : vector<8x8xf32> to vector<1x8x8xf32>
    %55 = vector.shape_cast %51 : vector<8x8xf32> to vector<1x8x8xf32>
    %56 = vector.shape_cast %52 : vector<8x8xf32> to vector<1x8x8xf32>
    %57 = vector.shape_cast %53 : vector<8x8xf32> to vector<1x8x8xf32>
    %58 = tpu.concatenate %54, %55, %56, %57 in 0 : vector<1x8x8xf32>, vector<1x8x8xf32>, vector<1x8x8xf32>, vector<1x8x8xf32> -> vector<4x8x8xf32>
    %59 = arith.truncf %58 : vector<4x8x8xf32> to vector<4x8x8xbf16>
    "tpu.trace_start"() <{level = 10 : i32, message = "hqd,hkd->hqk"}> : () -> ()
    %cst_28 = arith.constant dense<0.000000e+00> : vector<4x8x8xf32>
    %60 = tpu.matmul %39, %49, %cst_28 {dimension_numbers = #tpu.dot_dimension_numbers<[2], [2], [1], [1], [0, 0, 0, 1, 1, 1], [0], [0]>} : vector<4x8x8xbf16>, vector<4x8x8xbf16>, vector<4x8x8xf32> -> vector<4x8x8xf32>
    "tpu.trace_stop"() : () -> ()
    %61 = vector.broadcast %14 : vector<1x8x8xf32> to vector<4x8x8xf32>
    %62 = arith.addf %60, %61 : vector<4x8x8xf32>
    %cst_29 = arith.constant dense<0xFF800000> : vector<4x8xf32>
    %63 = vector.multi_reduction <maximumf>, %62, %cst_29 [2] : vector<4x8x8xf32> to vector<4x8xf32>
    %64 = vector.shape_cast %63 : vector<4x8xf32> to vector<4x8x1xf32>
    %65 = vector.broadcast %64 : vector<4x8x1xf32> to vector<4x8x8xf32>
    %66 = arith.subf %62, %65 : vector<4x8x8xf32>
    %67 = math.exp %66 : vector<4x8x8xf32>
    %cst_30 = arith.constant dense<0.000000e+00> : vector<4x8xf32>
    %68 = vector.multi_reduction <add>, %67, %cst_30 [2] : vector<4x8x8xf32> to vector<4x8xf32>
    %69 = vector.shape_cast %68 : vector<4x8xf32> to vector<4x8x1xf32>
    %70 = tpu.reciprocal %69 {approx = true} : vector<4x8x1xf32> -> vector<4x8x1xf32>
    %71 = vector.broadcast %70 : vector<4x8x1xf32> to vector<4x8x8xf32>
    %72 = arith.mulf %67, %71 : vector<4x8x8xf32>
    %73 = arith.truncf %72 : vector<4x8x8xf32> to vector<4x8x8xbf16>
    "tpu.trace_start"() <{level = 10 : i32, message = "hqk,hkd->hqd"}> : () -> ()
    %cst_31 = arith.constant dense<0.000000e+00> : vector<4x8x8xf32>
    %74 = tpu.matmul %73, %59, %cst_31 {dimension_numbers = #tpu.dot_dimension_numbers<[2], [1], [1], [2], [0, 0, 0, 1, 1, 2], [0], [0]>} : vector<4x8x8xbf16>, vector<4x8x8xbf16>, vector<4x8x8xf32> -> vector<4x8x8xf32>
    "tpu.trace_stop"() : () -> ()
    %75 = vector.extract_strided_slice %74 {offsets = [0, 0, 0], sizes = [1, 8, 8], strides = [1, 1, 1]} : vector<4x8x8xf32> to vector<1x8x8xf32>
    %76 = vector.shape_cast %75 : vector<1x8x8xf32> to vector<8x8xf32>
    %77 = vector.extract_strided_slice %74 {offsets = [1, 0, 0], sizes = [1, 8, 8], strides = [1, 1, 1]} : vector<4x8x8xf32> to vector<1x8x8xf32>
    %78 = vector.shape_cast %77 : vector<1x8x8xf32> to vector<8x8xf32>
    %79 = vector.extract_strided_slice %74 {offsets = [2, 0, 0], sizes = [1, 8, 8], strides = [1, 1, 1]} : vector<4x8x8xf32> to vector<1x8x8xf32>
    %80 = vector.shape_cast %79 : vector<1x8x8xf32> to vector<8x8xf32>
    %81 = vector.extract_strided_slice %74 {offsets = [3, 0, 0], sizes = [1, 8, 8], strides = [1, 1, 1]} : vector<4x8x8xf32> to vector<1x8x8xf32>
    %82 = vector.shape_cast %81 : vector<1x8x8xf32> to vector<8x8xf32>
    %83 = tpu.concatenate %76, %78, %80, %82 in 1 : vector<8x8xf32>, vector<8x8xf32>, vector<8x8xf32>, vector<8x8xf32> -> vector<8x32xf32>
    %84 = arith.truncf %83 : vector<8x32xf32> to vector<8x32xbf16>
    %c0_32 = arith.constant 0 : index
    %c0_33 = arith.constant 0 : index
    %85 = vector.load %arg10[%c0_32, %c0_33] : memref<32x32xbf16, #tpu.memory_space<vmem>>, vector<32x32xbf16>
    %cst_34 = arith.constant dense<0.000000e+00> : vector<8x32xf32>
    %86 = tpu.matmul %84, %85, %cst_34 {dimension_numbers = #tpu.dot_dimension_numbers<[1], [0], [0], [1], [0, 0, 1, 1], [], []>} : vector<8x32xbf16>, vector<32x32xbf16>, vector<8x32xf32> -> vector<8x32xf32>
    %87 = arith.addf %86, %2 : vector<8x32xf32>
    %c0_35 = arith.constant 0 : index
    %c0_36 = arith.constant 0 : index
    %88 = vector.load %arg11[%c0_35, %c0_36] : memref<1x32xf32, #tpu.memory_space<vmem>>, vector<1x32xf32>
    %c0_37 = arith.constant 0 : index
    %c0_38 = arith.constant 0 : index
    %89 = vector.load %arg12[%c0_37, %c0_38] : memref<1x32xf32, #tpu.memory_space<vmem>>, vector<1x32xf32>
    %cst_39 = arith.constant dense<0.000000e+00> : vector<8xf32>
    %90 = vector.multi_reduction <add>, %87, %cst_39 [1] : vector<8x32xf32> to vector<8xf32>
    %91 = vector.shape_cast %90 : vector<8xf32> to vector<8x1xf32>
    %cst_40 = arith.constant 3.200000e+01 : f32
    %92 = vector.broadcast %cst_40 : f32 to vector<8x1xf32>
    %93 = arith.divf %91, %92 : vector<8x1xf32>
    %94 = vector.broadcast %93 : vector<8x1xf32> to vector<8x32xf32>
    %95 = arith.subf %87, %94 : vector<8x32xf32>
    %96 = arith.mulf %95, %95 : vector<8x32xf32>
    %cst_41 = arith.constant dense<0.000000e+00> : vector<8xf32>
    %97 = vector.multi_reduction <add>, %96, %cst_41 [1] : vector<8x32xf32> to vector<8xf32>
    %98 = vector.shape_cast %97 : vector<8xf32> to vector<8x1xf32>
    %cst_42 = arith.constant 3.200000e+01 : f32
    %99 = vector.broadcast %cst_42 : f32 to vector<8x1xf32>
    %100 = arith.divf %98, %99 : vector<8x1xf32>
    %101 = vector.broadcast %93 : vector<8x1xf32> to vector<8x32xf32>
    %102 = arith.subf %87, %101 : vector<8x32xf32>
    %cst_43 = arith.constant 9.99999997E-7 : f32
    %103 = vector.broadcast %cst_43 : f32 to vector<8x1xf32>
    %104 = arith.addf %100, %103 : vector<8x1xf32>
    %105 = math.rsqrt %104 : vector<8x1xf32>
    %106 = vector.broadcast %105 : vector<8x1xf32> to vector<8x32xf32>
    %107 = arith.mulf %102, %106 : vector<8x32xf32>
    %108 = vector.broadcast %88 : vector<1x32xf32> to vector<8x32xf32>
    %109 = arith.mulf %107, %108 : vector<8x32xf32>
    %110 = vector.broadcast %89 : vector<1x32xf32> to vector<8x32xf32>
    %111 = arith.addf %109, %110 : vector<8x32xf32>
    %112 = arith.truncf %111 : vector<8x32xf32> to vector<8x32xbf16>
    %c0_44 = arith.constant 0 : index
    %c0_45 = arith.constant 0 : index
    %113 = vector.load %arg13[%c0_44, %c0_45] : memref<32x32xbf16, #tpu.memory_space<vmem>>, vector<32x32xbf16>
    %cst_46 = arith.constant dense<0.000000e+00> : vector<8x32xf32>
    %114 = tpu.matmul %112, %113, %cst_46 {dimension_numbers = #tpu.dot_dimension_numbers<[1], [0], [0], [1], [0, 0, 1, 1], [], []>} : vector<8x32xbf16>, vector<32x32xbf16>, vector<8x32xf32> -> vector<8x32xf32>
    %c0_47 = arith.constant 0 : index
    %c0_48 = arith.constant 0 : index
    %115 = vector.load %arg14[%c0_47, %c0_48] : memref<32x32xbf16, #tpu.memory_space<vmem>>, vector<32x32xbf16>
    %cst_49 = arith.constant dense<0.000000e+00> : vector<12x32xf32>
    %116 = tpu.matmul %6, %115, %cst_49 {dimension_numbers = #tpu.dot_dimension_numbers<[1], [0], [0], [1], [0, 0, 1, 1], [], []>} : vector<12x32xbf16>, vector<32x32xbf16>, vector<12x32xf32> -> vector<12x32xf32>
    %c0_50 = arith.constant 0 : index
    %c0_51 = arith.constant 0 : index
    %117 = vector.load %arg15[%c0_50, %c0_51] : memref<32x32xbf16, #tpu.memory_space<vmem>>, vector<32x32xbf16>
    %cst_52 = arith.constant dense<0.000000e+00> : vector<12x32xf32>
    %118 = tpu.matmul %6, %117, %cst_52 {dimension_numbers = #tpu.dot_dimension_numbers<[1], [0], [0], [1], [0, 0, 1, 1], [], []>} : vector<12x32xbf16>, vector<32x32xbf16>, vector<12x32xf32> -> vector<12x32xf32>
    %119 = vector.extract_strided_slice %114 {offsets = [0, 0], sizes = [8, 8], strides = [1, 1]} : vector<8x32xf32> to vector<8x8xf32>
    %120 = vector.extract_strided_slice %114 {offsets = [0, 8], sizes = [8, 8], strides = [1, 1]} : vector<8x32xf32> to vector<8x8xf32>
    %121 = vector.extract_strided_slice %114 {offsets = [0, 16], sizes = [8, 8], strides = [1, 1]} : vector<8x32xf32> to vector<8x8xf32>
    %122 = vector.extract_strided_slice %114 {offsets = [0, 24], sizes = [8, 8], strides = [1, 1]} : vector<8x32xf32> to vector<8x8xf32>
    %123 = vector.shape_cast %119 : vector<8x8xf32> to vector<1x8x8xf32>
    %124 = vector.shape_cast %120 : vector<8x8xf32> to vector<1x8x8xf32>
    %125 = vector.shape_cast %121 : vector<8x8xf32> to vector<1x8x8xf32>
    %126 = vector.shape_cast %122 : vector<8x8xf32> to vector<1x8x8xf32>
    %127 = tpu.concatenate %123, %124, %125, %126 in 0 : vector<1x8x8xf32>, vector<1x8x8xf32>, vector<1x8x8xf32>, vector<1x8x8xf32> -> vector<4x8x8xf32>
    %128 = arith.truncf %127 : vector<4x8x8xf32> to vector<4x8x8xbf16>
    %129 = vector.extract_strided_slice %116 {offsets = [0, 0], sizes = [12, 8], strides = [1, 1]} : vector<12x32xf32> to vector<12x8xf32>
    %130 = vector.extract_strided_slice %116 {offsets = [0, 8], sizes = [12, 8], strides = [1, 1]} : vector<12x32xf32> to vector<12x8xf32>
    %131 = vector.extract_strided_slice %116 {offsets = [0, 16], sizes = [12, 8], strides = [1, 1]} : vector<12x32xf32> to vector<12x8xf32>
    %132 = vector.extract_strided_slice %116 {offsets = [0, 24], sizes = [12, 8], strides = [1, 1]} : vector<12x32xf32> to vector<12x8xf32>
    %133 = vector.shape_cast %129 : vector<12x8xf32> to vector<1x12x8xf32>
    %134 = vector.shape_cast %130 : vector<12x8xf32> to vector<1x12x8xf32>
    %135 = vector.shape_cast %131 : vector<12x8xf32> to vector<1x12x8xf32>
    %136 = vector.shape_cast %132 : vector<12x8xf32> to vector<1x12x8xf32>
    %137 = tpu.concatenate %133, %134, %135, %136 in 0 : vector<1x12x8xf32>, vector<1x12x8xf32>, vector<1x12x8xf32>, vector<1x12x8xf32> -> vector<4x12x8xf32>
    %138 = arith.truncf %137 : vector<4x12x8xf32> to vector<4x12x8xbf16>
    %139 = vector.extract_strided_slice %118 {offsets = [0, 0], sizes = [12, 8], strides = [1, 1]} : vector<12x32xf32> to vector<12x8xf32>
    %140 = vector.extract_strided_slice %118 {offsets = [0, 8], sizes = [12, 8], strides = [1, 1]} : vector<12x32xf32> to vector<12x8xf32>
    %141 = vector.extract_strided_slice %118 {offsets = [0, 16], sizes = [12, 8], strides = [1, 1]} : vector<12x32xf32> to vector<12x8xf32>
    %142 = vector.extract_strided_slice %118 {offsets = [0, 24], sizes = [12, 8], strides = [1, 1]} : vector<12x32xf32> to vector<12x8xf32>
    %143 = vector.shape_cast %139 : vector<12x8xf32> to vector<1x12x8xf32>
    %144 = vector.shape_cast %140 : vector<12x8xf32> to vector<1x12x8xf32>
    %145 = vector.shape_cast %141 : vector<12x8xf32> to vector<1x12x8xf32>
    %146 = vector.shape_cast %142 : vector<12x8xf32> to vector<1x12x8xf32>
    %147 = tpu.concatenate %143, %144, %145, %146 in 0 : vector<1x12x8xf32>, vector<1x12x8xf32>, vector<1x12x8xf32>, vector<1x12x8xf32> -> vector<4x12x8xf32>
    %148 = arith.truncf %147 : vector<4x12x8xf32> to vector<4x12x8xbf16>
    "tpu.trace_start"() <{level = 10 : i32, message = "hqd,hkd->hqk"}> : () -> ()
    %cst_53 = arith.constant dense<0.000000e+00> : vector<4x8x12xf32>
    %149 = tpu.matmul %128, %138, %cst_53 {dimension_numbers = #tpu.dot_dimension_numbers<[2], [2], [1], [1], [0, 0, 0, 1, 1, 1], [0], [0]>} : vector<4x8x8xbf16>, vector<4x12x8xbf16>, vector<4x8x12xf32> -> vector<4x8x12xf32>
    "tpu.trace_stop"() : () -> ()
    %150 = vector.broadcast %22 : vector<1x1x12xf32> to vector<4x8x12xf32>
    %151 = arith.addf %149, %150 : vector<4x8x12xf32>
    %cst_54 = arith.constant dense<0xFF800000> : vector<4x8xf32>
    %152 = vector.multi_reduction <maximumf>, %151, %cst_54 [2] : vector<4x8x12xf32> to vector<4x8xf32>
    %153 = vector.shape_cast %152 : vector<4x8xf32> to vector<4x8x1xf32>
    %154 = vector.broadcast %153 : vector<4x8x1xf32> to vector<4x8x12xf32>
    %155 = arith.subf %151, %154 : vector<4x8x12xf32>
    %156 = math.exp %155 : vector<4x8x12xf32>
    %cst_55 = arith.constant dense<0.000000e+00> : vector<4x8xf32>
    %157 = vector.multi_reduction <add>, %156, %cst_55 [2] : vector<4x8x12xf32> to vector<4x8xf32>
    %158 = vector.shape_cast %157 : vector<4x8xf32> to vector<4x8x1xf32>
    %159 = tpu.reciprocal %158 {approx = true} : vector<4x8x1xf32> -> vector<4x8x1xf32>
    %160 = vector.broadcast %159 : vector<4x8x1xf32> to vector<4x8x12xf32>
    %161 = arith.mulf %156, %160 : vector<4x8x12xf32>
    %162 = arith.truncf %161 : vector<4x8x12xf32> to vector<4x8x12xbf16>
    "tpu.trace_start"() <{level = 10 : i32, message = "hqk,hkd->hqd"}> : () -> ()
    %cst_56 = arith.constant dense<0.000000e+00> : vector<4x8x8xf32>
    %163 = tpu.matmul %162, %148, %cst_56 {dimension_numbers = #tpu.dot_dimension_numbers<[2], [1], [1], [2], [0, 0, 0, 1, 1, 2], [0], [0]>} : vector<4x8x12xbf16>, vector<4x12x8xbf16>, vector<4x8x8xf32> -> vector<4x8x8xf32>
    "tpu.trace_stop"() : () -> ()
    %164 = vector.extract_strided_slice %163 {offsets = [0, 0, 0], sizes = [1, 8, 8], strides = [1, 1, 1]} : vector<4x8x8xf32> to vector<1x8x8xf32>
    %165 = vector.shape_cast %164 : vector<1x8x8xf32> to vector<8x8xf32>
    %166 = vector.extract_strided_slice %163 {offsets = [1, 0, 0], sizes = [1, 8, 8], strides = [1, 1, 1]} : vector<4x8x8xf32> to vector<1x8x8xf32>
    %167 = vector.shape_cast %166 : vector<1x8x8xf32> to vector<8x8xf32>
    %168 = vector.extract_strided_slice %163 {offsets = [2, 0, 0], sizes = [1, 8, 8], strides = [1, 1, 1]} : vector<4x8x8xf32> to vector<1x8x8xf32>
    %169 = vector.shape_cast %168 : vector<1x8x8xf32> to vector<8x8xf32>
    %170 = vector.extract_strided_slice %163 {offsets = [3, 0, 0], sizes = [1, 8, 8], strides = [1, 1, 1]} : vector<4x8x8xf32> to vector<1x8x8xf32>
    %171 = vector.shape_cast %170 : vector<1x8x8xf32> to vector<8x8xf32>
    %172 = tpu.concatenate %165, %167, %169, %171 in 1 : vector<8x8xf32>, vector<8x8xf32>, vector<8x8xf32>, vector<8x8xf32> -> vector<8x32xf32>
    %173 = arith.truncf %172 : vector<8x32xf32> to vector<8x32xbf16>
    %c0_57 = arith.constant 0 : index
    %c0_58 = arith.constant 0 : index
    %174 = vector.load %arg16[%c0_57, %c0_58] : memref<32x32xbf16, #tpu.memory_space<vmem>>, vector<32x32xbf16>
    %cst_59 = arith.constant dense<0.000000e+00> : vector<8x32xf32>
    %175 = tpu.matmul %173, %174, %cst_59 {dimension_numbers = #tpu.dot_dimension_numbers<[1], [0], [0], [1], [0, 0, 1, 1], [], []>} : vector<8x32xbf16>, vector<32x32xbf16>, vector<8x32xf32> -> vector<8x32xf32>
    %176 = arith.addf %175, %111 : vector<8x32xf32>
    %c0_60 = arith.constant 0 : index
    %c0_61 = arith.constant 0 : index
    %177 = vector.load %arg17[%c0_60, %c0_61] : memref<1x32xf32, #tpu.memory_space<vmem>>, vector<1x32xf32>
    %c0_62 = arith.constant 0 : index
    %c0_63 = arith.constant 0 : index
    %178 = vector.load %arg18[%c0_62, %c0_63] : memref<1x32xf32, #tpu.memory_space<vmem>>, vector<1x32xf32>
    %cst_64 = arith.constant dense<0.000000e+00> : vector<8xf32>
    %179 = vector.multi_reduction <add>, %176, %cst_64 [1] : vector<8x32xf32> to vector<8xf32>
    %180 = vector.shape_cast %179 : vector<8xf32> to vector<8x1xf32>
    %cst_65 = arith.constant 3.200000e+01 : f32
    %181 = vector.broadcast %cst_65 : f32 to vector<8x1xf32>
    %182 = arith.divf %180, %181 : vector<8x1xf32>
    %183 = vector.broadcast %182 : vector<8x1xf32> to vector<8x32xf32>
    %184 = arith.subf %176, %183 : vector<8x32xf32>
    %185 = arith.mulf %184, %184 : vector<8x32xf32>
    %cst_66 = arith.constant dense<0.000000e+00> : vector<8xf32>
    %186 = vector.multi_reduction <add>, %185, %cst_66 [1] : vector<8x32xf32> to vector<8xf32>
    %187 = vector.shape_cast %186 : vector<8xf32> to vector<8x1xf32>
    %cst_67 = arith.constant 3.200000e+01 : f32
    %188 = vector.broadcast %cst_67 : f32 to vector<8x1xf32>
    %189 = arith.divf %187, %188 : vector<8x1xf32>
    %190 = vector.broadcast %182 : vector<8x1xf32> to vector<8x32xf32>
    %191 = arith.subf %176, %190 : vector<8x32xf32>
    %cst_68 = arith.constant 9.99999997E-7 : f32
    %192 = vector.broadcast %cst_68 : f32 to vector<8x1xf32>
    %193 = arith.addf %189, %192 : vector<8x1xf32>
    %194 = math.rsqrt %193 : vector<8x1xf32>
    %195 = vector.broadcast %194 : vector<8x1xf32> to vector<8x32xf32>
    %196 = arith.mulf %191, %195 : vector<8x32xf32>
    %197 = vector.broadcast %177 : vector<1x32xf32> to vector<8x32xf32>
    %198 = arith.mulf %196, %197 : vector<8x32xf32>
    %199 = vector.broadcast %178 : vector<1x32xf32> to vector<8x32xf32>
    %200 = arith.addf %198, %199 : vector<8x32xf32>
    %201 = arith.truncf %200 : vector<8x32xf32> to vector<8x32xbf16>
    %c0_69 = arith.constant 0 : index
    %c0_70 = arith.constant 0 : index
    %202 = vector.load %arg19[%c0_69, %c0_70] : memref<32x64xbf16, #tpu.memory_space<vmem>>, vector<32x64xbf16>
    %cst_71 = arith.constant dense<0.000000e+00> : vector<8x64xf32>
    %203 = tpu.matmul %201, %202, %cst_71 {dimension_numbers = #tpu.dot_dimension_numbers<[1], [0], [0], [1], [0, 0, 1, 1], [], []>} : vector<8x32xbf16>, vector<32x64xbf16>, vector<8x64xf32> -> vector<8x64xf32>
    %c0_72 = arith.constant 0 : index
    %c0_73 = arith.constant 0 : index
    %204 = vector.load %arg20[%c0_72, %c0_73] : memref<1x64xf32, #tpu.memory_space<vmem>>, vector<1x64xf32>
    %205 = vector.broadcast %204 : vector<1x64xf32> to vector<8x64xf32>
    %206 = arith.addf %203, %205 : vector<8x64xf32>
    %cst_74 = arith.constant 0.000000e+00 : f32
    %207 = vector.broadcast %cst_74 : f32 to vector<8x64xf32>
    %208 = arith.maximumf %206, %207 : vector<8x64xf32>
    %209 = arith.truncf %208 : vector<8x64xf32> to vector<8x64xbf16>
    %c0_75 = arith.constant 0 : index
    %c0_76 = arith.constant 0 : index
    %210 = vector.load %arg21[%c0_75, %c0_76] : memref<64x32xbf16, #tpu.memory_space<vmem>>, vector<64x32xbf16>
    %cst_77 = arith.constant dense<0.000000e+00> : vector<8x32xf32>
    %211 = tpu.matmul %209, %210, %cst_77 {dimension_numbers = #tpu.dot_dimension_numbers<[1], [0], [0], [1], [0, 0, 1, 1], [], []>} : vector<8x64xbf16>, vector<64x32xbf16>, vector<8x32xf32> -> vector<8x32xf32>
    %c0_78 = arith.constant 0 : index
    %c0_79 = arith.constant 0 : index
    %212 = vector.load %arg22[%c0_78, %c0_79] : memref<1x32xf32, #tpu.memory_space<vmem>>, vector<1x32xf32>
    %213 = vector.broadcast %212 : vector<1x32xf32> to vector<8x32xf32>
    %214 = arith.addf %211, %213 : vector<8x32xf32>
    %215 = arith.addf %214, %200 : vector<8x32xf32>
    %c0_80 = arith.constant 0 : index
    %c0_81 = arith.constant 0 : index
    %216 = vector.load %arg23[%c0_80, %c0_81] : memref<1x32xf32, #tpu.memory_space<vmem>>, vector<1x32xf32>
    %c0_82 = arith.constant 0 : index
    %c0_83 = arith.constant 0 : index
    %217 = vector.load %arg24[%c0_82, %c0_83] : memref<1x32xf32, #tpu.memory_space<vmem>>, vector<1x32xf32>
    %cst_84 = arith.constant dense<0.000000e+00> : vector<8xf32>
    %218 = vector.multi_reduction <add>, %215, %cst_84 [1] : vector<8x32xf32> to vector<8xf32>
    %219 = vector.shape_cast %218 : vector<8xf32> to vector<8x1xf32>
    %cst_85 = arith.constant 3.200000e+01 : f32
    %220 = vector.broadcast %cst_85 : f32 to vector<8x1xf32>
    %221 = arith.divf %219, %220 : vector<8x1xf32>
    %222 = vector.broadcast %221 : vector<8x1xf32> to vector<8x32xf32>
    %223 = arith.subf %215, %222 : vector<8x32xf32>
    %224 = arith.mulf %223, %223 : vector<8x32xf32>
    %cst_86 = arith.constant dense<0.000000e+00> : vector<8xf32>
    %225 = vector.multi_reduction <add>, %224, %cst_86 [1] : vector<8x32xf32> to vector<8xf32>
    %226 = vector.shape_cast %225 : vector<8xf32> to vector<8x1xf32>
    %cst_87 = arith.constant 3.200000e+01 : f32
    %227 = vector.broadcast %cst_87 : f32 to vector<8x1xf32>
    %228 = arith.divf %226, %227 : vector<8x1xf32>
    %229 = vector.broadcast %221 : vector<8x1xf32> to vector<8x32xf32>
    %230 = arith.subf %215, %229 : vector<8x32xf32>
    %cst_88 = arith.constant 9.99999997E-7 : f32
    %231 = vector.broadcast %cst_88 : f32 to vector<8x1xf32>
    %232 = arith.addf %228, %231 : vector<8x1xf32>
    %233 = math.rsqrt %232 : vector<8x1xf32>
    %234 = vector.broadcast %233 : vector<8x1xf32> to vector<8x32xf32>
    %235 = arith.mulf %230, %234 : vector<8x32xf32>
    %236 = vector.broadcast %216 : vector<1x32xf32> to vector<8x32xf32>
    %237 = arith.mulf %235, %236 : vector<8x32xf32>
    %238 = vector.broadcast %217 : vector<1x32xf32> to vector<8x32xf32>
    %239 = arith.addf %237, %238 : vector<8x32xf32>
    %c0_89 = arith.constant 0 : index
    %c0_90 = arith.constant 0 : index
    %c0_91 = arith.constant 0 : index
    %240 = vector.load %arg25[%c0_89, %c0_90, %c0_91] : memref<1x8x32xf32, #tpu.memory_space<vmem>>, vector<1x8x32xf32>
    %241 = vector.shape_cast %240 : vector<1x8x32xf32> to vector<8x32xf32>
    %242 = vector.shape_cast %239 : vector<8x32xf32> to vector<1x8x32xf32>
    tpu.vector_store %arg25[%c0_89, %c0_90, %c0_91], %242 {strides = array<i32>} : memref<1x8x32xf32, #tpu.memory_space<vmem>>, vector<1x8x32xf32>,
    %243 = arith.truncf %72 : vector<4x8x8xf32> to vector<4x8x8xbf16>
    %c0_92 = arith.constant 0 : index
    %c0_93 = arith.constant 0 : index
    %c0_94 = arith.constant 0 : index
    %c0_95 = arith.constant 0 : index
    %244 = vector.load %arg26[%c0_92, %c0_93, %c0_94, %c0_95] : memref<1x4x8x8xbf16, #tpu.memory_space<vmem>>, vector<1x4x8x8xbf16>
    %245 = vector.shape_cast %244 : vector<1x4x8x8xbf16> to vector<4x8x8xbf16>
    %246 = vector.shape_cast %243 : vector<4x8x8xbf16> to vector<1x4x8x8xbf16>
    tpu.vector_store %arg26[%c0_92, %c0_93, %c0_94, %c0_95], %246 {strides = array<i32>} : memref<1x4x8x8xbf16, #tpu.memory_space<vmem>>, vector<1x4x8x8xbf16>,
    %247 = arith.truncf %161 : vector<4x8x12xf32> to vector<4x8x12xbf16>
    %c0_96 = arith.constant 0 : index
    %c0_97 = arith.constant 0 : index
    %c0_98 = arith.constant 0 : index
    %c0_99 = arith.constant 0 : index
    %248 = vector.load %arg27[%c0_96, %c0_97, %c0_98, %c0_99] : memref<1x4x8x12xbf16, #tpu.memory_space<vmem>>, vector<1x4x8x12xbf16>
    %249 = vector.shape_cast %248 : vector<1x4x8x12xbf16> to vector<4x8x12xbf16>
    %250 = vector.shape_cast %247 : vector<4x8x12xbf16> to vector<1x4x8x12xbf16>
    tpu.vector_store %arg27[%c0_96, %c0_97, %c0_98, %c0_99], %250 {strides = array<i32>} : memref<1x4x8x12xbf16, #tpu.memory_space<vmem>>, vector<1x4x8x12xbf16>,
    return
  }
  func.func @transform_0(%arg0: i32, %arg1: i32) -> (i32, i32, i32) {
    %c0_i32 = arith.constant 0 : i32
    %c0_i32_0 = arith.constant 0 : i32
    return %arg0, %arg1, %c0_i32 : i32, i32, i32
  }
  func.func @transform_1(%arg0: i32, %arg1: i32) -> (i32, i32, i32) {
    %c0_i32 = arith.constant 0 : i32
    %c0_i32_0 = arith.constant 0 : i32
    %c0_i32_1 = arith.constant 0 : i32
    return %arg0, %c0_i32, %c0_i32_0 : i32, i32, i32
  }
  func.func @transform_2(%arg0: i32, %arg1: i32) -> (i32, i32, i32) {
    %c0_i32 = arith.constant 0 : i32
    %c0_i32_0 = arith.constant 0 : i32
    %c0_i32_1 = arith.constant 0 : i32
    return %arg0, %c0_i32, %c0_i32_0 : i32, i32, i32
  }
  func.func @transform_3(%arg0: i32, %arg1: i32) -> (i32, i32, i32) {
    %c0_i32 = arith.constant 0 : i32
    %c0_i32_0 = arith.constant 0 : i32
    return %arg0, %arg1, %c0_i32 : i32, i32, i32
  }
  func.func @transform_4(%arg0: i32, %arg1: i32) -> (i32, i32, i32) {
    %c0_i32 = arith.constant 0 : i32
    %c0_i32_0 = arith.constant 0 : i32
    %c0_i32_1 = arith.constant 0 : i32
    return %arg0, %c0_i32, %c0_i32_0 : i32, i32, i32
  }
  func.func @transform_5(%arg0: i32, %arg1: i32) -> (i32, i32) {
    %c0_i32 = arith.constant 0 : i32
    %c0_i32_0 = arith.constant 0 : i32
    %c0_i32_1 = arith.constant 0 : i32
    return %c0_i32, %c0_i32_0 : i32, i32
  }
  func.func @transform_6(%arg0: i32, %arg1: i32) -> (i32, i32) {
    %c0_i32 = arith.constant 0 : i32
    %c0_i32_0 = arith.constant 0 : i32
    %c0_i32_1 = arith.constant 0 : i32
    return %c0_i32, %c0_i32_0 : i32, i32
  }
  func.func @transform_7(%arg0: i32, %arg1: i32) -> (i32, i32) {
    %c0_i32 = arith.constant 0 : i32
    %c0_i32_0 = arith.constant 0 : i32
    %c0_i32_1 = arith.constant 0 : i32
    return %c0_i32, %c0_i32_0 : i32, i32
  }
  func.func @transform_8(%arg0: i32, %arg1: i32) -> (i32, i32) {
    %c0_i32 = arith.constant 0 : i32
    %c0_i32_0 = arith.constant 0 : i32
    %c0_i32_1 = arith.constant 0 : i32
    return %c0_i32, %c0_i32_0 : i32, i32
  }
  func.func @transform_9(%arg0: i32, %arg1: i32) -> (i32, i32) {
    %c0_i32 = arith.constant 0 : i32
    %c0_i32_0 = arith.constant 0 : i32
    %c0_i32_1 = arith.constant 0 : i32
    return %c0_i32, %c0_i32_0 : i32, i32
  }
  func.func @transform_10(%arg0: i32, %arg1: i32) -> (i32, i32) {
    %c0_i32 = arith.constant 0 : i32
    %c0_i32_0 = arith.constant 0 : i32
    %c0_i32_1 = arith.constant 0 : i32
    return %c0_i32, %c0_i32_0 : i32, i32
  }
  func.func @transform_11(%arg0: i32, %arg1: i32) -> (i32, i32) {
    %c0_i32 = arith.constant 0 : i32
    %c0_i32_0 = arith.constant 0 : i32
    %c0_i32_1 = arith.constant 0 : i32
    return %c0_i32, %c0_i32_0 : i32, i32
  }
  func.func @transform_12(%arg0: i32, %arg1: i32) -> (i32, i32) {
    %c0_i32 = arith.constant 0 : i32
    %c0_i32_0 = arith.constant 0 : i32
    %c0_i32_1 = arith.constant 0 : i32
    return %c0_i32, %c0_i32_0 : i32, i32
  }
  func.func @transform_13(%arg0: i32, %arg1: i32) -> (i32, i32) {
    %c0_i32 = arith.constant 0 : i32
    %c0_i32_0 = arith.constant 0 : i32
    %c0_i32_1 = arith.constant 0 : i32
    return %c0_i32, %c0_i32_0 : i32, i32
  }
  func.func @transform_14(%arg0: i32, %arg1: i32) -> (i32, i32) {
    %c0_i32 = arith.constant 0 : i32
    %c0_i32_0 = arith.constant 0 : i32
    %c0_i32_1 = arith.constant 0 : i32
    return %c0_i32, %c0_i32_0 : i32, i32
  }
  func.func @transform_15(%arg0: i32, %arg1: i32) -> (i32, i32) {
    %c0_i32 = arith.constant 0 : i32
    %c0_i32_0 = arith.constant 0 : i32
    %c0_i32_1 = arith.constant 0 : i32
    return %c0_i32, %c0_i32_0 : i32, i32
  }
  func.func @transform_16(%arg0: i32, %arg1: i32) -> (i32, i32) {
    %c0_i32 = arith.constant 0 : i32
    %c0_i32_0 = arith.constant 0 : i32
    %c0_i32_1 = arith.constant 0 : i32
    return %c0_i32, %c0_i32_0 : i32, i32
  }
  func.func @transform_17(%arg0: i32, %arg1: i32) -> (i32, i32) {
    %c0_i32 = arith.constant 0 : i32
    %c0_i32_0 = arith.constant 0 : i32
    %c0_i32_1 = arith.constant 0 : i32
    return %c0_i32, %c0_i32_0 : i32, i32
  }
  func.func @transform_18(%arg0: i32, %arg1: i32) -> (i32, i32) {
    %c0_i32 = arith.constant 0 : i32
    %c0_i32_0 = arith.constant 0 : i32
    %c0_i32_1 = arith.constant 0 : i32
    return %c0_i32, %c0_i32_0 : i32, i32
  }
  func.func @transform_19(%arg0: i32, %arg1: i32) -> (i32, i32) {
    %c0_i32 = arith.constant 0 : i32
    %c0_i32_0 = arith.constant 0 : i32
    %c0_i32_1 = arith.constant 0 : i32
    return %c0_i32, %c0_i32_0 : i32, i32
  }
  func.func @transform_20(%arg0: i32, %arg1: i32) -> (i32, i32) {
    %c0_i32 = arith.constant 0 : i32
    %c0_i32_0 = arith.constant 0 : i32
    %c0_i32_1 = arith.constant 0 : i32
    return %c0_i32, %c0_i32_0 : i32, i32
  }
  func.func @transform_21(%arg0: i32, %arg1: i32) -> (i32, i32) {
    %c0_i32 = arith.constant 0 : i32
    %c0_i32_0 = arith.constant 0 : i32
    %c0_i32_1 = arith.constant 0 : i32
    return %c0_i32, %c0_i32_0 : i32, i32
  }
  func.func @transform_22(%arg0: i32, %arg1: i32) -> (i32, i32) {
    %c0_i32 = arith.constant 0 : i32
    %c0_i32_0 = arith.constant 0 : i32
    %c0_i32_1 = arith.constant 0 : i32
    return %c0_i32, %c0_i32_0 : i32, i32
  }
  func.func @transform_23(%arg0: i32, %arg1: i32) -> (i32, i32, i32) {
    %c0_i32 = arith.constant 0 : i32
    %c0_i32_0 = arith.constant 0 : i32
    return %arg0, %arg1, %c0_i32 : i32, i32, i32
  }
  func.func @transform_24(%arg0: i32, %arg1: i32) -> (i32, i32, i32, i32) {
    %c0_i32 = arith.constant 0 : i32
    %c0_i32_0 = arith.constant 0 : i32
    %c0_i32_1 = arith.constant 0 : i32
    return %arg0, %c0_i32, %arg1, %c0_i32_0 : i32, i32, i32, i32
  }
  func.func @transform_25(%arg0: i32, %arg1: i32) -> (i32, i32, i32, i32) {
    %c0_i32 = arith.constant 0 : i32
    %c0_i32_0 = arith.constant 0 : i32
    %c0_i32_1 = arith.constant 0 : i32
    return %arg0, %c0_i32, %arg1, %c0_i32_0 : i32, i32, i32, i32
  }
}

</mosaic_0001>

<llo_original>
// kernel: tpu_custom_call.1
$region0: #{tpu_custom_call.1}
  #allocation0 [shape = 'u32[]', space=smem, size = 0x4, offset = 0x4, fixed_abs, tag = 'smem constant byte address 0x4 - core index']
  #allocation1 [shape = 'u32[72,128]{1,0:T(1,128)}', space=vmem, size = 0x9000, scoped, tag = 'internal scratch']
  %s0 = inlined_call_operand.hbm [shape: bf16[2,8,32], index: 0, kind: input, shape index: {}]
  %s1 = inlined_call_operand.hbm [shape: bf16[2,8,32], index: 1, kind: input, shape index: {}]
  %s2 = inlined_call_operand.vmem [shape: bf16[2,12,32], index: 2, kind: input, shape index: {}]
  %s3 = inlined_call_operand.vmem [shape: f32[2,8,8], index: 3, kind: input, shape index: {}]
  %s4 = inlined_call_operand.hbm [shape: f32[2,1,12], index: 4, kind: input, shape index: {}]
  %s5 = inlined_call_operand.vmem [shape: bf16[32,32], index: 5, kind: input, shape index: {}]
  %s6 = inlined_call_operand.vmem [shape: bf16[32,32], index: 6, kind: input, shape index: {}]
  %s7 = inlined_call_operand.vmem [shape: bf16[32,32], index: 7, kind: input, shape index: {}]
  %s8 = inlined_call_operand.vmem [shape: bf16[32,32], index: 8, kind: input, shape index: {}]
  %s9 = inlined_call_operand.vmem [shape: f32[1,32], index: 9, kind: input, shape index: {}]
  %s10 = inlined_call_operand.vmem [shape: f32[1,32], index: 10, kind: input, shape index: {}]
  %s11 = inlined_call_operand.hbm [shape: bf16[32,32], index: 11, kind: input, shape index: {}]
  %s12 = inlined_call_operand.hbm [shape: bf16[32,32], index: 12, kind: input, shape index: {}]
  %s13 = inlined_call_operand.hbm [shape: bf16[32,32], index: 13, kind: input, shape index: {}]
  %s14 = inlined_call_operand.hbm [shape: bf16[32,32], index: 14, kind: input, shape index: {}]
  %s15 = inlined_call_operand.vmem [shape: f32[1,32], index: 15, kind: input, shape index: {}]
  %s16 = inlined_call_operand.vmem [shape: f32[1,32], index: 16, kind: input, shape index: {}]
  %s17 = inlined_call_operand.hbm [shape: bf16[32,64], index: 17, kind: input, shape index: {}]
  %s18 = inlined_call_operand.vmem [shape: f32[1,64], index: 18, kind: input, shape index: {}]
  %s19 = inlined_call_operand.vmem [shape: bf16[64,32], index: 19, kind: input, shape index: {}]
  %s20 = inlined_call_operand.vmem [shape: f32[1,32], index: 20, kind: input, shape index: {}]
  %s21 = inlined_call_operand.vmem [shape: f32[1,32], index: 21, kind: input, shape index: {}]
  %s22 = inlined_call_operand.vmem [shape: f32[1,32], index: 22, kind: input, shape index: {}]
  %s23 = inlined_call_operand.hbm [shape: f32[2,8,32], index: 23, kind: output, shape index: {0}]
  %s24 = inlined_call_operand.hbm [shape: bf16[2,4,8,8], index: 24, kind: output, shape index: {1}]
  %s25 = inlined_call_operand.hbm [shape: bf16[2,4,8,12], index: 25, kind: output, shape index: {2}]
  %26 = xla_tuple %s23, %s24, %s25
  %s27 = sld [smem:[#allocation0]]
  $region173: #{tpu_custom_call.1} parent=0
    _
  %s29 = ssub.s32 1, %s27
  %s30 = scalar_select 0, %s29, %s27
  $region1: #{tpu_custom_call.1} parent=0
    #allocation2 [shape = 'u8[4096]{0}', space=vmem, size = 0x1000, scoped, tag = 'input window, operand 0']
    #allocation3 [shape = 's32[2]{0}', space=sflag, size = 0x8, scoped, tag = 'scoped memory for tpu_custom_call.1']
    #allocation4 [shape = 's32[2]{0}', space=sflag, size = 0x8, scoped, tag = 'scoped memory for tpu_custom_call.1']
    #allocation5 [shape = 'u8[4096]{0}', space=vmem, size = 0x1000, scoped, tag = 'input window, operand 1']
    #allocation6 [shape = 's32[2]{0}', space=sflag, size = 0x8, scoped, tag = 'scoped memory for tpu_custom_call.1']
    #allocation7 [shape = 'u8[1024]{0}', space=vmem, size = 0x400, scoped, tag = 'input window, operand 4']
    #allocation8 [shape = 'u8[8192]{0}', space=vmem, size = 0x2000, scoped, tag = 'input window, operand 11, single buffered']
    #allocation9 [shape = 's32[1]{0}', space=sflag, size = 0x4, scoped, tag = 'scoped memory for tpu_custom_call.1']
    #allocation10 [shape = 'u8[8192]{0}', space=vmem, size = 0x2000, scoped, tag = 'input window, operand 12, single buffered']
    #allocation11 [shape = 'u8[8192]{0}', space=vmem, size = 0x2000, scoped, tag = 'input window, operand 13, single buffered']
    #allocation12 [shape = 's32[1]{0}', space=sflag, size = 0x4, scoped, tag = 'scoped memory for tpu_custom_call.1']
    #allocation13 [shape = 'u8[8192]{0}', space=vmem, size = 0x2000, scoped, tag = 'input window, operand 14, single buffered']
    #allocation14 [shape = 'u8[8192]{0}', space=vmem, size = 0x2000, scoped, tag = 'input window, operand 17, single buffered']
    #allocation15 [shape = 's32[1]{0}', space=sflag, size = 0x4, scoped, tag = 'scoped memory for tpu_custom_call.1']
    #allocation16 [shape = 'u8[8192]{0}', space=vmem, size = 0x2000, scoped, tag = 'output window, operand 0']
    #allocation17 [shape = 'u8[16384]{0}', space=vmem, size = 0x4000, scoped, tag = 'output window, operand 1']
    #allocation18 [shape = 's32[2]{0}', space=sflag, size = 0x8, scoped, tag = 'scoped memory for tpu_custom_call.1']
    #allocation19 [shape = 'u8[16384]{0}', space=vmem, size = 0x4000, scoped, tag = 'output window, operand 2']
    %31 = vsyncpa [#allocation3], 0
    %s32 = scalar_lea.sflag [#allocation3], 1
    %33 = vsyncpa %s32, 0
    %34 = vsyncpa [#allocation6], 0
    %s35 = scalar_lea.sflag [#allocation6], 1
    %36 = vsyncpa %s35, 0
    %37 = vsyncpa [#allocation9], 0
    %38 = vsyncpa [#allocation12], 0
    %39 = vsyncpa [#allocation15], 0
    %40 = vsyncpa [#allocation4], 0
    %s41 = scalar_lea.sflag [#allocation4], 1
    %42 = vsyncpa %s41, 0
    %43 = vsyncpa [#allocation18], 0
    %s44 = scalar_lea.sflag [#allocation18], 1
    %45 = vsyncpa %s44, 0
    loop: start=0, step=1, limit=4
    $region2: #{tpu_custom_call.1} parent=1 // loop_pre_header
      _
    $region3: #{tpu_custom_call.1} parent=1 // loop_header
      %s47 = sphi 0, %s51
      %p48 = scmp.ge.s32.totalorder %s47, 4
      %s54 = sphi 0, %s66
      %s55 = sphi 0, %s62
      %s56 = sphi 0, %s54
      %s57 = sphi 0, %s55
      %s58 = sphi 0, %s56
      %s59 = sphi 0, %s57
      %s71 = sphi 0, %s73
      %s74 = sphi 0, %s71
      %s75 = sphi 0, %s74
      %s91 = sphi 0, %s75
      %s97 = sphi 0, %s99
      %s100 = sphi 0, %s97
      %s101 = sphi 0, %s100
      %s117 = sphi 0, %s101
      %s123 = sphi 0, %s125
      %s126 = sphi 0, %s123
      %s127 = sphi 0, %s126
      %s143 = sphi 0, %s127
      %s151 = sphi 0, %s153
      %s154 = sphi 0, %s151
      %s155 = sphi 0, %s154
      %s171 = sphi 0, %s155
      %s177 = sphi 0, %s179
      %s180 = sphi 0, %s177
      %s181 = sphi 0, %s180
      %s197 = sphi 0, %s181
      %s201 = sphi 0, %s201
      %s203 = sphi 0, %s201
      %s204 = sphi 0, %s203
      %s218 = sphi 0, %s204
      %s222 = sphi 0, %s222
      %s224 = sphi 0, %s222
      %s225 = sphi 0, %s224
      %s239 = sphi 0, %s225
      %s243 = sphi 0, %s243
      %s245 = sphi 0, %s243
      %s246 = sphi 0, %s245
      %s260 = sphi 0, %s246
      %s264 = sphi 0, %s264
      %s266 = sphi 0, %s264
      %s267 = sphi 0, %s266
      %s281 = sphi 0, %s267
      %s285 = sphi 0, %s285
      %s287 = sphi 0, %s285
      %s288 = sphi 0, %s287
      %s302 = sphi 0, %s288
      %s306 = sphi 0, %s306
      %s308 = sphi 0, %s306
      %s309 = sphi 0, %s308
      %s323 = sphi 0, %s309
      %s327 = sphi 0, %s327
      %s329 = sphi 0, %s327
      %s330 = sphi 0, %s329
      %s344 = sphi 0, %s330
      %s348 = sphi 0, %s348
      %s350 = sphi 0, %s348
      %s351 = sphi 0, %s350
      %s365 = sphi 0, %s351
      %s369 = sphi 0, %s369
      %s371 = sphi 0, %s369
      %s372 = sphi 0, %s371
      %s386 = sphi 0, %s372
      %s390 = sphi 0, %s390
      %s392 = sphi 0, %s390
      %s393 = sphi 0, %s392
      %s407 = sphi 0, %s393
      %s411 = sphi 0, %s411
      %s413 = sphi 0, %s411
      %s414 = sphi 0, %s413
      %s428 = sphi 0, %s414
      %s432 = sphi 0, %s432
      %s434 = sphi 0, %s432
      %s435 = sphi 0, %s434
      %s449 = sphi 0, %s435
      %s453 = sphi 0, %s453
      %s455 = sphi 0, %s453
      %s456 = sphi 0, %s455
      %s470 = sphi 0, %s456
      %s474 = sphi 0, %s474
      %s476 = sphi 0, %s474
      %s477 = sphi 0, %s476
      %s491 = sphi 0, %s477
      %s495 = sphi 0, %s495
      %s497 = sphi 0, %s495
      %s498 = sphi 0, %s497
      %s512 = sphi 0, %s498
      %s516 = sphi 0, %s516
      %s518 = sphi 0, %s516
      %s519 = sphi 0, %s518
      %s533 = sphi 0, %s519
      %s537 = sphi 0, %s537
      %s539 = sphi 0, %s537
      %s540 = sphi 0, %s539
      %s554 = sphi 0, %s540
      %s558 = sphi 0, %s558
      %s560 = sphi 0, %s558
      %s561 = sphi 0, %s560
      %s575 = sphi 0, %s561
      %s583 = sphi 0, %s585
      %s586 = sphi 0, %s583
      %s587 = sphi 0, %s586
      %s603 = sphi 0, %s587
      %s611 = sphi 0, %s613
      %s614 = sphi 0, %s611
      %s615 = sphi 0, %s614
      %s631 = sphi 0, %s615
      %s639 = sphi 0, %s641
      %s642 = sphi 0, %s639
      %s643 = sphi 0, %s642
      %s659 = sphi 0, %s643
    $region4: #{tpu_custom_call.1} parent=1 // loop_header_branch
      %50 = sbr.rel (%p48) target = $region8
    $region5: #{tpu_custom_call.1} parent=1 // loop_body
      %s52 = ssub.s32 %s47, 1
      %s53 = ssub.s32 %s47, 2
      %s60 = sadd.s32 1, %s55
      %p61 = scmp.ge.s32.totalorder %s60, 1
      %s62 = scalar_select %p61, 0, %s60
      %s63 = sadd.s32 1, %s54
      %s64 = scalar_select %p61, %s63, %s54
      %p65 = scmp.ge.s32.totalorder %s64, 2
      %s66 = scalar_select %p65, 0, %s64
      %s67 = ssub.s32 %s54, %s66
      %s68 = ssub.s32 %s55, %s62
      %s69 = sor.u32 %s67, %s68
      %p70 = scmp.eq.s32.totalorder %s69, 0
      %s72 = sadd.s32 %s71, 1
      %s73 = scalar_select %p70, %s71, %s72
      %p76 = pneg %p70
      %p77 = scmp.eq.s32.totalorder %s47, 1
      %p78 = por %p76, %p77
      %p79 = scmp.ne.s32.totalorder %s71, %s74
      %p80 = scmp.eq.s32.totalorder %s47, 0
      %p81 = por %p79, %p80
      %p82 = scmp.ne.s32.totalorder %s71, %s74
      %p83 = scmp.eq.s32.totalorder %s52, 1
      %p84 = por %p82, %p83
      %p85 = scmp.ne.s32.totalorder %s74, %s75
      %p86 = scmp.eq.s32.totalorder %s52, 0
      %p87 = por %p85, %p86
      %p88 = scmp.ne.s32.totalorder %s74, %s75
      %p89 = scmp.eq.s32.totalorder %s53, 1
      %p90 = por %p88, %p89
      %p92 = scmp.ne.s32.totalorder %s75, %s91
      %p93 = scmp.eq.s32.totalorder %s53, 0
      %p94 = por %p92, %p93
      %s95 = ssub.s32 %s54, %s66
      %p96 = scmp.eq.s32.totalorder %s95, 0
      %s98 = sadd.s32 %s97, 1
      %s99 = scalar_select %p96, %s97, %s98
      %p102 = pneg %p96
      %p103 = scmp.eq.s32.totalorder %s47, 1
      %p104 = por %p102, %p103
      %p105 = scmp.ne.s32.totalorder %s97, %s100
      %p106 = scmp.eq.s32.totalorder %s47, 0
      %p107 = por %p105, %p106
      %p108 = scmp.ne.s32.totalorder %s97, %s100
      %p109 = scmp.eq.s32.totalorder %s52, 1
      %p110 = por %p108, %p109
      %p111 = scmp.ne.s32.totalorder %s100, %s101
      %p112 = scmp.eq.s32.totalorder %s52, 0
      %p113 = por %p111, %p112
      %p114 = scmp.ne.s32.totalorder %s100, %s101
      %p115 = scmp.eq.s32.totalorder %s53, 1
      %p116 = por %p114, %p115
      %p118 = scmp.ne.s32.totalorder %s101, %s117
      %p119 = scmp.eq.s32.totalorder %s53, 0
      %p120 = por %p118, %p119
      %s121 = ssub.s32 %s54, %s66
      %p122 = scmp.eq.s32.totalorder %s121, 0
      %s124 = sadd.s32 %s123, 1
      %s125 = scalar_select %p122, %s123, %s124
      %p128 = pneg %p122
      %p129 = scmp.eq.s32.totalorder %s47, 1
      %p130 = por %p128, %p129
      %p131 = scmp.ne.s32.totalorder %s123, %s126
      %p132 = scmp.eq.s32.totalorder %s47, 0
      %p133 = por %p131, %p132
      %p134 = scmp.ne.s32.totalorder %s123, %s126
      %p135 = scmp.eq.s32.totalorder %s52, 1
      %p136 = por %p134, %p135
      %p137 = scmp.ne.s32.totalorder %s126, %s127
      %p138 = scmp.eq.s32.totalorder %s52, 0
      %p139 = por %p137, %p138
      %p140 = scmp.ne.s32.totalorder %s126, %s127
      %p141 = scmp.eq.s32.totalorder %s53, 1
      %p142 = por %p140, %p141
      %p144 = scmp.ne.s32.totalorder %s127, %s143
      %p145 = scmp.eq.s32.totalorder %s53, 0
      %p146 = por %p144, %p145
      %s147 = ssub.s32 %s54, %s66
      %s148 = ssub.s32 %s55, %s62
      %s149 = sor.u32 %s147, %s148
      %p150 = scmp.eq.s32.totalorder %s149, 0
      %s152 = sadd.s32 %s151, 1
      %s153 = scalar_select %p150, %s151, %s152
      %p156 = pneg %p150
      %p157 = scmp.eq.s32.totalorder %s47, 1
      %p158 = por %p156, %p157
      %p159 = scmp.ne.s32.totalorder %s151, %s154
      %p160 = scmp.eq.s32.totalorder %s47, 0
      %p161 = por %p159, %p160
      %p162 = scmp.ne.s32.totalorder %s151, %s154
      %p163 = scmp.eq.s32.totalorder %s52, 1
      %p164 = por %p162, %p163
      %p165 = scmp.ne.s32.totalorder %s154, %s155
      %p166 = scmp.eq.s32.totalorder %s52, 0
      %p167 = por %p165, %p166
      %p168 = scmp.ne.s32.totalorder %s154, %s155
      %p169 = scmp.eq.s32.totalorder %s53, 1
      %p170 = por %p168, %p169
      %p172 = scmp.ne.s32.totalorder %s155, %s171
      %p173 = scmp.eq.s32.totalorder %s53, 0
      %p174 = por %p172, %p173
      %s175 = ssub.s32 %s54, %s66
      %p176 = scmp.eq.s32.totalorder %s175, 0
      %s178 = sadd.s32 %s177, 1
      %s179 = scalar_select %p176, %s177, %s178
      %p182 = pneg %p176
      %p183 = scmp.eq.s32.totalorder %s47, 1
      %p184 = por %p182, %p183
      %p185 = scmp.ne.s32.totalorder %s177, %s180
      %p186 = scmp.eq.s32.totalorder %s47, 0
      %p187 = por %p185, %p186
      %p188 = scmp.ne.s32.totalorder %s177, %s180
      %p189 = scmp.eq.s32.totalorder %s52, 1
      %p190 = por %p188, %p189
      %p191 = scmp.ne.s32.totalorder %s180, %s181
      %p192 = scmp.eq.s32.totalorder %s52, 0
      %p193 = por %p191, %p192
      %p194 = scmp.ne.s32.totalorder %s180, %s181
      %p195 = scmp.eq.s32.totalorder %s53, 1
      %p196 = por %p194, %p195
      %p198 = scmp.ne.s32.totalorder %s181, %s197
      %p199 = scmp.eq.s32.totalorder %s53, 0
      %p200 = por %p198, %p199
      %s202 = sadd.s32 %s201, 1
      %p205 = scmp.eq.s32.totalorder %s47, 1
      %p206 = scmp.ne.s32.totalorder %s201, %s203
      %p207 = scmp.eq.s32.totalorder %s47, 0
      %p208 = por %p206, %p207
      %p209 = scmp.ne.s32.totalorder %s201, %s203
      %p210 = scmp.eq.s32.totalorder %s52, 1
      %p211 = por %p209, %p210
      %p212 = scmp.ne.s32.totalorder %s203, %s204
      %p213 = scmp.eq.s32.totalorder %s52, 0
      %p214 = por %p212, %p213
      %p215 = scmp.ne.s32.totalorder %s203, %s204
      %p216 = scmp.eq.s32.totalorder %s53, 1
      %p217 = por %p215, %p216
      %p219 = scmp.ne.s32.totalorder %s204, %s218
      %p220 = scmp.eq.s32.totalorder %s53, 0
      %p221 = por %p219, %p220
      %s223 = sadd.s32 %s222, 1
      %p226 = scmp.eq.s32.totalorder %s47, 1
      %p227 = scmp.ne.s32.totalorder %s222, %s224
      %p228 = scmp.eq.s32.totalorder %s47, 0
      %p229 = por %p227, %p228
      %p230 = scmp.ne.s32.totalorder %s222, %s224
      %p231 = scmp.eq.s32.totalorder %s52, 1
      %p232 = por %p230, %p231
      %p233 = scmp.ne.s32.totalorder %s224, %s225
      %p234 = scmp.eq.s32.totalorder %s52, 0
      %p235 = por %p233, %p234
      %p236 = scmp.ne.s32.totalorder %s224, %s225
      %p237 = scmp.eq.s32.totalorder %s53, 1
      %p238 = por %p236, %p237
      %p240 = scmp.ne.s32.totalorder %s225, %s239
      %p241 = scmp.eq.s32.totalorder %s53, 0
      %p242 = por %p240, %p241
      %s244 = sadd.s32 %s243, 1
      %p247 = scmp.eq.s32.totalorder %s47, 1
      %p248 = scmp.ne.s32.totalorder %s243, %s245
      %p249 = scmp.eq.s32.totalorder %s47, 0
      %p250 = por %p248, %p249
      %p251 = scmp.ne.s32.totalorder %s243, %s245
      %p252 = scmp.eq.s32.totalorder %s52, 1
      %p253 = por %p251, %p252
      %p254 = scmp.ne.s32.totalorder %s245, %s246
      %p255 = scmp.eq.s32.totalorder %s52, 0
      %p256 = por %p254, %p255
      %p257 = scmp.ne.s32.totalorder %s245, %s246
      %p258 = scmp.eq.s32.totalorder %s53, 1
      %p259 = por %p257, %p258
      %p261 = scmp.ne.s32.totalorder %s246, %s260
      %p262 = scmp.eq.s32.totalorder %s53, 0
      %p263 = por %p261, %p262
      %s265 = sadd.s32 %s264, 1
      %p268 = scmp.eq.s32.totalorder %s47, 1
      %p269 = scmp.ne.s32.totalorder %s264, %s266
      %p270 = scmp.eq.s32.totalorder %s47, 0
      %p271 = por %p269, %p270
      %p272 = scmp.ne.s32.totalorder %s264, %s266
      %p273 = scmp.eq.s32.totalorder %s52, 1
      %p274 = por %p272, %p273
      %p275 = scmp.ne.s32.totalorder %s266, %s267
      %p276 = scmp.eq.s32.totalorder %s52, 0
      %p277 = por %p275, %p276
      %p278 = scmp.ne.s32.totalorder %s266, %s267
      %p279 = scmp.eq.s32.totalorder %s53, 1
      %p280 = por %p278, %p279
      %p282 = scmp.ne.s32.totalorder %s267, %s281
      %p283 = scmp.eq.s32.totalorder %s53, 0
      %p284 = por %p282, %p283
      %s286 = sadd.s32 %s285, 1
      %p289 = scmp.eq.s32.totalorder %s47, 1
      %p290 = scmp.ne.s32.totalorder %s285, %s287
      %p291 = scmp.eq.s32.totalorder %s47, 0
      %p292 = por %p290, %p291
      %p293 = scmp.ne.s32.totalorder %s285, %s287
      %p294 = scmp.eq.s32.totalorder %s52, 1
      %p295 = por %p293, %p294
      %p296 = scmp.ne.s32.totalorder %s287, %s288
      %p297 = scmp.eq.s32.totalorder %s52, 0
      %p298 = por %p296, %p297
      %p299 = scmp.ne.s32.totalorder %s287, %s288
      %p300 = scmp.eq.s32.totalorder %s53, 1
      %p301 = por %p299, %p300
      %p303 = scmp.ne.s32.totalorder %s288, %s302
      %p304 = scmp.eq.s32.totalorder %s53, 0
      %p305 = por %p303, %p304
      %s307 = sadd.s32 %s306, 1
      %p310 = scmp.eq.s32.totalorder %s47, 1
      %p311 = scmp.ne.s32.totalorder %s306, %s308
      %p312 = scmp.eq.s32.totalorder %s47, 0
      %p313 = por %p311, %p312
      %p314 = scmp.ne.s32.totalorder %s306, %s308
      %p315 = scmp.eq.s32.totalorder %s52, 1
      %p316 = por %p314, %p315
      %p317 = scmp.ne.s32.totalorder %s308, %s309
      %p318 = scmp.eq.s32.totalorder %s52, 0
      %p319 = por %p317, %p318
      %p320 = scmp.ne.s32.totalorder %s308, %s309
      %p321 = scmp.eq.s32.totalorder %s53, 1
      %p322 = por %p320, %p321
      %p324 = scmp.ne.s32.totalorder %s309, %s323
      %p325 = scmp.eq.s32.totalorder %s53, 0
      %p326 = por %p324, %p325
      %s328 = sadd.s32 %s327, 1
      %p331 = scmp.eq.s32.totalorder %s47, 1
      %p332 = scmp.ne.s32.totalorder %s327, %s329
      %p333 = scmp.eq.s32.totalorder %s47, 0
      %p334 = por %p332, %p333
      %p335 = scmp.ne.s32.totalorder %s327, %s329
      %p336 = scmp.eq.s32.totalorder %s52, 1
      %p337 = por %p335, %p336
      %p338 = scmp.ne.s32.totalorder %s329, %s330
      %p339 = scmp.eq.s32.totalorder %s52, 0
      %p340 = por %p338, %p339
      %p341 = scmp.ne.s32.totalorder %s329, %s330
      %p342 = scmp.eq.s32.totalorder %s53, 1
      %p343 = por %p341, %p342
      %p345 = scmp.ne.s32.totalorder %s330, %s344
      %p346 = scmp.eq.s32.totalorder %s53, 0
      %p347 = por %p345, %p346
      %s349 = sadd.s32 %s348, 1
      %p352 = scmp.eq.s32.totalorder %s47, 1
      %p353 = scmp.ne.s32.totalorder %s348, %s350
      %p354 = scmp.eq.s32.totalorder %s47, 0
      %p355 = por %p353, %p354
      %p356 = scmp.ne.s32.totalorder %s348, %s350
      %p357 = scmp.eq.s32.totalorder %s52, 1
      %p358 = por %p356, %p357
      %p359 = scmp.ne.s32.totalorder %s350, %s351
      %p360 = scmp.eq.s32.totalorder %s52, 0
      %p361 = por %p359, %p360
      %p362 = scmp.ne.s32.totalorder %s350, %s351
      %p363 = scmp.eq.s32.totalorder %s53, 1
      %p364 = por %p362, %p363
      %p366 = scmp.ne.s32.totalorder %s351, %s365
      %p367 = scmp.eq.s32.totalorder %s53, 0
      %p368 = por %p366, %p367
      %s370 = sadd.s32 %s369, 1
      %p373 = scmp.eq.s32.totalorder %s47, 1
      %p374 = scmp.ne.s32.totalorder %s369, %s371
      %p375 = scmp.eq.s32.totalorder %s47, 0
      %p376 = por %p374, %p375
      %p377 = scmp.ne.s32.totalorder %s369, %s371
      %p378 = scmp.eq.s32.totalorder %s52, 1
      %p379 = por %p377, %p378
      %p380 = scmp.ne.s32.totalorder %s371, %s372
      %p381 = scmp.eq.s32.totalorder %s52, 0
      %p382 = por %p380, %p381
      %p383 = scmp.ne.s32.totalorder %s371, %s372
      %p384 = scmp.eq.s32.totalorder %s53, 1
      %p385 = por %p383, %p384
      %p387 = scmp.ne.s32.totalorder %s372, %s386
      %p388 = scmp.eq.s32.totalorder %s53, 0
      %p389 = por %p387, %p388
      %s391 = sadd.s32 %s390, 1
      %p394 = scmp.eq.s32.totalorder %s47, 1
      %p395 = scmp.ne.s32.totalorder %s390, %s392
      %p396 = scmp.eq.s32.totalorder %s47, 0
      %p397 = por %p395, %p396
      %p398 = scmp.ne.s32.totalorder %s390, %s392
      %p399 = scmp.eq.s32.totalorder %s52, 1
      %p400 = por %p398, %p399
      %p401 = scmp.ne.s32.totalorder %s392, %s393
      %p402 = scmp.eq.s32.totalorder %s52, 0
      %p403 = por %p401, %p402
      %p404 = scmp.ne.s32.totalorder %s392, %s393
      %p405 = scmp.eq.s32.totalorder %s53, 1
      %p406 = por %p404, %p405
      %p408 = scmp.ne.s32.totalorder %s393, %s407
      %p409 = scmp.eq.s32.totalorder %s53, 0
      %p410 = por %p408, %p409
      %s412 = sadd.s32 %s411, 1
      %p415 = scmp.eq.s32.totalorder %s47, 1
      %p416 = scmp.ne.s32.totalorder %s411, %s413
      %p417 = scmp.eq.s32.totalorder %s47, 0
      %p418 = por %p416, %p417
      %p419 = scmp.ne.s32.totalorder %s411, %s413
      %p420 = scmp.eq.s32.totalorder %s52, 1
      %p421 = por %p419, %p420
      %p422 = scmp.ne.s32.totalorder %s413, %s414
      %p423 = scmp.eq.s32.totalorder %s52, 0
      %p424 = por %p422, %p423
      %p425 = scmp.ne.s32.totalorder %s413, %s414
      %p426 = scmp.eq.s32.totalorder %s53, 1
      %p427 = por %p425, %p426
      %p429 = scmp.ne.s32.totalorder %s414, %s428
      %p430 = scmp.eq.s32.totalorder %s53, 0
      %p431 = por %p429, %p430
      %s433 = sadd.s32 %s432, 1
      %p436 = scmp.eq.s32.totalorder %s47, 1
      %p437 = scmp.ne.s32.totalorder %s432, %s434
      %p438 = scmp.eq.s32.totalorder %s47, 0
      %p439 = por %p437, %p438
      %p440 = scmp.ne.s32.totalorder %s432, %s434
      %p441 = scmp.eq.s32.totalorder %s52, 1
      %p442 = por %p440, %p441
      %p443 = scmp.ne.s32.totalorder %s434, %s435
      %p444 = scmp.eq.s32.totalorder %s52, 0
      %p445 = por %p443, %p444
      %p446 = scmp.ne.s32.totalorder %s434, %s435
      %p447 = scmp.eq.s32.totalorder %s53, 1
      %p448 = por %p446, %p447
      %p450 = scmp.ne.s32.totalorder %s435, %s449
      %p451 = scmp.eq.s32.totalorder %s53, 0
      %p452 = por %p450, %p451
      %s454 = sadd.s32 %s453, 1
      %p457 = scmp.eq.s32.totalorder %s47, 1
      %p458 = scmp.ne.s32.totalorder %s453, %s455
      %p459 = scmp.eq.s32.totalorder %s47, 0
      %p460 = por %p458, %p459
      %p461 = scmp.ne.s32.totalorder %s453, %s455
      %p462 = scmp.eq.s32.totalorder %s52, 1
      %p463 = por %p461, %p462
      %p464 = scmp.ne.s32.totalorder %s455, %s456
      %p465 = scmp.eq.s32.totalorder %s52, 0
      %p466 = por %p464, %p465
      %p467 = scmp.ne.s32.totalorder %s455, %s456
      %p468 = scmp.eq.s32.totalorder %s53, 1
      %p469 = por %p467, %p468
      %p471 = scmp.ne.s32.totalorder %s456, %s470
      %p472 = scmp.eq.s32.totalorder %s53, 0
      %p473 = por %p471, %p472
      %s475 = sadd.s32 %s474, 1
      %p478 = scmp.eq.s32.totalorder %s47, 1
      %p479 = scmp.ne.s32.totalorder %s474, %s476
      %p480 = scmp.eq.s32.totalorder %s47, 0
      %p481 = por %p479, %p480
      %p482 = scmp.ne.s32.totalorder %s474, %s476
      %p483 = scmp.eq.s32.totalorder %s52, 1
      %p484 = por %p482, %p483
      %p485 = scmp.ne.s32.totalorder %s476, %s477
      %p486 = scmp.eq.s32.totalorder %s52, 0
      %p487 = por %p485, %p486
      %p488 = scmp.ne.s32.totalorder %s476, %s477
      %p489 = scmp.eq.s32.totalorder %s53, 1
      %p490 = por %p488, %p489
      %p492 = scmp.ne.s32.totalorder %s477, %s491
      %p493 = scmp.eq.s32.totalorder %s53, 0
      %p494 = por %p492, %p493
      %s496 = sadd.s32 %s495, 1
      %p499 = scmp.eq.s32.totalorder %s47, 1
      %p500 = scmp.ne.s32.totalorder %s495, %s497
      %p501 = scmp.eq.s32.totalorder %s47, 0
      %p502 = por %p500, %p501
      %p503 = scmp.ne.s32.totalorder %s495, %s497
      %p504 = scmp.eq.s32.totalorder %s52, 1
      %p505 = por %p503, %p504
      %p506 = scmp.ne.s32.totalorder %s497, %s498
      %p507 = scmp.eq.s32.totalorder %s52, 0
      %p508 = por %p506, %p507
      %p509 = scmp.ne.s32.totalorder %s497, %s498
      %p510 = scmp.eq.s32.totalorder %s53, 1
      %p511 = por %p509, %p510
      %p513 = scmp.ne.s32.totalorder %s498, %s512
      %p514 = scmp.eq.s32.totalorder %s53, 0
      %p515 = por %p513, %p514
      %s517 = sadd.s32 %s516, 1
      %p520 = scmp.eq.s32.totalorder %s47, 1
      %p521 = scmp.ne.s32.totalorder %s516, %s518
      %p522 = scmp.eq.s32.totalorder %s47, 0
      %p523 = por %p521, %p522
      %p524 = scmp.ne.s32.totalorder %s516, %s518
      %p525 = scmp.eq.s32.totalorder %s52, 1
      %p526 = por %p524, %p525
      %p527 = scmp.ne.s32.totalorder %s518, %s519
      %p528 = scmp.eq.s32.totalorder %s52, 0
      %p529 = por %p527, %p528
      %p530 = scmp.ne.s32.totalorder %s518, %s519
      %p531 = scmp.eq.s32.totalorder %s53, 1
      %p532 = por %p530, %p531
      %p534 = scmp.ne.s32.totalorder %s519, %s533
      %p535 = scmp.eq.s32.totalorder %s53, 0
      %p536 = por %p534, %p535
      %s538 = sadd.s32 %s537, 1
      %p541 = scmp.eq.s32.totalorder %s47, 1
      %p542 = scmp.ne.s32.totalorder %s537, %s539
      %p543 = scmp.eq.s32.totalorder %s47, 0
      %p544 = por %p542, %p543
      %p545 = scmp.ne.s32.totalorder %s537, %s539
      %p546 = scmp.eq.s32.totalorder %s52, 1
      %p547 = por %p545, %p546
      %p548 = scmp.ne.s32.totalorder %s539, %s540
      %p549 = scmp.eq.s32.totalorder %s52, 0
      %p550 = por %p548, %p549
      %p551 = scmp.ne.s32.totalorder %s539, %s540
      %p552 = scmp.eq.s32.totalorder %s53, 1
      %p553 = por %p551, %p552
      %p555 = scmp.ne.s32.totalorder %s540, %s554
      %p556 = scmp.eq.s32.totalorder %s53, 0
      %p557 = por %p555, %p556
      %s559 = sadd.s32 %s558, 1
      %p562 = scmp.eq.s32.totalorder %s47, 1
      %p563 = scmp.ne.s32.totalorder %s558, %s560
      %p564 = scmp.eq.s32.totalorder %s47, 0
      %p565 = por %p563, %p564
      %p566 = scmp.ne.s32.totalorder %s558, %s560
      %p567 = scmp.eq.s32.totalorder %s52, 1
      %p568 = por %p566, %p567
      %p569 = scmp.ne.s32.totalorder %s560, %s561
      %p570 = scmp.eq.s32.totalorder %s52, 0
      %p571 = por %p569, %p570
      %p572 = scmp.ne.s32.totalorder %s560, %s561
      %p573 = scmp.eq.s32.totalorder %s53, 1
      %p574 = por %p572, %p573
      %p576 = scmp.ne.s32.totalorder %s561, %s575
      %p577 = scmp.eq.s32.totalorder %s53, 0
      %p578 = por %p576, %p577
      %s579 = ssub.s32 %s54, %s66
      %s580 = ssub.s32 %s55, %s62
      %s581 = sor.u32 %s579, %s580
      %p582 = scmp.eq.s32.totalorder %s581, 0
      %s584 = sadd.s32 %s583, 1
      %s585 = scalar_select %p582, %s583, %s584
      %p588 = pneg %p582
      %p589 = scmp.eq.s32.totalorder %s47, 1
      %p590 = por %p588, %p589
      %p591 = scmp.ne.s32.totalorder %s583, %s586
      %p592 = scmp.eq.s32.totalorder %s47, 0
      %p593 = por %p591, %p592
      %p594 = scmp.ne.s32.totalorder %s583, %s586
      %p595 = scmp.eq.s32.totalorder %s52, 1
      %p596 = por %p594, %p595
      %p597 = scmp.ne.s32.totalorder %s586, %s587
      %p598 = scmp.eq.s32.totalorder %s52, 0
      %p599 = por %p597, %p598
      %p600 = scmp.ne.s32.totalorder %s586, %s587
      %p601 = scmp.eq.s32.totalorder %s53, 1
      %p602 = por %p600, %p601
      %p604 = scmp.ne.s32.totalorder %s587, %s603
      %p605 = scmp.eq.s32.totalorder %s53, 0
      %p606 = por %p604, %p605
      %s607 = ssub.s32 %s54, %s66
      %s608 = ssub.s32 %s55, %s62
      %s609 = sor.u32 %s607, %s608
      %p610 = scmp.eq.s32.totalorder %s609, 0
      %s612 = sadd.s32 %s611, 1
      %s613 = scalar_select %p610, %s611, %s612
      %p616 = pneg %p610
      %p617 = scmp.eq.s32.totalorder %s47, 1
      %p618 = por %p616, %p617
      %p619 = scmp.ne.s32.totalorder %s611, %s614
      %p620 = scmp.eq.s32.totalorder %s47, 0
      %p621 = por %p619, %p620
      %p622 = scmp.ne.s32.totalorder %s611, %s614
      %p623 = scmp.eq.s32.totalorder %s52, 1
      %p624 = por %p622, %p623
      %p625 = scmp.ne.s32.totalorder %s614, %s615
      %p626 = scmp.eq.s32.totalorder %s52, 0
      %p627 = por %p625, %p626
      %p628 = scmp.ne.s32.totalorder %s614, %s615
      %p629 = scmp.eq.s32.totalorder %s53, 1
      %p630 = por %p628, %p629
      %p632 = scmp.ne.s32.totalorder %s615, %s631
      %p633 = scmp.eq.s32.totalorder %s53, 0
      %p634 = por %p632, %p633
      %s635 = ssub.s32 %s54, %s66
      %s636 = ssub.s32 %s55, %s62
      %s637 = sor.u32 %s635, %s636
      %p638 = scmp.eq.s32.totalorder %s637, 0
      %s640 = sadd.s32 %s639, 1
      %s641 = scalar_select %p638, %s639, %s640
      %p644 = pneg %p638
      %p645 = scmp.eq.s32.totalorder %s47, 1
      %p646 = por %p644, %p645
      %p647 = scmp.ne.s32.totalorder %s639, %s642
      %p648 = scmp.eq.s32.totalorder %s47, 0
      %p649 = por %p647, %p648
      %p650 = scmp.ne.s32.totalorder %s639, %s642
      %p651 = scmp.eq.s32.totalorder %s52, 1
      %p652 = por %p650, %p651
      %p653 = scmp.ne.s32.totalorder %s642, %s643
      %p654 = scmp.eq.s32.totalorder %s52, 0
      %p655 = por %p653, %p654
      %p656 = scmp.ne.s32.totalorder %s642, %s643
      %p657 = scmp.eq.s32.totalorder %s53, 1
      %p658 = por %p656, %p657
      %p660 = scmp.ne.s32.totalorder %s643, %s659
      %p661 = scmp.eq.s32.totalorder %s53, 0
      %p662 = por %p660, %p661
      %p663 = scmp.le.s32.totalorder 1, %s47
      %p664 = scmp.lt.s32.totalorder %s47, 3
      %p665 = pnand %p663, %p664
      %p666 = pneg %p665
      // Predicated region
      $region9: #{tpu_custom_call.1} parent=5 // pred_check
        _
      $region10: #{tpu_custom_call.1} parent=5 // pred_check_branch
        %668 = sbr.rel (%p665) target = $region12
      $region11: #{tpu_custom_call.1} parent=5 // pred_region
        %s669 = ssub.s32 %s47, 1
        // Predicated region
        $region13: #{tpu_custom_call.1} parent=11 // pred_check
          %p670 = pneg %p214
        $region14: #{tpu_custom_call.1} parent=11 // pred_check_branch
          %672 = sbr.rel (%p670) target = $region16
        $region15: #{tpu_custom_call.1} parent=11 // pred_region
          _
        $region16: #{tpu_custom_call.1} parent=11 // pred_fallthru
          _
        // Predicated region
        $region17: #{tpu_custom_call.1} parent=11 // pred_check
          %p673 = pneg %p235
        $region18: #{tpu_custom_call.1} parent=11 // pred_check_branch
          %675 = sbr.rel (%p673) target = $region20
        $region19: #{tpu_custom_call.1} parent=11 // pred_region
          _
        $region20: #{tpu_custom_call.1} parent=11 // pred_fallthru
          _
        // Predicated region
        $region21: #{tpu_custom_call.1} parent=11 // pred_check
          %p676 = pneg %p256
        $region22: #{tpu_custom_call.1} parent=11 // pred_check_branch
          %678 = sbr.rel (%p676) target = $region24
        $region23: #{tpu_custom_call.1} parent=11 // pred_region
          _
        $region24: #{tpu_custom_call.1} parent=11 // pred_fallthru
          _
        // Predicated region
        $region25: #{tpu_custom_call.1} parent=11 // pred_check
          %p679 = pneg %p277
        $region26: #{tpu_custom_call.1} parent=11 // pred_check_branch
          %681 = sbr.rel (%p679) target = $region28
        $region27: #{tpu_custom_call.1} parent=11 // pred_region
          _
        $region28: #{tpu_custom_call.1} parent=11 // pred_fallthru
          _
        // Predicated region
        $region29: #{tpu_custom_call.1} parent=11 // pred_check
          %p682 = pneg %p298
        $region30: #{tpu_custom_call.1} parent=11 // pred_check_branch
          %684 = sbr.rel (%p682) target = $region32
        $region31: #{tpu_custom_call.1} parent=11 // pred_region
          _
        $region32: #{tpu_custom_call.1} parent=11 // pred_fallthru
          _
        // Predicated region
        $region33: #{tpu_custom_call.1} parent=11 // pred_check
          %p685 = pneg %p319
        $region34: #{tpu_custom_call.1} parent=11 // pred_check_branch
          %687 = sbr.rel (%p685) target = $region36
        $region35: #{tpu_custom_call.1} parent=11 // pred_region
          _
        $region36: #{tpu_custom_call.1} parent=11 // pred_fallthru
          _
        // Predicated region
        $region37: #{tpu_custom_call.1} parent=11 // pred_check
          %p688 = pneg %p340
        $region38: #{tpu_custom_call.1} parent=11 // pred_check_branch
          %690 = sbr.rel (%p688) target = $region40
        $region39: #{tpu_custom_call.1} parent=11 // pred_region
          %692 = vsyncadd [#allocation9], 0
          %s693 = sshll.u32 %s11, 4
          %s694 = int_to_ptr.hbm [resolvable:$true] %s693
          %s695 = sshll.u32 [#allocation8], 4
          %s696 = int_to_ptr.vmem [resolvable:$true] %s695
          %701 = dma.hbm_to_vmem [thread:$0]  %s694, 256, %s696, [#allocation9], 64, 64, 4
        $region40: #{tpu_custom_call.1} parent=11 // pred_fallthru
          _
        // Predicated region
        $region41: #{tpu_custom_call.1} parent=11 // pred_check
          %p702 = pneg %p361
        $region42: #{tpu_custom_call.1} parent=11 // pred_check_branch
          %704 = sbr.rel (%p702) target = $region44
        $region43: #{tpu_custom_call.1} parent=11 // pred_region
          %706 = vsyncadd [#allocation9], 0
          %s707 = sshll.u32 %s12, 4
          %s708 = int_to_ptr.hbm [resolvable:$true] %s707
          %s709 = sshll.u32 [#allocation10], 4
          %s710 = int_to_ptr.vmem [resolvable:$true] %s709
          %715 = dma.hbm_to_vmem [thread:$0]  %s708, 256, %s710, [#allocation9], 64, 64, 4
        $region44: #{tpu_custom_call.1} parent=11 // pred_fallthru
          _
        // Predicated region
        $region45: #{tpu_custom_call.1} parent=11 // pred_check
          %p716 = pneg %p382
        $region46: #{tpu_custom_call.1} parent=11 // pred_check_branch
          %718 = sbr.rel (%p716) target = $region48
        $region47: #{tpu_custom_call.1} parent=11 // pred_region
          %720 = vsyncadd [#allocation12], 0
          %s721 = sshll.u32 %s13, 4
          %s722 = int_to_ptr.hbm [resolvable:$true] %s721
          %s723 = sshll.u32 [#allocation11], 4
          %s724 = int_to_ptr.vmem [resolvable:$true] %s723
          %729 = dma.hbm_to_vmem [thread:$0]  %s722, 256, %s724, [#allocation12], 64, 64, 4
        $region48: #{tpu_custom_call.1} parent=11 // pred_fallthru
          _
        // Predicated region
        $region49: #{tpu_custom_call.1} parent=11 // pred_check
          %p730 = pneg %p403
        $region50: #{tpu_custom_call.1} parent=11 // pred_check_branch
          %732 = sbr.rel (%p730) target = $region52
        $region51: #{tpu_custom_call.1} parent=11 // pred_region
          %734 = vsyncadd [#allocation12], 0
          %s735 = sshll.u32 %s14, 4
          %s736 = int_to_ptr.hbm [resolvable:$true] %s735
          %s737 = sshll.u32 [#allocation13], 4
          %s738 = int_to_ptr.vmem [resolvable:$true] %s737
          %743 = dma.hbm_to_vmem [thread:$0]  %s736, 256, %s738, [#allocation12], 64, 64, 4
        $region52: #{tpu_custom_call.1} parent=11 // pred_fallthru
          _
        // Predicated region
        $region53: #{tpu_custom_call.1} parent=11 // pred_check
          %p744 = pneg %p424
        $region54: #{tpu_custom_call.1} parent=11 // pred_check_branch
          %746 = sbr.rel (%p744) target = $region56
        $region55: #{tpu_custom_call.1} parent=11 // pred_region
          _
        $region56: #{tpu_custom_call.1} parent=11 // pred_fallthru
          _
        // Predicated region
        $region57: #{tpu_custom_call.1} parent=11 // pred_check
          %p747 = pneg %p445
        $region58: #{tpu_custom_call.1} parent=11 // pred_check_branch
          %749 = sbr.rel (%p747) target = $region60
        $region59: #{tpu_custom_call.1} parent=11 // pred_region
          _
        $region60: #{tpu_custom_call.1} parent=11 // pred_fallthru
          _
        // Predicated region
        $region61: #{tpu_custom_call.1} parent=11 // pred_check
          %p750 = pneg %p466
        $region62: #{tpu_custom_call.1} parent=11 // pred_check_branch
          %752 = sbr.rel (%p750) target = $region64
        $region63: #{tpu_custom_call.1} parent=11 // pred_region
          %754 = vsyncadd [#allocation15], 0
          %s755 = sshll.u32 %s17, 4
          %s756 = int_to_ptr.hbm [resolvable:$true] %s755
          %s757 = sshll.u32 [#allocation14], 4
          %s758 = int_to_ptr.vmem [resolvable:$true] %s757
          %763 = dma.hbm_to_vmem [thread:$0]  %s756, 256, %s758, [#allocation15], 64, 64, 4
        $region64: #{tpu_custom_call.1} parent=11 // pred_fallthru
          _
        // Predicated region
        $region65: #{tpu_custom_call.1} parent=11 // pred_check
          %p764 = pneg %p487
        $region66: #{tpu_custom_call.1} parent=11 // pred_check_branch
          %766 = sbr.rel (%p764) target = $region68
        $region67: #{tpu_custom_call.1} parent=11 // pred_region
          _
        $region68: #{tpu_custom_call.1} parent=11 // pred_fallthru
          _
        // Predicated region
        $region69: #{tpu_custom_call.1} parent=11 // pred_check
          %p767 = pneg %p508
        $region70: #{tpu_custom_call.1} parent=11 // pred_check_branch
          %769 = sbr.rel (%p767) target = $region72
        $region71: #{tpu_custom_call.1} parent=11 // pred_region
          _
        $region72: #{tpu_custom_call.1} parent=11 // pred_fallthru
          _
        // Predicated region
        $region73: #{tpu_custom_call.1} parent=11 // pred_check
          %p770 = pneg %p529
        $region74: #{tpu_custom_call.1} parent=11 // pred_check_branch
          %772 = sbr.rel (%p770) target = $region76
        $region75: #{tpu_custom_call.1} parent=11 // pred_region
          _
        $region76: #{tpu_custom_call.1} parent=11 // pred_fallthru
          _
        // Predicated region
        $region77: #{tpu_custom_call.1} parent=11 // pred_check
          %p773 = pneg %p550
        $region78: #{tpu_custom_call.1} parent=11 // pred_check_branch
          %775 = sbr.rel (%p773) target = $region80
        $region79: #{tpu_custom_call.1} parent=11 // pred_region
          _
        $region80: #{tpu_custom_call.1} parent=11 // pred_fallthru
          _
        // Predicated region
        $region81: #{tpu_custom_call.1} parent=11 // pred_check
          %p776 = pneg %p571
        $region82: #{tpu_custom_call.1} parent=11 // pred_check_branch
          %778 = sbr.rel (%p776) target = $region84
        $region83: #{tpu_custom_call.1} parent=11 // pred_region
          _
        $region84: #{tpu_custom_call.1} parent=11 // pred_fallthru
          _
      $region12: #{tpu_custom_call.1} parent=5 // pred_fallthru
        _
      %p779 = scmp.lt.s32.totalorder %s47, 2
      // Predicated region
      $region85: #{tpu_custom_call.1} parent=5 // pred_check
        %p780 = pneg %p779
      $region86: #{tpu_custom_call.1} parent=5 // pred_check_branch
        %782 = sbr.rel (%p780) target = $region88
      $region87: #{tpu_custom_call.1} parent=5 // pred_region
        // Predicated region
        $region89: #{tpu_custom_call.1} parent=87 // pred_check
          %p783 = pneg %p81
        $region90: #{tpu_custom_call.1} parent=87 // pred_check_branch
          %785 = sbr.rel (%p783) target = $region92
        $region91: #{tpu_custom_call.1} parent=87 // pred_region
          %s786 = sand.u32 %s71, 1
          %s787 = scalar_lea.sflag [#allocation3], %s786
          %s788 = sand.u32 %s71, 1
          %s789 = smul.addr %s788, 4
          %s790 = scalar_lea.vmem [#allocation2], %s789
          %792 = vsyncadd %s787, 0
          %s793 = sadd.s32 %s55, %s54
          %s794 = smul.addr %s793, 4
          %s795 = scalar_lea.hbm %s0, %s794
          %s797 = sshll.u32 %s795, 4
          %s798 = int_to_ptr.hbm [resolvable:$true] %s797
          %s799 = sshll.u32 %s790, 4
          %s800 = int_to_ptr.vmem [resolvable:$true] %s799
          %802 = dma.hbm_to_vmem [thread:$0]  %s798, 64, %s800, %s787
        $region92: #{tpu_custom_call.1} parent=87 // pred_fallthru
          _
        // Predicated region
        $region93: #{tpu_custom_call.1} parent=87 // pred_check
          %p803 = pneg %p107
        $region94: #{tpu_custom_call.1} parent=87 // pred_check_branch
          %805 = sbr.rel (%p803) target = $region96
        $region95: #{tpu_custom_call.1} parent=87 // pred_region
          %s806 = sand.u32 %s47, 1
          %s807 = scalar_lea.sflag [#allocation6], %s806
          %s808 = sand.u32 %s97, 1
          %s809 = smul.addr %s808, 4
          %s810 = scalar_lea.vmem [#allocation5], %s809
          %812 = vsyncadd %s807, 0
          %s813 = smul.addr %s54, 4
          %s814 = scalar_lea.hbm %s1, %s813
          %s816 = sshll.u32 %s814, 4
          %s817 = int_to_ptr.hbm [resolvable:$true] %s816
          %s818 = sshll.u32 %s810, 4
          %s819 = int_to_ptr.vmem [resolvable:$true] %s818
          %821 = dma.hbm_to_vmem [thread:$0]  %s817, 64, %s819, %s807
        $region96: #{tpu_custom_call.1} parent=87 // pred_fallthru
          _
        // Predicated region
        $region97: #{tpu_custom_call.1} parent=87 // pred_check
          %p822 = pneg %p133
        $region98: #{tpu_custom_call.1} parent=87 // pred_check_branch
          %824 = sbr.rel (%p822) target = $region100
        $region99: #{tpu_custom_call.1} parent=87 // pred_region
          %p825 = scmp.lt.s32.totalorder %s54, 1
          %s826 = scalar_select %p825, %s54, 1
          %s827 = smul.addr %s826, 2
          %s828 = smul.addr %s827, 4
          %s829 = scalar_lea.vmem %s2, %s828
        $region100: #{tpu_custom_call.1} parent=87 // pred_fallthru
          _
        // Predicated region
        $region101: #{tpu_custom_call.1} parent=87 // pred_check
          %p830 = pneg %p161
        $region102: #{tpu_custom_call.1} parent=87 // pred_check_branch
          %832 = sbr.rel (%p830) target = $region104
        $region103: #{tpu_custom_call.1} parent=87 // pred_region
          %p833 = scmp.lt.s32.totalorder %s54, 1
          %s834 = scalar_select %p833, %s54, 1
          %p835 = scmp.lt.s32.totalorder %s55, 0
          %s836 = scalar_select %p835, %s55, 0
          %s837 = sadd.s32 %s836, %s834
          %s838 = smul.addr %s837, 8
          %s839 = scalar_lea.vmem %s3, %s838
        $region104: #{tpu_custom_call.1} parent=87 // pred_fallthru
          _
        // Predicated region
        $region105: #{tpu_custom_call.1} parent=87 // pred_check
          %p840 = pneg %p187
        $region106: #{tpu_custom_call.1} parent=87 // pred_check_branch
          %842 = sbr.rel (%p840) target = $region108
        $region107: #{tpu_custom_call.1} parent=87 // pred_region
          %s843 = sand.u32 %s47, 1
          %s844 = scalar_lea.sflag [#allocation6], %s843
          %s845 = sand.u32 %s177, 1
          %s846 = scalar_lea.vmem [#allocation7], %s845
          %848 = vsyncadd %s844, 0
          %s849 = scalar_lea.hbm %s4, %s54
          %s851 = sshll.u32 %s849, 4
          %s852 = int_to_ptr.hbm [resolvable:$true] %s851
          %s853 = sshll.u32 %s846, 4
          %s854 = int_to_ptr.vmem [resolvable:$true] %s853
          %856 = dma.hbm_to_vmem [thread:$0]  %s852, 16, %s854, %s844
        $region108: #{tpu_custom_call.1} parent=87 // pred_fallthru
          _
      $region88: #{tpu_custom_call.1} parent=5 // pred_fallthru
        _
      %p857 = scmp.le.s32.totalorder 1, %s47
      %p858 = scmp.lt.s32.totalorder %s47, 3
      %p859 = pnand %p857, %p858
      %p860 = pneg %p859
      // Predicated region
      $region109: #{tpu_custom_call.1} parent=5 // pred_check
        _
      $region110: #{tpu_custom_call.1} parent=5 // pred_check_branch
        %862 = sbr.rel (%p859) target = $region112
      $region111: #{tpu_custom_call.1} parent=5 // pred_region
        %s863 = ssub.s32 %s47, 1
        %s864 = sand.u32 %s74, 1
        %s865 = scalar_lea.sflag [#allocation3], %s864
        %s866 = sand.u32 %s74, 1
        %s867 = smul.addr %s866, 4
        %s868 = scalar_lea.vmem [#allocation2], %s867
        // Predicated region
        $region113: #{tpu_custom_call.1} parent=111 // pred_check
          %p869 = pneg %p87
        $region114: #{tpu_custom_call.1} parent=111 // pred_check_branch
          %871 = sbr.rel (%p869) target = $region116
        $region115: #{tpu_custom_call.1} parent=111 // pred_region
          %873 = dma.done %s865, 64
        $region116: #{tpu_custom_call.1} parent=111 // pred_fallthru
          _
        %s874 = sand.u32 %s52, 1
        %s875 = scalar_lea.sflag [#allocation6], %s874
        %s876 = sand.u32 %s100, 1
        %s877 = smul.addr %s876, 4
        %s878 = scalar_lea.vmem [#allocation5], %s877
        // Predicated region
        $region117: #{tpu_custom_call.1} parent=111 // pred_check
          %p879 = pneg %p113
        $region118: #{tpu_custom_call.1} parent=111 // pred_check_branch
          %881 = sbr.rel (%p879) target = $region120
        $region119: #{tpu_custom_call.1} parent=111 // pred_region
          %883 = dma.done %s875, 64
        $region120: #{tpu_custom_call.1} parent=111 // pred_fallthru
          _
        %s884 = sand.u32 %s52, 1
        %s885 = scalar_lea.sflag [#allocation6], %s884
        %s886 = sand.u32 %s180, 1
        %s887 = scalar_lea.vmem [#allocation7], %s886
        // Predicated region
        $region121: #{tpu_custom_call.1} parent=111 // pred_check
          %p888 = pneg %p193
        $region122: #{tpu_custom_call.1} parent=111 // pred_check_branch
          %890 = sbr.rel (%p888) target = $region124
        $region123: #{tpu_custom_call.1} parent=111 // pred_region
          %892 = dma.done %s885, 16
        $region124: #{tpu_custom_call.1} parent=111 // pred_fallthru
          _
        // Predicated region
        $region125: #{tpu_custom_call.1} parent=111 // pred_check
          %p893 = pneg %p340
        $region126: #{tpu_custom_call.1} parent=111 // pred_check_branch
          %895 = sbr.rel (%p893) target = $region128
        $region127: #{tpu_custom_call.1} parent=111 // pred_region
          %897 = dma.done [#allocation9], 256
        $region128: #{tpu_custom_call.1} parent=111 // pred_fallthru
          _
        // Predicated region
        $region129: #{tpu_custom_call.1} parent=111 // pred_check
          %p898 = pneg %p361
        $region130: #{tpu_custom_call.1} parent=111 // pred_check_branch
          %900 = sbr.rel (%p898) target = $region132
        $region131: #{tpu_custom_call.1} parent=111 // pred_region
          %902 = dma.done [#allocation9], 256
        $region132: #{tpu_custom_call.1} parent=111 // pred_fallthru
          _
        // Predicated region
        $region133: #{tpu_custom_call.1} parent=111 // pred_check
          %p903 = pneg %p382
        $region134: #{tpu_custom_call.1} parent=111 // pred_check_branch
          %905 = sbr.rel (%p903) target = $region136
        $region135: #{tpu_custom_call.1} parent=111 // pred_region
          %907 = dma.done [#allocation12], 256
        $region136: #{tpu_custom_call.1} parent=111 // pred_fallthru
          _
        // Predicated region
        $region137: #{tpu_custom_call.1} parent=111 // pred_check
          %p908 = pneg %p403
        $region138: #{tpu_custom_call.1} parent=111 // pred_check_branch
          %910 = sbr.rel (%p908) target = $region140
        $region139: #{tpu_custom_call.1} parent=111 // pred_region
          %912 = dma.done [#allocation12], 256
        $region140: #{tpu_custom_call.1} parent=111 // pred_fallthru
          _
        // Predicated region
        $region141: #{tpu_custom_call.1} parent=111 // pred_check
          %p913 = pneg %p466
        $region142: #{tpu_custom_call.1} parent=111 // pred_check_branch
          %915 = sbr.rel (%p913) target = $region144
        $region143: #{tpu_custom_call.1} parent=111 // pred_region
          %917 = dma.done [#allocation15], 256
        $region144: #{tpu_custom_call.1} parent=111 // pred_fallthru
          _
        %s918 = sand.u32 %s74, 1
        %s919 = scalar_lea.sflag [#allocation3], %s918
        %s920 = sand.u32 %s74, 1
        %s921 = smul.addr %s920, 4
        %s922 = scalar_lea.vmem [#allocation2], %s921
        %p923 = pneg %p87
        %p924 = pneg %p84
        %s925 = sand.u32 %s52, 1
        %s926 = scalar_lea.sflag [#allocation6], %s925
        %s927 = sand.u32 %s100, 1
        %s928 = smul.addr %s927, 4
        %s929 = scalar_lea.vmem [#allocation5], %s928
        %p930 = pneg %p113
        %p931 = pneg %p110
        %p932 = scmp.lt.s32.totalorder %s56, 1
        %s933 = scalar_select %p932, %s56, 1
        %s934 = smul.addr %s933, 2
        %s935 = smul.addr %s934, 4
        %s936 = scalar_lea.vmem %s2, %s935
        %p937 = pneg %p139
        %p938 = pneg %p136
        %p939 = scmp.lt.s32.totalorder %s56, 1
        %s940 = scalar_select %p939, %s56, 1
        %p941 = scmp.lt.s32.totalorder %s57, 0
        %s942 = scalar_select %p941, %s57, 0
        %s943 = sadd.s32 %s942, %s940
        %s944 = smul.addr %s943, 8
        %s945 = scalar_lea.vmem %s3, %s944
        %p946 = pneg %p167
        %p947 = pneg %p164
        %s948 = sand.u32 %s52, 1
        %s949 = scalar_lea.sflag [#allocation6], %s948
        %s950 = sand.u32 %s180, 1
        %s951 = scalar_lea.vmem [#allocation7], %s950
        %p952 = pneg %p193
        %p953 = pneg %p190
        %p954 = pneg %p214
        %p955 = pneg %p211
        %p956 = pneg %p235
        %p957 = pneg %p232
        %p958 = pneg %p256
        %p959 = pneg %p253
        %p960 = pneg %p277
        %p961 = pneg %p274
        %p962 = pneg %p298
        %p963 = pneg %p295
        %p964 = pneg %p319
        %p965 = pneg %p316
        %p966 = pneg %p340
        %p967 = pneg %p337
        %p968 = pneg %p361
        %p969 = pneg %p358
        %p970 = pneg %p382
        %p971 = pneg %p379
        %p972 = pneg %p403
        %p973 = pneg %p400
        %p974 = pneg %p424
        %p975 = pneg %p421
        %p976 = pneg %p445
        %p977 = pneg %p442
        %p978 = pneg %p466
        %p979 = pneg %p463
        %p980 = pneg %p487
        %p981 = pneg %p484
        %p982 = pneg %p508
        %p983 = pneg %p505
        %p984 = pneg %p529
        %p985 = pneg %p526
        %p986 = pneg %p550
        %p987 = pneg %p547
        %p988 = pneg %p571
        %p989 = pneg %p568
        %p990 = pneg %p599
        %p991 = pneg %p596
        %s992 = sand.u32 %s586, 1
        %s993 = scalar_lea.sflag [#allocation4], %s992
        %s994 = sand.u32 %s586, 1
        %s995 = smul.addr %s994, 8
        %s996 = scalar_lea.vmem [#allocation16], %s995
        %p997 = pneg %p627
        %p998 = pneg %p624
        %s999 = sand.u32 %s52, 1
        %s1000 = scalar_lea.sflag [#allocation18], %s999
        %s1001 = sand.u32 %s614, 1
        %s1002 = smul.addr %s1001, 16
        %s1003 = scalar_lea.vmem [#allocation17], %s1002
        %p1004 = pneg %p655
        %p1005 = pneg %p652
        %s1006 = sand.u32 %s52, 1
        %s1007 = scalar_lea.sflag [#allocation18], %s1006
        %s1008 = sand.u32 %s642, 1
        %s1009 = smul.addr %s1008, 16
        %s1010 = scalar_lea.vmem [#allocation19], %s1009
        %p1011 = scmp.lt.s32.totalorder %s56, 1
        %s1012 = scalar_select %p1011, %s56, 1
        %s1013 = smul.addr %s1012, 2
        %s1014 = smul.addr %s1013, 4
        %s1015 = scalar_lea.vmem %s2, %s1014
        %p1016 = scmp.lt.s32.totalorder %s56, 1
        %s1017 = scalar_select %p1016, %s56, 1
        %p1018 = scmp.lt.s32.totalorder %s57, 0
        %s1019 = scalar_select %p1018, %s57, 0
        %s1020 = sadd.s32 %s1019, %s1017
        %s1021 = smul.addr %s1020, 8
        %s1022 = scalar_lea.vmem %s3, %s1021
        %v1024 = vld [vmem:[%s868] sm:$0xf]
        %v1025 = vunpack.c.l.bf16 %v1024
        %v1026 = vld [vmem:[%s878] sm:$0xf]
        %v1027 = vld [vmem:[%s1015] sm:$0xf]
        %v1028 = vld [vmem:[%s1015 + $0x4] sm:$0x3]
        %v1029 = vld [vmem:[%s1022] sm:$0xff]
        %vm1030 = vcmp.eq.f32.partialorder %v1029, 0.0
        %v1031 = vsel %vm1030, -1e+09, 0.0
        %v1032 = vld [vmem:[%s887] sm:$0x1]
        %vm1033 = vcmp.eq.f32.partialorder %v1032, 0.0
        %v1034 = vsel %vm1033, -1e+09, 0.0
        %v1035 = vld [vmem:[%s5] sm:$0xf]
        %v1036 = vld [vmem:[%s5 + $0x4] sm:$0xf]
        %v1037 = vld [vmem:[%s5 + $0x8] sm:$0xf]
        %v1038 = vld [vmem:[%s5 + $0xc] sm:$0xf]
        %v1043 = vunpack.c.l.b16 %v1035
        %v1044 = vunpack.c.l.b16 %v1036
        %v1045 = vunpack.c.l.b16 %v1037
        %v1046 = vunpack.c.l.b16 %v1038
        %v1047 = vpack.c.b16 %v1044, %v1043
        %v1048 = vpack.c.b16 %v1046, %v1045
        %vm1051 = vcmask 261120
        %v1053 = vsel %vm1051, %v1024, 0
        %1055 = vmatpush.bf16.msra.mxu0 0
        %1056 = vmatpush.bf16.msra.mxu0 0
        %1057 = vmatpush.bf16.msra.mxu0 0
        %1058 = vmatpush.bf16.msra.mxu0 0
        %1059 = vmatpush.bf16.msra.mxu0 0
        %1060 = vmatpush.bf16.msra.mxu0 0
        %1061 = vmatpush.bf16.msra.mxu0 %v1048
        %1062 = vmatpush.bf16.msra.mxu0 %v1047
        %1063 = vmatmul.bf16.gmra.mxu0 %v1053
        %v1064 = vpop.f32.mrf.mxu0
        %v1065 = vadd.f32 0.0, %v1064
        %v1066 = vpop.f32.mrf.mxu0
        %1067 = vdwg.mxu0
        %v1068 = vld [vmem:[%s6] sm:$0xf]
        %v1069 = vld [vmem:[%s6 + $0x4] sm:$0xf]
        %v1070 = vld [vmem:[%s6 + $0x8] sm:$0xf]
        %v1071 = vld [vmem:[%s6 + $0xc] sm:$0xf]
        %v1076 = vunpack.c.l.b16 %v1068
        %v1077 = vunpack.c.l.b16 %v1069
        %v1078 = vunpack.c.l.b16 %v1070
        %v1079 = vunpack.c.l.b16 %v1071
        %v1080 = vpack.c.b16 %v1077, %v1076
        %v1081 = vpack.c.b16 %v1079, %v1078
        %v1085 = vsel %vm1051, %v1026, 0
        %1087 = vmatpush.bf16.msra.mxu0 0
        %1088 = vmatpush.bf16.msra.mxu0 0
        %1089 = vmatpush.bf16.msra.mxu0 0
        %1090 = vmatpush.bf16.msra.mxu0 0
        %1091 = vmatpush.bf16.msra.mxu0 0
        %1092 = vmatpush.bf16.msra.mxu0 0
        %1093 = vmatpush.bf16.msra.mxu0 %v1081
        %1094 = vmatpush.bf16.msra.mxu0 %v1080
        %1095 = vmatmul.bf16.gmra.mxu0 %v1085
        %v1096 = vpop.f32.mrf.mxu0
        %v1097 = vadd.f32 0.0, %v1096
        %v1098 = vpop.f32.mrf.mxu0
        %1099 = vdwg.mxu0
        %v1100 = vld [vmem:[%s7] sm:$0xf]
        %v1101 = vld [vmem:[%s7 + $0x4] sm:$0xf]
        %v1102 = vld [vmem:[%s7 + $0x8] sm:$0xf]
        %v1103 = vld [vmem:[%s7 + $0xc] sm:$0xf]
        %v1108 = vunpack.c.l.b16 %v1100
        %v1109 = vunpack.c.l.b16 %v1101
        %v1110 = vunpack.c.l.b16 %v1102
        %v1111 = vunpack.c.l.b16 %v1103
        %v1112 = vpack.c.b16 %v1109, %v1108
        %v1113 = vpack.c.b16 %v1111, %v1110
        %1116 = vmatpush.bf16.msra.mxu0 0
        %1117 = vmatpush.bf16.msra.mxu0 0
        %1118 = vmatpush.bf16.msra.mxu0 0
        %1119 = vmatpush.bf16.msra.mxu0 0
        %1120 = vmatpush.bf16.msra.mxu0 0
        %1121 = vmatpush.bf16.msra.mxu0 0
        %1122 = vmatpush.bf16.msra.mxu0 %v1113
        %1123 = vmatpush.bf16.msra.mxu0 %v1112
        %1124 = vmatmul.bf16.gmra.mxu0 %v1085
        %v1125 = vpop.f32.mrf.mxu0
        %v1126 = vadd.f32 0.0, %v1125
        %v1127 = vpop.f32.mrf.mxu0
        %1128 = vdwg.mxu0
        %1130 = vrot.lane.b32.xlu0 %v1065, 120
        %v1131 = vpop.permute.xlu0 %1130
        %1133 = vrot.lane.b32.xlu0 %v1065, 112
        %v1134 = vpop.permute.xlu0 %1133
        %1136 = vrot.lane.b32.xlu0 %v1065, 104
        %v1137 = vpop.permute.xlu0 %1136
        %v1139 = vpack.c.bf16 %v1065, %v1065
        %v1140 = vpack.c.bf16 %v1131, %v1131
        %v1141 = vpack.c.bf16 %v1134, %v1134
        %v1142 = vpack.c.bf16 %v1137, %v1137
        %1144 = vrot.lane.b32.xlu0 %v1097, 120
        %v1145 = vpop.permute.xlu0 %1144
        %1147 = vrot.lane.b32.xlu0 %v1097, 112
        %v1148 = vpop.permute.xlu0 %1147
        %1150 = vrot.lane.b32.xlu0 %v1097, 104
        %v1151 = vpop.permute.xlu0 %1150
        %v1153 = vpack.c.bf16 %v1097, %v1097
        %v1154 = vpack.c.bf16 %v1145, %v1145
        %v1155 = vpack.c.bf16 %v1148, %v1148
        %v1156 = vpack.c.bf16 %v1151, %v1151
        %1158 = vrot.lane.b32.xlu0 %v1126, 120
        %v1159 = vpop.permute.xlu0 %1158
        %1161 = vrot.lane.b32.xlu0 %v1126, 112
        %v1162 = vpop.permute.xlu0 %1161
        %1164 = vrot.lane.b32.xlu0 %v1126, 104
        %v1165 = vpop.permute.xlu0 %1164
        %v1167 = vpack.c.bf16 %v1126, %v1126
        %v1168 = vpack.c.bf16 %v1159, %v1159
        %v1169 = vpack.c.bf16 %v1162, %v1162
        %v1170 = vpack.c.bf16 %v1165, %v1165
        %vm1171 = vcmask 64512
        %v1173 = vsel %vm1171, %v1139, 0
        %v1176 = vsel %vm1171, %v1153, 0
        %1178 = vmatpush.bf16.xpose.msra.mxu0 0
        %1179 = vmatpush.bf16.xpose.msra.mxu0 0
        %1180 = vmatpush.bf16.xpose.msra.mxu0 0
        %1181 = vmatpush.bf16.xpose.msra.mxu0 0
        %1182 = vmatpush.bf16.xpose.msra.mxu0 0
        %1183 = vmatpush.bf16.xpose.msra.mxu0 0
        %1184 = vmatpush.bf16.xpose.msra.mxu0 0
        %1185 = vmatpush.bf16.xpose.msra.mxu0 %v1176
        %1186 = vmatmul.bf16.gmra.mxu0 %v1173
        %v1187 = vpop.f32.mrf.mxu0
        %v1188 = vadd.f32 %v1031, %v1187
        %v1189 = vpop.f32.mrf.mxu0
        %1190 = vdwg.mxu0
        %v1192 = vsel %vm1171, %v1140, 0
        %v1195 = vsel %vm1171, %v1154, 0
        %1197 = vmatpush.bf16.xpose.msra.mxu0 0
        %1198 = vmatpush.bf16.xpose.msra.mxu0 0
        %1199 = vmatpush.bf16.xpose.msra.mxu0 0
        %1200 = vmatpush.bf16.xpose.msra.mxu0 0
        %1201 = vmatpush.bf16.xpose.msra.mxu0 0
        %1202 = vmatpush.bf16.xpose.msra.mxu0 0
        %1203 = vmatpush.bf16.xpose.msra.mxu0 0
        %1204 = vmatpush.bf16.xpose.msra.mxu0 %v1195
        %1205 = vmatmul.bf16.gmra.mxu0 %v1192
        %v1206 = vpop.f32.mrf.mxu0
        %v1207 = vadd.f32 %v1031, %v1206
        %v1208 = vpop.f32.mrf.mxu0
        %1209 = vdwg.mxu0
        %v1211 = vsel %vm1171, %v1141, 0
        %v1214 = vsel %vm1171, %v1155, 0
        %1216 = vmatpush.bf16.xpose.msra.mxu0 0
        %1217 = vmatpush.bf16.xpose.msra.mxu0 0
        %1218 = vmatpush.bf16.xpose.msra.mxu0 0
        %1219 = vmatpush.bf16.xpose.msra.mxu0 0
        %1220 = vmatpush.bf16.xpose.msra.mxu0 0
        %1221 = vmatpush.bf16.xpose.msra.mxu0 0
        %1222 = vmatpush.bf16.xpose.msra.mxu0 0
        %1223 = vmatpush.bf16.xpose.msra.mxu0 %v1214
        %1224 = vmatmul.bf16.gmra.mxu0 %v1211
        %v1225 = vpop.f32.mrf.mxu0
        %v1226 = vadd.f32 %v1031, %v1225
        %v1227 = vpop.f32.mrf.mxu0
        %1228 = vdwg.mxu0
        %v1230 = vsel %vm1171, %v1142, 0
        %v1233 = vsel %vm1171, %v1156, 0
        %1235 = vmatpush.bf16.xpose.msra.mxu0 0
        %1236 = vmatpush.bf16.xpose.msra.mxu0 0
        %1237 = vmatpush.bf16.xpose.msra.mxu0 0
        %1238 = vmatpush.bf16.xpose.msra.mxu0 0
        %1239 = vmatpush.bf16.xpose.msra.mxu0 0
        %1240 = vmatpush.bf16.xpose.msra.mxu0 0
        %1241 = vmatpush.bf16.xpose.msra.mxu0 0
        %1242 = vmatpush.bf16.xpose.msra.mxu0 %v1233
        %1243 = vmatmul.bf16.gmra.mxu0 %v1230
        %v1244 = vpop.f32.mrf.mxu0
        %v1245 = vadd.f32 %v1031, %v1244
        %v1246 = vpop.f32.mrf.mxu0
        %1247 = vdwg.mxu0
        %v1248 = vsel %vm1171, %v1188, -inf
        %1249 = vmax.xlane.f32.xlu0 %v1248
        %v1250 = vpop.xlane.xlu0 %1249
        %v1251 = vsel %vm1171, %v1207, -inf
        %1252 = vmax.xlane.f32.xlu0 %v1251
        %v1253 = vpop.xlane.xlu0 %1252
        %v1254 = vsel %vm1171, %v1226, -inf
        %1255 = vmax.xlane.f32.xlu0 %v1254
        %v1256 = vpop.xlane.xlu0 %1255
        %v1257 = vsel %vm1171, %v1245, -inf
        %1258 = vmax.xlane.f32.xlu0 %v1257
        %v1259 = vpop.xlane.xlu0 %1258
        %v1260 = vsub.f32 %v1188, %v1250
        %v1261 = vsub.f32 %v1207, %v1253
        %v1262 = vsub.f32 %v1226, %v1256
        %v1263 = vsub.f32 %v1245, %v1259
        %v1264 = vmul.f32 %v1260, 1.442695
        %v1265 = vpow.pop %v1264
        %v1266 = vmul.f32 %v1261, 1.442695
        %v1267 = vpow.pop %v1266
        %v1268 = vmul.f32 %v1262, 1.442695
        %v1269 = vpow.pop %v1268
        %v1270 = vmul.f32 %v1263, 1.442695
        %v1271 = vpow.pop %v1270
        %v1272 = vsel %vm1171, %v1265, 0.0
        %1273 = vadd.xlane.f32.xlu0 %v1272
        %v1274 = vpop.xlane.xlu0 %1273
        %v1275 = vsel %vm1171, %v1267, 0.0
        %1276 = vadd.xlane.f32.xlu0 %v1275
        %v1277 = vpop.xlane.xlu0 %1276
        %v1278 = vsel %vm1171, %v1269, 0.0
        %1279 = vadd.xlane.f32.xlu0 %v1278
        %v1280 = vpop.xlane.xlu0 %1279
        %v1281 = vsel %vm1171, %v1271, 0.0
        %1282 = vadd.xlane.f32.xlu0 %v1281
        %v1283 = vpop.xlane.xlu0 %1282
        %v1284 = vrcp.pop %v1274
        %v1285 = vrcp.pop %v1277
        %v1286 = vrcp.pop %v1280
        %v1287 = vrcp.pop %v1283
        %v1288 = vmul.f32 %v1265, %v1284
        %v1289 = vmul.f32 %v1267, %v1285
        %v1290 = vmul.f32 %v1269, %v1286
        %v1291 = vmul.f32 %v1271, %v1287
        %v1292 = vpack.c.bf16 %v1288, %v1288
        %v1293 = vpack.c.bf16 %v1289, %v1289
        %v1294 = vpack.c.bf16 %v1290, %v1290
        %v1295 = vpack.c.bf16 %v1291, %v1291
        %v1297 = vsel %vm1171, %v1292, 0
        %vm1299 = vcmask 1043456
        %v1301 = vsel %vm1299, %v1167, 0
        %1303 = vmatpush.bf16.msra.mxu0 0
        %1304 = vmatpush.bf16.msra.mxu0 0
        %1305 = vmatpush.bf16.msra.mxu0 0
        %1306 = vmatpush.bf16.msra.mxu0 0
        %1307 = vmatpush.bf16.msra.mxu0 0
        %1308 = vmatpush.bf16.msra.mxu0 0
        %1309 = vmatpush.bf16.msra.mxu0 0
        %1310 = vmatpush.bf16.msra.mxu0 %v1301
        %1311 = vmatmul.bf16.gmra.mxu0 %v1297
        %v1312 = vpop.f32.mrf.mxu0
        %v1313 = vadd.f32 0.0, %v1312
        %v1314 = vpop.f32.mrf.mxu0
        %1315 = vdwg.mxu0
        %v1317 = vsel %vm1171, %v1293, 0
        %v1320 = vsel %vm1299, %v1168, 0
        %1322 = vmatpush.bf16.msra.mxu0 0
        %1323 = vmatpush.bf16.msra.mxu0 0
        %1324 = vmatpush.bf16.msra.mxu0 0
        %1325 = vmatpush.bf16.msra.mxu0 0
        %1326 = vmatpush.bf16.msra.mxu0 0
        %1327 = vmatpush.bf16.msra.mxu0 0
        %1328 = vmatpush.bf16.msra.mxu0 0
        %1329 = vmatpush.bf16.msra.mxu0 %v1320
        %1330 = vmatmul.bf16.gmra.mxu0 %v1317
        %v1331 = vpop.f32.mrf.mxu0
        %v1332 = vadd.f32 0.0, %v1331
        %v1333 = vpop.f32.mrf.mxu0
        %1334 = vdwg.mxu0
        %v1336 = vsel %vm1171, %v1294, 0
        %v1339 = vsel %vm1299, %v1169, 0
        %1341 = vmatpush.bf16.msra.mxu0 0
        %1342 = vmatpush.bf16.msra.mxu0 0
        %1343 = vmatpush.bf16.msra.mxu0 0
        %1344 = vmatpush.bf16.msra.mxu0 0
        %1345 = vmatpush.bf16.msra.mxu0 0
        %1346 = vmatpush.bf16.msra.mxu0 0
        %1347 = vmatpush.bf16.msra.mxu0 0
        %1348 = vmatpush.bf16.msra.mxu0 %v1339
        %1349 = vmatmul.bf16.gmra.mxu0 %v1336
        %v1350 = vpop.f32.mrf.mxu0
        %v1351 = vadd.f32 0.0, %v1350
        %v1352 = vpop.f32.mrf.mxu0
        %1353 = vdwg.mxu0
        %v1355 = vsel %vm1171, %v1295, 0
        %v1358 = vsel %vm1299, %v1170, 0
        %1360 = vmatpush.bf16.msra.mxu0 0
        %1361 = vmatpush.bf16.msra.mxu0 0
        %1362 = vmatpush.bf16.msra.mxu0 0
        %1363 = vmatpush.bf16.msra.mxu0 0
        %1364 = vmatpush.bf16.msra.mxu0 0
        %1365 = vmatpush.bf16.msra.mxu0 0
        %1366 = vmatpush.bf16.msra.mxu0 0
        %1367 = vmatpush.bf16.msra.mxu0 %v1358
        %1368 = vmatmul.bf16.gmra.mxu0 %v1355
        %v1369 = vpop.f32.mrf.mxu0
        %v1370 = vadd.f32 0.0, %v1369
        %v1371 = vpop.f32.mrf.mxu0
        %1372 = vdwg.mxu0
        %1374 = vrot.lane.b32.xlu0 %v1332, 8
        %v1375 = vpop.permute.xlu0 %1374
        %1378 = vrot.lane.b32.xlu0 %v1351, 16
        %v1379 = vpop.permute.xlu0 %1378
        %1382 = vrot.lane.b32.xlu0 %v1370, 24
        %v1383 = vpop.permute.xlu0 %1382
        %v1385 = vsel %vm1171, %v1313, %v1375
        %vm1386 = vcmask 130048
        %v1387 = vsel %vm1386, %v1385, %v1379
        %vm1388 = vcmask 195584
        %v1389 = vsel %vm1388, %v1387, %v1383
        %v1390 = vpack.c.bf16 %v1389, %v1389
        %v1391 = vld [vmem:[%s8] sm:$0xf]
        %v1392 = vld [vmem:[%s8 + $0x4] sm:$0xf]
        %v1393 = vld [vmem:[%s8 + $0x8] sm:$0xf]
        %v1394 = vld [vmem:[%s8 + $0xc] sm:$0xf]
        %v1399 = vunpack.c.l.b16 %v1391
        %v1400 = vunpack.c.l.b16 %v1392
        %v1401 = vunpack.c.l.b16 %v1393
        %v1402 = vunpack.c.l.b16 %v1394
        %v1403 = vpack.c.b16 %v1400, %v1399
        %v1404 = vpack.c.b16 %v1402, %v1401
        %v1408 = vsel %vm1051, %v1390, 0
        %1410 = vmatpush.bf16.msra.mxu0 0
        %1411 = vmatpush.bf16.msra.mxu0 0
        %1412 = vmatpush.bf16.msra.mxu0 0
        %1413 = vmatpush.bf16.msra.mxu0 0
        %1414 = vmatpush.bf16.msra.mxu0 0
        %1415 = vmatpush.bf16.msra.mxu0 0
        %1416 = vmatpush.bf16.msra.mxu0 %v1404
        %1417 = vmatpush.bf16.msra.mxu0 %v1403
        %1418 = vmatmul.bf16.gmra.mxu0 %v1408
        %v1419 = vpop.f32.mrf.mxu0
        %v1420 = vadd.f32 %v1025, %v1419
        %v1421 = vpop.f32.mrf.mxu0
        %1422 = vdwg.mxu0
        %v1423 = vld [vmem:[%s9] sm:$0x1]
        %v1424 = vld [vmem:[%s10] sm:$0x1]
        %v1425 = vsel %vm1051, %v1420, 0.0
        %1426 = vadd.xlane.f32.xlu0 %v1425
        %v1427 = vpop.xlane.xlu0 %1426
        %v1428 = vrcp.pop 32.0
        %v1429 = vmul.f32 32.0, %v1428
        %v1430 = vsub.f32 1.0, %v1429
        %v1431 = vmul.f32 %v1428, %v1430
        %v1432 = vadd.f32 %v1428, %v1431
        %vm1433 = vweird.f32 %v1428
        %v1434 = vsel %vm1433, %v1428, %v1432
        %v1435 = vmul.f32 %v1427, %v1434
        %v1436 = vsub.f32 %v1420, %v1435
        %v1437 = vmul.f32 %v1436, %v1436
        %v1438 = vsel %vm1051, %v1437, 0.0
        %1439 = vadd.xlane.f32.xlu0 %v1438
        %v1440 = vpop.xlane.xlu0 %1439
        %v1441 = vmul.f32 %v1440, %v1434
        %v1442 = vadd.f32 %v1441, 1e-06
        %v1443 = vrsqrt.pop %v1442
        %v1444 = vmul.f32 %v1443, %v1442
        %v1445 = vmul.f32 %v1444, %v1443
        %v1446 = vmul.f32 0.5, %v1445
        %v1447 = vsub.f32 1.5, %v1446
        %v1448 = vmul.f32 %v1443, %v1447
        %vm1449 = vweird.f32 %v1442
        %vm1450 = vweird.f32 %v1443
        %vm1451 = vmor %vm1449, %vm1450
        %v1452 = vsel %vm1451, %v1443, %v1448
        %v1453 = vmul.f32 %v1436, %v1452
        %v1455 = vperm.slane %v1423, 0
        %v1457 = vmul.f32 %v1453, %v1455
        %v1459 = vperm.slane %v1424, 0
        %v1461 = vadd.f32 %v1457, %v1459
        %v1462 = vpack.c.bf16 %v1461, %v1461
        %v1463 = vld [vmem:[#allocation8] sm:$0xf]
        %v1464 = vld [vmem:[#allocation8 + $0x4] sm:$0xf]
        %v1465 = vld [vmem:[#allocation8 + $0x8] sm:$0xf]
        %v1466 = vld [vmem:[#allocation8 + $0xc] sm:$0xf]
        %v1471 = vunpack.c.l.b16 %v1463
        %v1472 = vunpack.c.l.b16 %v1464
        %v1473 = vunpack.c.l.b16 %v1465
        %v1474 = vunpack.c.l.b16 %v1466
        %v1475 = vpack.c.b16 %v1472, %v1471
        %v1476 = vpack.c.b16 %v1474, %v1473
        %v1480 = vsel %vm1051, %v1462, 0
        %1482 = vmatpush.bf16.msra.mxu0 0
        %1483 = vmatpush.bf16.msra.mxu0 0
        %1484 = vmatpush.bf16.msra.mxu0 0
        %1485 = vmatpush.bf16.msra.mxu0 0
        %1486 = vmatpush.bf16.msra.mxu0 0
        %1487 = vmatpush.bf16.msra.mxu0 0
        %1488 = vmatpush.bf16.msra.mxu0 %v1476
        %1489 = vmatpush.bf16.msra.mxu0 %v1475
        %1490 = vmatmul.bf16.gmra.mxu0 %v1480
        %v1491 = vpop.f32.mrf.mxu0
        %v1492 = vadd.f32 0.0, %v1491
        %v1493 = vpop.f32.mrf.mxu0
        %1494 = vdwg.mxu0
        %v1495 = vld [vmem:[#allocation10] sm:$0xf]
        %v1496 = vld [vmem:[#allocation10 + $0x4] sm:$0xf]
        %v1497 = vld [vmem:[#allocation10 + $0x8] sm:$0xf]
        %v1498 = vld [vmem:[#allocation10 + $0xc] sm:$0xf]
        %v1501 = vunpack.c.l.b16 %v1027
        %v1502 = vunpack.c.l.b16 %v1028
        %v1503 = vpack.c.b16 %v1502, %v1501
        %v1508 = vunpack.c.l.b16 %v1495
        %v1509 = vunpack.c.l.b16 %v1496
        %v1510 = vunpack.c.l.b16 %v1497
        %v1511 = vunpack.c.l.b16 %v1498
        %v1512 = vpack.c.b16 %v1509, %v1508
        %v1513 = vpack.c.b16 %v1511, %v1510
        %v1517 = vsel %vm1051, %v1503, 0
        %1519 = vmatpush.bf16.msra.mxu0 0
        %1520 = vmatpush.bf16.msra.mxu0 0
        %1521 = vmatpush.bf16.msra.mxu0 0
        %1522 = vmatpush.bf16.msra.mxu0 0
        %1523 = vmatpush.bf16.msra.mxu0 0
        %1524 = vmatpush.bf16.msra.mxu0 0
        %1525 = vmatpush.bf16.msra.mxu0 %v1513
        %1526 = vmatpush.bf16.msra.mxu0 %v1512
        %1527 = vmatmul.bf16.gmra.mxu0 %v1517
        %v1528 = vpop.f32.mrf.mxu0
        %v1529 = vadd.f32 0.0, %v1528
        %v1530 = vpop.f32.mrf.mxu0
        %v1531 = vadd.f32 0.0, %v1530
        %1532 = vdwg.mxu0
        %v1533 = vld [vmem:[#allocation11] sm:$0xf]
        %v1534 = vld [vmem:[#allocation11 + $0x4] sm:$0xf]
        %v1535 = vld [vmem:[#allocation11 + $0x8] sm:$0xf]
        %v1536 = vld [vmem:[#allocation11 + $0xc] sm:$0xf]
        %v1541 = vunpack.c.l.b16 %v1533
        %v1542 = vunpack.c.l.b16 %v1534
        %v1543 = vunpack.c.l.b16 %v1535
        %v1544 = vunpack.c.l.b16 %v1536
        %v1545 = vpack.c.b16 %v1542, %v1541
        %v1546 = vpack.c.b16 %v1544, %v1543
        %1549 = vmatpush.bf16.msra.mxu0 0
        %1550 = vmatpush.bf16.msra.mxu0 0
        %1551 = vmatpush.bf16.msra.mxu0 0
        %1552 = vmatpush.bf16.msra.mxu0 0
        %1553 = vmatpush.bf16.msra.mxu0 0
        %1554 = vmatpush.bf16.msra.mxu0 0
        %1555 = vmatpush.bf16.msra.mxu0 %v1546
        %1556 = vmatpush.bf16.msra.mxu0 %v1545
        %1557 = vmatmul.bf16.gmra.mxu0 %v1517
        %v1558 = vpop.f32.mrf.mxu0
        %v1559 = vadd.f32 0.0, %v1558
        %v1560 = vpop.f32.mrf.mxu0
        %v1561 = vadd.f32 0.0, %v1560
        %1562 = vdwg.mxu0
        %1564 = vrot.lane.b32.xlu0 %v1492, 120
        %v1565 = vpop.permute.xlu0 %1564
        %1567 = vrot.lane.b32.xlu0 %v1492, 112
        %v1568 = vpop.permute.xlu0 %1567
        %1570 = vrot.lane.b32.xlu0 %v1492, 104
        %v1571 = vpop.permute.xlu0 %1570
        %v1573 = vpack.c.bf16 %v1492, %v1492
        %v1574 = vpack.c.bf16 %v1565, %v1565
        %v1575 = vpack.c.bf16 %v1568, %v1568
        %v1576 = vpack.c.bf16 %v1571, %v1571
        %1579 = vrot.lane.b32.xlu0 %v1529, 120
        %v1580 = vpop.permute.xlu0 %1579
        %1581 = vrot.lane.b32.xlu0 %v1531, 120
        %v1582 = vpop.permute.xlu0 %1581
        %1585 = vrot.lane.b32.xlu0 %v1529, 112
        %v1586 = vpop.permute.xlu0 %1585
        %1587 = vrot.lane.b32.xlu0 %v1531, 112
        %v1588 = vpop.permute.xlu0 %1587
        %1591 = vrot.lane.b32.xlu0 %v1529, 104
        %v1592 = vpop.permute.xlu0 %1591
        %1593 = vrot.lane.b32.xlu0 %v1531, 104
        %v1594 = vpop.permute.xlu0 %1593
        %v1597 = vpack.c.bf16 %v1529, %v1529
        %v1598 = vpack.c.bf16 %v1531, %v1531
        %v1599 = vpack.c.bf16 %v1580, %v1580
        %v1600 = vpack.c.bf16 %v1582, %v1582
        %v1601 = vpack.c.bf16 %v1586, %v1586
        %v1602 = vpack.c.bf16 %v1588, %v1588
        %v1603 = vpack.c.bf16 %v1592, %v1592
        %v1604 = vpack.c.bf16 %v1594, %v1594
        %1607 = vrot.lane.b32.xlu0 %v1559, 120
        %v1608 = vpop.permute.xlu0 %1607
        %1609 = vrot.lane.b32.xlu0 %v1561, 120
        %v1610 = vpop.permute.xlu0 %1609
        %1613 = vrot.lane.b32.xlu0 %v1559, 112
        %v1614 = vpop.permute.xlu0 %1613
        %1615 = vrot.lane.b32.xlu0 %v1561, 112
        %v1616 = vpop.permute.xlu0 %1615
        %1619 = vrot.lane.b32.xlu0 %v1559, 104
        %v1620 = vpop.permute.xlu0 %1619
        %1621 = vrot.lane.b32.xlu0 %v1561, 104
        %v1622 = vpop.permute.xlu0 %1621
        %v1625 = vpack.c.bf16 %v1559, %v1559
        %v1626 = vpack.c.bf16 %v1561, %v1561
        %v1627 = vpack.c.bf16 %v1608, %v1608
        %v1628 = vpack.c.bf16 %v1610, %v1610
        %v1629 = vpack.c.bf16 %v1614, %v1614
        %v1630 = vpack.c.bf16 %v1616, %v1616
        %v1631 = vpack.c.bf16 %v1620, %v1620
        %v1632 = vpack.c.bf16 %v1622, %v1622
        %v1634 = vperm.slane %v1034, 0
        %v1638 = vunpack.c.l.b16 %v1597
        %v1639 = vunpack.c.l.b16 %v1598
        %v1640 = vpack.c.b16 %v1639, %v1638
        %v1642 = vsel %vm1171, %v1573, 0
        %v1645 = vsel %vm1171, %v1640, 0
        %1647 = vmatpush.bf16.xpose.msra.mxu0 0
        %1648 = vmatpush.bf16.xpose.msra.mxu0 0
        %1649 = vmatpush.bf16.xpose.msra.mxu0 0
        %1650 = vmatpush.bf16.xpose.msra.mxu0 0
        %1651 = vmatpush.bf16.xpose.msra.mxu0 0
        %1652 = vmatpush.bf16.xpose.msra.mxu0 0
        %1653 = vmatpush.bf16.xpose.msra.mxu0 0
        %1654 = vmatpush.bf16.xpose.msra.mxu0 %v1645
        %1655 = vmatmul.bf16.gmra.mxu0 %v1642
        %v1656 = vpop.f32.mrf.mxu0
        %v1657 = vadd.f32 %v1634, %v1656
        %v1658 = vpop.f32.mrf.mxu0
        %1659 = vdwg.mxu0
        %v1662 = vunpack.c.l.b16 %v1599
        %v1663 = vunpack.c.l.b16 %v1600
        %v1664 = vpack.c.b16 %v1663, %v1662
        %v1666 = vsel %vm1171, %v1574, 0
        %v1669 = vsel %vm1171, %v1664, 0
        %1671 = vmatpush.bf16.xpose.msra.mxu0 0
        %1672 = vmatpush.bf16.xpose.msra.mxu0 0
        %1673 = vmatpush.bf16.xpose.msra.mxu0 0
        %1674 = vmatpush.bf16.xpose.msra.mxu0 0
        %1675 = vmatpush.bf16.xpose.msra.mxu0 0
        %1676 = vmatpush.bf16.xpose.msra.mxu0 0
        %1677 = vmatpush.bf16.xpose.msra.mxu0 0
        %1678 = vmatpush.bf16.xpose.msra.mxu0 %v1669
        %1679 = vmatmul.bf16.gmra.mxu0 %v1666
        %v1680 = vpop.f32.mrf.mxu0
        %v1681 = vadd.f32 %v1634, %v1680
        %v1682 = vpop.f32.mrf.mxu0
        %1683 = vdwg.mxu0
        %v1686 = vunpack.c.l.b16 %v1601
        %v1687 = vunpack.c.l.b16 %v1602
        %v1688 = vpack.c.b16 %v1687, %v1686
        %v1690 = vsel %vm1171, %v1575, 0
        %v1693 = vsel %vm1171, %v1688, 0
        %1695 = vmatpush.bf16.xpose.msra.mxu0 0
        %1696 = vmatpush.bf16.xpose.msra.mxu0 0
        %1697 = vmatpush.bf16.xpose.msra.mxu0 0
        %1698 = vmatpush.bf16.xpose.msra.mxu0 0
        %1699 = vmatpush.bf16.xpose.msra.mxu0 0
        %1700 = vmatpush.bf16.xpose.msra.mxu0 0
        %1701 = vmatpush.bf16.xpose.msra.mxu0 0
        %1702 = vmatpush.bf16.xpose.msra.mxu0 %v1693
        %1703 = vmatmul.bf16.gmra.mxu0 %v1690
        %v1704 = vpop.f32.mrf.mxu0
        %v1705 = vadd.f32 %v1634, %v1704
        %v1706 = vpop.f32.mrf.mxu0
        %1707 = vdwg.mxu0
        %v1710 = vunpack.c.l.b16 %v1603
        %v1711 = vunpack.c.l.b16 %v1604
        %v1712 = vpack.c.b16 %v1711, %v1710
        %v1714 = vsel %vm1171, %v1576, 0
        %v1717 = vsel %vm1171, %v1712, 0
        %1719 = vmatpush.bf16.xpose.msra.mxu0 0
        %1720 = vmatpush.bf16.xpose.msra.mxu0 0
        %1721 = vmatpush.bf16.xpose.msra.mxu0 0
        %1722 = vmatpush.bf16.xpose.msra.mxu0 0
        %1723 = vmatpush.bf16.xpose.msra.mxu0 0
        %1724 = vmatpush.bf16.xpose.msra.mxu0 0
        %1725 = vmatpush.bf16.xpose.msra.mxu0 0
        %1726 = vmatpush.bf16.xpose.msra.mxu0 %v1717
        %1727 = vmatmul.bf16.gmra.mxu0 %v1714
        %v1728 = vpop.f32.mrf.mxu0
        %v1729 = vadd.f32 %v1634, %v1728
        %v1730 = vpop.f32.mrf.mxu0
        %1731 = vdwg.mxu0
        %vm1732 = vcmask 97280
        %v1733 = vsel %vm1732, %v1657, -inf
        %1734 = vmax.xlane.f32.xlu0 %v1733
        %v1735 = vpop.xlane.xlu0 %1734
        %v1736 = vsel %vm1732, %v1681, -inf
        %1737 = vmax.xlane.f32.xlu0 %v1736
        %v1738 = vpop.xlane.xlu0 %1737
        %v1739 = vsel %vm1732, %v1705, -inf
        %1740 = vmax.xlane.f32.xlu0 %v1739
        %v1741 = vpop.xlane.xlu0 %1740
        %v1742 = vsel %vm1732, %v1729, -inf
        %1743 = vmax.xlane.f32.xlu0 %v1742
        %v1744 = vpop.xlane.xlu0 %1743
        %v1745 = vsub.f32 %v1657, %v1735
        %v1746 = vsub.f32 %v1681, %v1738
        %v1747 = vsub.f32 %v1705, %v1741
        %v1748 = vsub.f32 %v1729, %v1744
        %v1749 = vmul.f32 %v1745, 1.442695
        %v1750 = vpow.pop %v1749
        %v1751 = vmul.f32 %v1746, 1.442695
        %v1752 = vpow.pop %v1751
        %v1753 = vmul.f32 %v1747, 1.442695
        %v1754 = vpow.pop %v1753
        %v1755 = vmul.f32 %v1748, 1.442695
        %v1756 = vpow.pop %v1755
        %v1757 = vsel %vm1732, %v1750, 0.0
        %1758 = vadd.xlane.f32.xlu0 %v1757
        %v1759 = vpop.xlane.xlu0 %1758
        %v1760 = vsel %vm1732, %v1752, 0.0
        %1761 = vadd.xlane.f32.xlu0 %v1760
        %v1762 = vpop.xlane.xlu0 %1761
        %v1763 = vsel %vm1732, %v1754, 0.0
        %1764 = vadd.xlane.f32.xlu0 %v1763
        %v1765 = vpop.xlane.xlu0 %1764
        %v1766 = vsel %vm1732, %v1756, 0.0
        %1767 = vadd.xlane.f32.xlu0 %v1766
        %v1768 = vpop.xlane.xlu0 %1767
        %v1769 = vrcp.pop %v1759
        %v1770 = vrcp.pop %v1762
        %v1771 = vrcp.pop %v1765
        %v1772 = vrcp.pop %v1768
        %v1773 = vmul.f32 %v1750, %v1769
        %v1774 = vmul.f32 %v1752, %v1770
        %v1775 = vmul.f32 %v1754, %v1771
        %v1776 = vmul.f32 %v1756, %v1772
        %v1777 = vpack.c.bf16 %v1773, %v1773
        %v1778 = vpack.c.bf16 %v1774, %v1774
        %v1779 = vpack.c.bf16 %v1775, %v1775
        %v1780 = vpack.c.bf16 %v1776, %v1776
        %v1783 = vunpack.c.l.b16 %v1625
        %v1784 = vunpack.c.l.b16 %v1626
        %v1785 = vpack.c.b16 %v1784, %v1783
        %v1787 = vsel %vm1732, %v1777, 0
        %vm1789 = vcmask 1045504
        %v1791 = vsel %vm1789, %v1785, 0
        %1793 = vmatpush.bf16.msra.mxu0 0
        %1794 = vmatpush.bf16.msra.mxu0 0
        %1795 = vmatpush.bf16.msra.mxu0 0
        %1796 = vmatpush.bf16.msra.mxu0 0
        %1797 = vmatpush.bf16.msra.mxu0 0
        %1798 = vmatpush.bf16.msra.mxu0 0
        %1799 = vmatpush.bf16.msra.mxu0 0
        %1800 = vmatpush.bf16.msra.mxu0 %v1791
        %1801 = vmatmul.bf16.gmra.mxu0 %v1787
        %v1802 = vpop.f32.mrf.mxu0
        %v1803 = vadd.f32 0.0, %v1802
        %v1804 = vpop.f32.mrf.mxu0
        %1805 = vdwg.mxu0
        %v1808 = vunpack.c.l.b16 %v1627
        %v1809 = vunpack.c.l.b16 %v1628
        %v1810 = vpack.c.b16 %v1809, %v1808
        %v1812 = vsel %vm1732, %v1778, 0
        %v1815 = vsel %vm1789, %v1810, 0
        %1817 = vmatpush.bf16.msra.mxu0 0
        %1818 = vmatpush.bf16.msra.mxu0 0
        %1819 = vmatpush.bf16.msra.mxu0 0
        %1820 = vmatpush.bf16.msra.mxu0 0
        %1821 = vmatpush.bf16.msra.mxu0 0
        %1822 = vmatpush.bf16.msra.mxu0 0
        %1823 = vmatpush.bf16.msra.mxu0 0
        %1824 = vmatpush.bf16.msra.mxu0 %v1815
        %1825 = vmatmul.bf16.gmra.mxu0 %v1812
        %v1826 = vpop.f32.mrf.mxu0
        %v1827 = vadd.f32 0.0, %v1826
        %v1828 = vpop.f32.mrf.mxu0
        %1829 = vdwg.mxu0
        %v1832 = vunpack.c.l.b16 %v1629
        %v1833 = vunpack.c.l.b16 %v1630
        %v1834 = vpack.c.b16 %v1833, %v1832
        %v1836 = vsel %vm1732, %v1779, 0
        %v1839 = vsel %vm1789, %v1834, 0
        %1841 = vmatpush.bf16.msra.mxu0 0
        %1842 = vmatpush.bf16.msra.mxu0 0
        %1843 = vmatpush.bf16.msra.mxu0 0
        %1844 = vmatpush.bf16.msra.mxu0 0
        %1845 = vmatpush.bf16.msra.mxu0 0
        %1846 = vmatpush.bf16.msra.mxu0 0
        %1847 = vmatpush.bf16.msra.mxu0 0
        %1848 = vmatpush.bf16.msra.mxu0 %v1839
        %1849 = vmatmul.bf16.gmra.mxu0 %v1836
        %v1850 = vpop.f32.mrf.mxu0
        %v1851 = vadd.f32 0.0, %v1850
        %v1852 = vpop.f32.mrf.mxu0
        %1853 = vdwg.mxu0
        %v1856 = vunpack.c.l.b16 %v1631
        %v1857 = vunpack.c.l.b16 %v1632
        %v1858 = vpack.c.b16 %v1857, %v1856
        %v1860 = vsel %vm1732, %v1780, 0
        %v1863 = vsel %vm1789, %v1858, 0
        %1865 = vmatpush.bf16.msra.mxu0 0
        %1866 = vmatpush.bf16.msra.mxu0 0
        %1867 = vmatpush.bf16.msra.mxu0 0
        %1868 = vmatpush.bf16.msra.mxu0 0
        %1869 = vmatpush.bf16.msra.mxu0 0
        %1870 = vmatpush.bf16.msra.mxu0 0
        %1871 = vmatpush.bf16.msra.mxu0 0
        %1872 = vmatpush.bf16.msra.mxu0 %v1863
        %1873 = vmatmul.bf16.gmra.mxu0 %v1860
        %v1874 = vpop.f32.mrf.mxu0
        %v1875 = vadd.f32 0.0, %v1874
        %v1876 = vpop.f32.mrf.mxu0
        %1877 = vdwg.mxu0
        %1879 = vrot.lane.b32.xlu0 %v1827, 8
        %v1880 = vpop.permute.xlu0 %1879
        %1883 = vrot.lane.b32.xlu0 %v1851, 16
        %v1884 = vpop.permute.xlu0 %1883
        %1887 = vrot.lane.b32.xlu0 %v1875, 24
        %v1888 = vpop.permute.xlu0 %1887
        %v1890 = vsel %vm1171, %v1803, %v1880
        %v1891 = vsel %vm1386, %v1890, %v1884
        %v1892 = vsel %vm1388, %v1891, %v1888
        %v1893 = vpack.c.bf16 %v1892, %v1892
        %v1894 = vld [vmem:[#allocation13] sm:$0xf]
        %v1895 = vld [vmem:[#allocation13 + $0x4] sm:$0xf]
        %v1896 = vld [vmem:[#allocation13 + $0x8] sm:$0xf]
        %v1897 = vld [vmem:[#allocation13 + $0xc] sm:$0xf]
        %v1902 = vunpack.c.l.b16 %v1894
        %v1903 = vunpack.c.l.b16 %v1895
        %v1904 = vunpack.c.l.b16 %v1896
        %v1905 = vunpack.c.l.b16 %v1897
        %v1906 = vpack.c.b16 %v1903, %v1902
        %v1907 = vpack.c.b16 %v1905, %v1904
        %v1911 = vsel %vm1051, %v1893, 0
        %1913 = vmatpush.bf16.msra.mxu0 0
        %1914 = vmatpush.bf16.msra.mxu0 0
        %1915 = vmatpush.bf16.msra.mxu0 0
        %1916 = vmatpush.bf16.msra.mxu0 0
        %1917 = vmatpush.bf16.msra.mxu0 0
        %1918 = vmatpush.bf16.msra.mxu0 0
        %1919 = vmatpush.bf16.msra.mxu0 %v1907
        %1920 = vmatpush.bf16.msra.mxu0 %v1906
        %1921 = vmatmul.bf16.gmra.mxu0 %v1911
        %v1922 = vpop.f32.mrf.mxu0
        %v1923 = vadd.f32 %v1461, %v1922
        %v1924 = vpop.f32.mrf.mxu0
        %1925 = vdwg.mxu0
        %v1926 = vld [vmem:[%s15] sm:$0x1]
        %v1927 = vld [vmem:[%s16] sm:$0x1]
        %v1928 = vsel %vm1051, %v1923, 0.0
        %1929 = vadd.xlane.f32.xlu0 %v1928
        %v1930 = vpop.xlane.xlu0 %1929
        %v1931 = vmul.f32 %v1930, %v1434
        %v1932 = vsub.f32 %v1923, %v1931
        %v1933 = vmul.f32 %v1932, %v1932
        %v1934 = vsel %vm1051, %v1933, 0.0
        %1935 = vadd.xlane.f32.xlu0 %v1934
        %v1936 = vpop.xlane.xlu0 %1935
        %v1937 = vmul.f32 %v1936, %v1434
        %v1938 = vadd.f32 %v1937, 1e-06
        %v1939 = vrsqrt.pop %v1938
        %v1940 = vmul.f32 %v1939, %v1938
        %v1941 = vmul.f32 %v1940, %v1939
        %v1942 = vmul.f32 0.5, %v1941
        %v1943 = vsub.f32 1.5, %v1942
        %v1944 = vmul.f32 %v1939, %v1943
        %vm1945 = vweird.f32 %v1938
        %vm1946 = vweird.f32 %v1939
        %vm1947 = vmor %vm1945, %vm1946
        %v1948 = vsel %vm1947, %v1939, %v1944
        %v1949 = vmul.f32 %v1932, %v1948
        %v1951 = vperm.slane %v1926, 0
        %v1953 = vmul.f32 %v1949, %v1951
        %v1955 = vperm.slane %v1927, 0
        %v1957 = vadd.f32 %v1953, %v1955
        %v1958 = vpack.c.bf16 %v1957, %v1957
        %v1959 = vld [vmem:[#allocation14] sm:$0xf]
        %v1960 = vld [vmem:[#allocation14 + $0x4] sm:$0xf]
        %v1961 = vld [vmem:[#allocation14 + $0x8] sm:$0xf]
        %v1962 = vld [vmem:[#allocation14 + $0xc] sm:$0xf]
        %v1963 = vld [vmem:[%s18] sm:$0x1]
        %v1965 = vperm.slane %v1963, 0
        %v1971 = vunpack.c.l.b16 %v1959
        %v1972 = vunpack.c.l.b16 %v1960
        %v1973 = vunpack.c.l.b16 %v1961
        %v1974 = vunpack.c.l.b16 %v1962
        %v1975 = vpack.c.b16 %v1972, %v1971
        %v1976 = vpack.c.b16 %v1974, %v1973
        %v1980 = vsel %vm1051, %v1958, 0
        %1982 = vmatpush.bf16.msra.mxu0 0
        %1983 = vmatpush.bf16.msra.mxu0 0
        %1984 = vmatpush.bf16.msra.mxu0 0
        %1985 = vmatpush.bf16.msra.mxu0 0
        %1986 = vmatpush.bf16.msra.mxu0 0
        %1987 = vmatpush.bf16.msra.mxu0 0
        %1988 = vmatpush.bf16.msra.mxu0 %v1976
        %1989 = vmatpush.bf16.msra.mxu0 %v1975
        %1990 = vmatmul.bf16.gmra.mxu0 %v1980
        %v1991 = vpop.f32.mrf.mxu0
        %v1992 = vadd.f32 %v1965, %v1991
        %v1993 = vpop.f32.mrf.mxu0
        %1994 = vdwg.mxu0
        %v1995 = vmax.f32 %v1992, 0.0
        %v1996 = vpack.c.bf16 %v1995, %v1995
        %v1997 = vld [vmem:[%s19] sm:$0xf]
        %v1998 = vld [vmem:[%s19 + $0x4] sm:$0xf]
        %v1999 = vld [vmem:[%s19 + $0x8] sm:$0xf]
        %v2000 = vld [vmem:[%s19 + $0xc] sm:$0xf]
        %v2001 = vld [vmem:[%s19 + $0x10] sm:$0xf]
        %v2002 = vld [vmem:[%s19 + $0x14] sm:$0xf]
        %v2003 = vld [vmem:[%s19 + $0x18] sm:$0xf]
        %v2004 = vld [vmem:[%s19 + $0x1c] sm:$0xf]
        %v2005 = vld [vmem:[%s20] sm:$0x1]
        %v2007 = vperm.slane %v2005, 0
        %v2017 = vunpack.c.l.b16 %v1997
        %v2018 = vunpack.c.l.b16 %v1998
        %v2019 = vunpack.c.l.b16 %v1999
        %v2020 = vunpack.c.l.b16 %v2000
        %v2021 = vunpack.c.l.b16 %v2001
        %v2022 = vunpack.c.l.b16 %v2002
        %v2023 = vunpack.c.l.b16 %v2003
        %v2024 = vunpack.c.l.b16 %v2004
        %v2025 = vpack.c.b16 %v2018, %v2017
        %v2026 = vpack.c.b16 %v2020, %v2019
        %v2027 = vpack.c.b16 %v2022, %v2021
        %v2028 = vpack.c.b16 %v2024, %v2023
        %vm2033 = vcmask 523264
        %v2035 = vsel %vm2033, %v1996, 0
        %2037 = vmatpush.bf16.msra.mxu0 0
        %2038 = vmatpush.bf16.msra.mxu0 0
        %2039 = vmatpush.bf16.msra.mxu0 0
        %2040 = vmatpush.bf16.msra.mxu0 0
        %2041 = vmatpush.bf16.msra.mxu0 %v2028
        %2042 = vmatpush.bf16.msra.mxu0 %v2027
        %2043 = vmatpush.bf16.msra.mxu0 %v2026
        %2044 = vmatpush.bf16.msra.mxu0 %v2025
        %2045 = vmatmul.bf16.gmra.mxu0 %v2035
        %v2046 = vpop.f32.mrf.mxu0
        %v2047 = vadd.f32 %v2007, %v2046
        %v2048 = vpop.f32.mrf.mxu0
        %2049 = vdwg.mxu0
        %v2050 = vadd.f32 %v2047, %v1957
        %v2051 = vld [vmem:[%s21] sm:$0x1]
        %v2052 = vld [vmem:[%s22] sm:$0x1]
        %v2053 = vsel %vm1051, %v2050, 0.0
        %2054 = vadd.xlane.f32.xlu0 %v2053
        %v2055 = vpop.xlane.xlu0 %2054
        %v2056 = vmul.f32 %v2055, %v1434
        %v2057 = vsub.f32 %v2050, %v2056
        %v2058 = vmul.f32 %v2057, %v2057
        %v2059 = vsel %vm1051, %v2058, 0.0
        %2060 = vadd.xlane.f32.xlu0 %v2059
        %v2061 = vpop.xlane.xlu0 %2060
        %v2062 = vmul.f32 %v2061, %v1434
        %v2063 = vadd.f32 %v2062, 1e-06
        %v2064 = vrsqrt.pop %v2063
        %v2065 = vmul.f32 %v2064, %v2063
        %v2066 = vmul.f32 %v2065, %v2064
        %v2067 = vmul.f32 0.5, %v2066
        %v2068 = vsub.f32 1.5, %v2067
        %v2069 = vmul.f32 %v2064, %v2068
        %vm2070 = vweird.f32 %v2063
        %vm2071 = vweird.f32 %v2064
        %vm2072 = vmor %vm2070, %vm2071
        %v2073 = vsel %vm2072, %v2064, %v2069
        %v2074 = vmul.f32 %v2057, %v2073
        %v2076 = vperm.slane %v2051, 0
        %v2078 = vmul.f32 %v2074, %v2076
        %v2080 = vperm.slane %v2052, 0
        %v2082 = vadd.f32 %v2078, %v2080
        %2083 = vst.msk [vmem:[%s996] sm:$0xff] %vm1051, %v2082
        %vm2084 = vcmask 60416
        %2085 = vst.msk [vmem:[%s1003] sm:$0xf] %vm2084, %v1292
        %2086 = vst.msk [vmem:[%s1003 + $0x4] sm:$0xf] %vm2084, %v1293
        %2087 = vst.msk [vmem:[%s1003 + $0x8] sm:$0xf] %vm2084, %v1294
        %2088 = vst.msk [vmem:[%s1003 + $0xc] sm:$0xf] %vm2084, %v1295
        %vm2089 = vcmask 93184
        %2090 = vst.msk [vmem:[%s1010] sm:$0xf] %vm2089, %v1777
        %2091 = vst.msk [vmem:[%s1010 + $0x4] sm:$0xf] %vm2089, %v1778
        %2092 = vst.msk [vmem:[%s1010 + $0x8] sm:$0xf] %vm2089, %v1779
        %2093 = vst.msk [vmem:[%s1010 + $0xc] sm:$0xf] %vm2089, %v1780
        %s2094 = sand.u32 %s586, 1
        %s2095 = scalar_lea.sflag [#allocation4], %s2094
        %s2096 = sand.u32 %s586, 1
        %s2097 = smul.addr %s2096, 8
        %s2098 = scalar_lea.vmem [#allocation16], %s2097
        %s2099 = sand.u32 %s52, 1
        %s2100 = scalar_lea.sflag [#allocation18], %s2099
        %s2101 = sand.u32 %s614, 1
        %s2102 = smul.addr %s2101, 16
        %s2103 = scalar_lea.vmem [#allocation17], %s2102
        %s2104 = sand.u32 %s52, 1
        %s2105 = scalar_lea.sflag [#allocation18], %s2104
        %s2106 = sand.u32 %s642, 1
        %s2107 = smul.addr %s2106, 16
        %s2108 = scalar_lea.vmem [#allocation19], %s2107
        // Predicated region
        $region145: #{tpu_custom_call.1} parent=111 // pred_check
          %p2109 = pneg %p596
        $region146: #{tpu_custom_call.1} parent=111 // pred_check_branch
          %2111 = sbr.rel (%p2109) target = $region148
        $region147: #{tpu_custom_call.1} parent=111 // pred_region
          %2113 = vsyncadd %s2095, 0
          %s2114 = sadd.s32 %s57, %s56
          %s2115 = smul.addr %s2114, 8
          %s2116 = scalar_lea.hbm %s23, %s2115
          %s2118 = sshll.u32 %s2098, 4
          %s2119 = int_to_ptr.vmem [resolvable:$true] %s2118
          %s2120 = sshll.u32 %s2116, 4
          %s2121 = int_to_ptr.hbm [resolvable:$true] %s2120
          %2123 = dma.vmem_to_hbm [thread:$0]  %s2119, 128, %s2121, %s2095
        $region148: #{tpu_custom_call.1} parent=111 // pred_fallthru
          _
        // Predicated region
        $region149: #{tpu_custom_call.1} parent=111 // pred_check
          %p2124 = pneg %p624
        $region150: #{tpu_custom_call.1} parent=111 // pred_check_branch
          %2126 = sbr.rel (%p2124) target = $region152
        $region151: #{tpu_custom_call.1} parent=111 // pred_region
          %2128 = vsyncadd %s2100, 0
          %s2129 = smul.addr %s56, 4
          %s2130 = sadd.s32 %s57, %s2129
          %s2131 = smul.addr %s2130, 4
          %s2132 = scalar_lea.hbm %s24, %s2131
          %s2133 = sshll.u32 %s2103, 4
          %s2134 = int_to_ptr.vmem [resolvable:$true] %s2133
          %s2135 = sshll.u32 %s2132, 4
          %s2136 = int_to_ptr.hbm [resolvable:$true] %s2135
          %2141 = dma.vmem_to_hbm [thread:$0]  %s2134, 256, %s2136, %s2100, 64, 64, 4
        $region152: #{tpu_custom_call.1} parent=111 // pred_fallthru
          _
        // Predicated region
        $region153: #{tpu_custom_call.1} parent=111 // pred_check
          %p2142 = pneg %p652
        $region154: #{tpu_custom_call.1} parent=111 // pred_check_branch
          %2144 = sbr.rel (%p2142) target = $region156
        $region155: #{tpu_custom_call.1} parent=111 // pred_region
          %2146 = vsyncadd %s2105, 0
          %s2147 = smul.addr %s56, 4
          %s2148 = sadd.s32 %s57, %s2147
          %s2149 = smul.addr %s2148, 4
          %s2150 = scalar_lea.hbm %s25, %s2149
          %s2151 = sshll.u32 %s2108, 4
          %s2152 = int_to_ptr.vmem [resolvable:$true] %s2151
          %s2153 = sshll.u32 %s2150, 4
          %s2154 = int_to_ptr.hbm [resolvable:$true] %s2153
          %2159 = dma.vmem_to_hbm [thread:$0]  %s2152, 256, %s2154, %s2105, 64, 64, 4
        $region156: #{tpu_custom_call.1} parent=111 // pred_fallthru
          _
      $region112: #{tpu_custom_call.1} parent=5 // pred_fallthru
        _
      %p2160 = scmp.le.s32.totalorder 2, %s47
      // Predicated region
      $region157: #{tpu_custom_call.1} parent=5 // pred_check
        %p2161 = pneg %p2160
      $region158: #{tpu_custom_call.1} parent=5 // pred_check_branch
        %2163 = sbr.rel (%p2161) target = $region160
      $region159: #{tpu_custom_call.1} parent=5 // pred_region
        %s2164 = ssub.s32 %s47, 2
        // Predicated region
        $region161: #{tpu_custom_call.1} parent=159 // pred_check
          %p2165 = pneg %p602
        $region162: #{tpu_custom_call.1} parent=159 // pred_check_branch
          %2167 = sbr.rel (%p2165) target = $region164
        $region163: #{tpu_custom_call.1} parent=159 // pred_region
          %s2168 = sand.u32 %s587, 1
          %s2169 = scalar_lea.sflag [#allocation4], %s2168
          %s2170 = sand.u32 %s587, 1
          %s2171 = smul.addr %s2170, 8
          %s2172 = scalar_lea.vmem [#allocation16], %s2171
          %2174 = dma.done %s2169, 128
        $region164: #{tpu_custom_call.1} parent=159 // pred_fallthru
          _
        // Predicated region
        $region165: #{tpu_custom_call.1} parent=159 // pred_check
          %p2175 = pneg %p630
        $region166: #{tpu_custom_call.1} parent=159 // pred_check_branch
          %2177 = sbr.rel (%p2175) target = $region168
        $region167: #{tpu_custom_call.1} parent=159 // pred_region
          %s2178 = sand.u32 %s53, 1
          %s2179 = scalar_lea.sflag [#allocation18], %s2178
          %s2180 = sand.u32 %s615, 1
          %s2181 = smul.addr %s2180, 16
          %s2182 = scalar_lea.vmem [#allocation17], %s2181
          %2184 = dma.done %s2179, 256
        $region168: #{tpu_custom_call.1} parent=159 // pred_fallthru
          _
        // Predicated region
        $region169: #{tpu_custom_call.1} parent=159 // pred_check
          %p2185 = pneg %p658
        $region170: #{tpu_custom_call.1} parent=159 // pred_check_branch
          %2187 = sbr.rel (%p2185) target = $region172
        $region171: #{tpu_custom_call.1} parent=159 // pred_region
          %s2188 = sand.u32 %s53, 1
          %s2189 = scalar_lea.sflag [#allocation18], %s2188
          %s2190 = sand.u32 %s643, 1
          %s2191 = smul.addr %s2190, 16
          %s2192 = scalar_lea.vmem [#allocation19], %s2191
          %2194 = dma.done %s2189, 256
        $region172: #{tpu_custom_call.1} parent=159 // pred_fallthru
          _
      $region160: #{tpu_custom_call.1} parent=5 // pred_fallthru
        _
    $region6: #{tpu_custom_call.1} parent=1 // loop_footer
      %s51 = sadd.s32 1, %s47
    $region7: #{tpu_custom_call.1} parent=1 // loop_footer_branch
      %46 = sbr.rel target = $region3
    $region8: #{tpu_custom_call.1} parent=1 // loop_exit
      _
    %2195 = vsyncpa [#allocation3], 1
    %s2196 = scalar_lea.sflag [#allocation3], 1
    %2197 = vsyncpa %s2196, 1
    %2198 = vsyncpa [#allocation6], 1
    %s2199 = scalar_lea.sflag [#allocation6], 1
    %2200 = vsyncpa %s2199, 1
    %2201 = vsyncpa [#allocation9], 1
    %2202 = vsyncpa [#allocation12], 1
    %2203 = vsyncpa [#allocation15], 1
    %2204 = vsyncpa [#allocation4], 1
    %s2205 = scalar_lea.sflag [#allocation4], 1
    %2206 = vsyncpa %s2205, 1
    %2207 = vsyncpa [#allocation18], 1
    %s2208 = scalar_lea.sflag [#allocation18], 1
    %2209 = vsyncpa %s2208, 1

// kernel: tpu_custom_call.1
$region0: #{tpu_custom_call.1}
  #allocation0 [shape = 'u32[]', space=smem, size = 0x4, offset = 0x4, fixed_abs, tag = 'smem constant byte address 0x4 - core index']
  #allocation1 [shape = 'u32[72,128]{1,0:T(1,128)}', space=vmem, size = 0x9000, scoped, tag = 'internal scratch']
  %s0 = inlined_call_operand.hbm [shape: bf16[2,8,32], index: 0, kind: input, shape index: {}]
  %s1 = inlined_call_operand.hbm [shape: bf16[2,8,32], index: 1, kind: input, shape index: {}]
  %s2 = inlined_call_operand.vmem [shape: bf16[2,12,32], index: 2, kind: input, shape index: {}]
  %s3 = inlined_call_operand.vmem [shape: f32[2,8,8], index: 3, kind: input, shape index: {}]
  %s4 = inlined_call_operand.hbm [shape: f32[2,1,12], index: 4, kind: input, shape index: {}]
  %s5 = inlined_call_operand.vmem [shape: bf16[32,32], index: 5, kind: input, shape index: {}]
  %s6 = inlined_call_operand.vmem [shape: bf16[32,32], index: 6, kind: input, shape index: {}]
  %s7 = inlined_call_operand.vmem [shape: bf16[32,32], index: 7, kind: input, shape index: {}]
  %s8 = inlined_call_operand.vmem [shape: bf16[32,32], index: 8, kind: input, shape index: {}]
  %s9 = inlined_call_operand.vmem [shape: f32[1,32], index: 9, kind: input, shape index: {}]
  %s10 = inlined_call_operand.vmem [shape: f32[1,32], index: 10, kind: input, shape index: {}]
  %s11 = inlined_call_operand.hbm [shape: bf16[32,32], index: 11, kind: input, shape index: {}]
  %s12 = inlined_call_operand.hbm [shape: bf16[32,32], index: 12, kind: input, shape index: {}]
  %s13 = inlined_call_operand.hbm [shape: bf16[32,32], index: 13, kind: input, shape index: {}]
  %s14 = inlined_call_operand.hbm [shape: bf16[32,32], index: 14, kind: input, shape index: {}]
  %s15 = inlined_call_operand.vmem [shape: f32[1,32], index: 15, kind: input, shape index: {}]
  %s16 = inlined_call_operand.vmem [shape: f32[1,32], index: 16, kind: input, shape index: {}]
  %s17 = inlined_call_operand.hbm [shape: bf16[32,64], index: 17, kind: input, shape index: {}]
  %s18 = inlined_call_operand.vmem [shape: f32[1,64], index: 18, kind: input, shape index: {}]
  %s19 = inlined_call_operand.vmem [shape: bf16[64,32], index: 19, kind: input, shape index: {}]
  %s20 = inlined_call_operand.vmem [shape: f32[1,32], index: 20, kind: input, shape index: {}]
  %s21 = inlined_call_operand.vmem [shape: f32[1,32], index: 21, kind: input, shape index: {}]
  %s22 = inlined_call_operand.vmem [shape: f32[1,32], index: 22, kind: input, shape index: {}]
  %s23 = inlined_call_operand.hbm [shape: f32[2,8,32], index: 23, kind: output, shape index: {0}]
  %s24 = inlined_call_operand.hbm [shape: bf16[2,4,8,8], index: 24, kind: output, shape index: {1}]
  %s25 = inlined_call_operand.hbm [shape: bf16[2,4,8,12], index: 25, kind: output, shape index: {2}]
  %26 = xla_tuple %s23, %s24, %s25
  %s27 = sld [smem:[#allocation0]]
  $region173: #{tpu_custom_call.1} parent=0
    _
  %s29 = ssub.s32 1, %s27
  %s30 = scalar_select 0, %s29, %s27
  $region1: #{tpu_custom_call.1} parent=0
    #allocation2 [shape = 'u8[4096]{0}', space=vmem, size = 0x1000, scoped, tag = 'input window, operand 0']
    #allocation3 [shape = 's32[2]{0}', space=sflag, size = 0x8, scoped, tag = 'scoped memory for tpu_custom_call.1']
    #allocation4 [shape = 's32[2]{0}', space=sflag, size = 0x8, scoped, tag = 'scoped memory for tpu_custom_call.1']
    #allocation5 [shape = 'u8[4096]{0}', space=vmem, size = 0x1000, scoped, tag = 'input window, operand 1']
    #allocation6 [shape = 's32[2]{0}', space=sflag, size = 0x8, scoped, tag = 'scoped memory for tpu_custom_call.1']
    #allocation7 [shape = 'u8[1024]{0}', space=vmem, size = 0x400, scoped, tag = 'input window, operand 4']
    #allocation8 [shape = 'u8[8192]{0}', space=vmem, size = 0x2000, scoped, tag = 'input window, operand 11, single buffered']
    #allocation9 [shape = 's32[1]{0}', space=sflag, size = 0x4, scoped, tag = 'scoped memory for tpu_custom_call.1']
    #allocation10 [shape = 'u8[8192]{0}', space=vmem, size = 0x2000, scoped, tag = 'input window, operand 12, single buffered']
    #allocation11 [shape = 'u8[8192]{0}', space=vmem, size = 0x2000, scoped, tag = 'input window, operand 13, single buffered']
    #allocation12 [shape = 's32[1]{0}', space=sflag, size = 0x4, scoped, tag = 'scoped memory for tpu_custom_call.1']
    #allocation13 [shape = 'u8[8192]{0}', space=vmem, size = 0x2000, scoped, tag = 'input window, operand 14, single buffered']
    #allocation14 [shape = 'u8[8192]{0}', space=vmem, size = 0x2000, scoped, tag = 'input window, operand 17, single buffered']
    #allocation15 [shape = 's32[1]{0}', space=sflag, size = 0x4, scoped, tag = 'scoped memory for tpu_custom_call.1']
    #allocation16 [shape = 'u8[8192]{0}', space=vmem, size = 0x2000, scoped, tag = 'output window, operand 0']
    #allocation17 [shape = 'u8[16384]{0}', space=vmem, size = 0x4000, scoped, tag = 'output window, operand 1']
    #allocation18 [shape = 's32[2]{0}', space=sflag, size = 0x8, scoped, tag = 'scoped memory for tpu_custom_call.1']
    #allocation19 [shape = 'u8[16384]{0}', space=vmem, size = 0x4000, scoped, tag = 'output window, operand 2']
    %31 = vsyncpa [#allocation3], 0
    %s32 = scalar_lea.sflag [#allocation3], 1
    %33 = vsyncpa %s32, 0
    %34 = vsyncpa [#allocation6], 0
    %s35 = scalar_lea.sflag [#allocation6], 1
    %36 = vsyncpa %s35, 0
    %37 = vsyncpa [#allocation9], 0
    %38 = vsyncpa [#allocation12], 0
    %39 = vsyncpa [#allocation15], 0
    %40 = vsyncpa [#allocation4], 0
    %s41 = scalar_lea.sflag [#allocation4], 1
    %42 = vsyncpa %s41, 0
    %43 = vsyncpa [#allocation18], 0
    %s44 = scalar_lea.sflag [#allocation18], 1
    %45 = vsyncpa %s44, 0
    loop: start=0, step=1, limit=4
    $region2: #{tpu_custom_call.1} parent=1 // loop_pre_header
      _
    $region3: #{tpu_custom_call.1} parent=1 // loop_header
      %s47 = sphi 0, %s51
      %p48 = scmp.ge.s32.totalorder %s47, 4
      %s54 = sphi 0, %s66
      %s55 = sphi 0, %s62
      %s56 = sphi 0, %s54
      %s57 = sphi 0, %s55
      %s58 = sphi 0, %s56
      %s59 = sphi 0, %s57
      %s71 = sphi 0, %s73
      %s74 = sphi 0, %s71
      %s75 = sphi 0, %s74
      %s91 = sphi 0, %s75
      %s97 = sphi 0, %s99
      %s100 = sphi 0, %s97
      %s101 = sphi 0, %s100
      %s117 = sphi 0, %s101
      %s123 = sphi 0, %s125
      %s126 = sphi 0, %s123
      %s127 = sphi 0, %s126
      %s143 = sphi 0, %s127
      %s151 = sphi 0, %s153
      %s154 = sphi 0, %s151
      %s155 = sphi 0, %s154
      %s171 = sphi 0, %s155
      %s177 = sphi 0, %s179
      %s180 = sphi 0, %s177
      %s181 = sphi 0, %s180
      %s197 = sphi 0, %s181
      %s201 = sphi 0, %s201
      %s203 = sphi 0, %s201
      %s204 = sphi 0, %s203
      %s218 = sphi 0, %s204
      %s222 = sphi 0, %s222
      %s224 = sphi 0, %s222
      %s225 = sphi 0, %s224
      %s239 = sphi 0, %s225
      %s243 = sphi 0, %s243
      %s245 = sphi 0, %s243
      %s246 = sphi 0, %s245
      %s260 = sphi 0, %s246
      %s264 = sphi 0, %s264
      %s266 = sphi 0, %s264
      %s267 = sphi 0, %s266
      %s281 = sphi 0, %s267
      %s285 = sphi 0, %s285
      %s287 = sphi 0, %s285
      %s288 = sphi 0, %s287
      %s302 = sphi 0, %s288
      %s306 = sphi 0, %s306
      %s308 = sphi 0, %s306
      %s309 = sphi 0, %s308
      %s323 = sphi 0, %s309
      %s327 = sphi 0, %s327
      %s329 = sphi 0, %s327
      %s330 = sphi 0, %s329
      %s344 = sphi 0, %s330
      %s348 = sphi 0, %s348
      %s350 = sphi 0, %s348
      %s351 = sphi 0, %s350
      %s365 = sphi 0, %s351
      %s369 = sphi 0, %s369
      %s371 = sphi 0, %s369
      %s372 = sphi 0, %s371
      %s386 = sphi 0, %s372
      %s390 = sphi 0, %s390
      %s392 = sphi 0, %s390
      %s393 = sphi 0, %s392
      %s407 = sphi 0, %s393
      %s411 = sphi 0, %s411
      %s413 = sphi 0, %s411
      %s414 = sphi 0, %s413
      %s428 = sphi 0, %s414
      %s432 = sphi 0, %s432
      %s434 = sphi 0, %s432
      %s435 = sphi 0, %s434
      %s449 = sphi 0, %s435
      %s453 = sphi 0, %s453
      %s455 = sphi 0, %s453
      %s456 = sphi 0, %s455
      %s470 = sphi 0, %s456
      %s474 = sphi 0, %s474
      %s476 = sphi 0, %s474
      %s477 = sphi 0, %s476
      %s491 = sphi 0, %s477
      %s495 = sphi 0, %s495
      %s497 = sphi 0, %s495
      %s498 = sphi 0, %s497
      %s512 = sphi 0, %s498
      %s516 = sphi 0, %s516
      %s518 = sphi 0, %s516
      %s519 = sphi 0, %s518
      %s533 = sphi 0, %s519
      %s537 = sphi 0, %s537
      %s539 = sphi 0, %s537
      %s540 = sphi 0, %s539
      %s554 = sphi 0, %s540
      %s558 = sphi 0, %s558
      %s560 = sphi 0, %s558
      %s561 = sphi 0, %s560
      %s575 = sphi 0, %s561
      %s583 = sphi 0, %s585
      %s586 = sphi 0, %s583
      %s587 = sphi 0, %s586
      %s603 = sphi 0, %s587
      %s611 = sphi 0, %s613
      %s614 = sphi 0, %s611
      %s615 = sphi 0, %s614
      %s631 = sphi 0, %s615
      %s639 = sphi 0, %s641
      %s642 = sphi 0, %s639
      %s643 = sphi 0, %s642
      %s659 = sphi 0, %s643
    $region4: #{tpu_custom_call.1} parent=1 // loop_header_branch
      %50 = sbr.rel (%p48) target = $region8
    $region5: #{tpu_custom_call.1} parent=1 // loop_body
      %s52 = ssub.s32 %s47, 1
      %s53 = ssub.s32 %s47, 2
      %s60 = sadd.s32 1, %s55
      %p61 = scmp.ge.s32.totalorder %s60, 1
      %s62 = scalar_select %p61, 0, %s60
      %s63 = sadd.s32 1, %s54
      %s64 = scalar_select %p61, %s63, %s54
      %p65 = scmp.ge.s32.totalorder %s64, 2
      %s66 = scalar_select %p65, 0, %s64
      %s67 = ssub.s32 %s54, %s66
      %s68 = ssub.s32 %s55, %s62
      %s69 = sor.u32 %s67, %s68
      %p70 = scmp.eq.s32.totalorder %s69, 0
      %s72 = sadd.s32 %s71, 1
      %s73 = scalar_select %p70, %s71, %s72
      %p76 = pneg %p70
      %p77 = scmp.eq.s32.totalorder %s47, 1
      %p78 = por %p76, %p77
      %p79 = scmp.ne.s32.totalorder %s71, %s74
      %p80 = scmp.eq.s32.totalorder %s47, 0
      %p81 = por %p79, %p80
      %p82 = scmp.ne.s32.totalorder %s71, %s74
      %p83 = scmp.eq.s32.totalorder %s52, 1
      %p84 = por %p82, %p83
      %p85 = scmp.ne.s32.totalorder %s74, %s75
      %p86 = scmp.eq.s32.totalorder %s52, 0
      %p87 = por %p85, %p86
      %p88 = scmp.ne.s32.totalorder %s74, %s75
      %p89 = scmp.eq.s32.totalorder %s53, 1
      %p90 = por %p88, %p89
      %p92 = scmp.ne.s32.totalorder %s75, %s91
      %p93 = scmp.eq.s32.totalorder %s53, 0
      %p94 = por %p92, %p93
      %s95 = ssub.s32 %s54, %s66
      %p96 = scmp.eq.s32.totalorder %s95, 0
      %s98 = sadd.s32 %s97, 1
      %s99 = scalar_select %p96, %s97, %s98
      %p102 = pneg %p96
      %p103 = scmp.eq.s32.totalorder %s47, 1
      %p104 = por %p102, %p103
      %p105 = scmp.ne.s32.totalorder %s97, %s100
      %p106 = scmp.eq.s32.totalorder %s47, 0
      %p107 = por %p105, %p106
      %p108 = scmp.ne.s32.totalorder %s97, %s100
      %p109 = scmp.eq.s32.totalorder %s52, 1
      %p110 = por %p108, %p109
      %p111 = scmp.ne.s32.totalorder %s100, %s101
      %p112 = scmp.eq.s32.totalorder %s52, 0
      %p113 = por %p111, %p112
      %p114 = scmp.ne.s32.totalorder %s100, %s101
      %p115 = scmp.eq.s32.totalorder %s53, 1
      %p116 = por %p114, %p115
      %p118 = scmp.ne.s32.totalorder %s101, %s117
      %p119 = scmp.eq.s32.totalorder %s53, 0
      %p120 = por %p118, %p119
      %s121 = ssub.s32 %s54, %s66
      %p122 = scmp.eq.s32.totalorder %s121, 0
      %s124 = sadd.s32 %s123, 1
      %s125 = scalar_select %p122, %s123, %s124
      %p128 = pneg %p122
      %p129 = scmp.eq.s32.totalorder %s47, 1
      %p130 = por %p128, %p129
      %p131 = scmp.ne.s32.totalorder %s123, %s126
      %p132 = scmp.eq.s32.totalorder %s47, 0
      %p133 = por %p131, %p132
      %p134 = scmp.ne.s32.totalorder %s123, %s126
      %p135 = scmp.eq.s32.totalorder %s52, 1
      %p136 = por %p134, %p135
      %p137 = scmp.ne.s32.totalorder %s126, %s127
      %p138 = scmp.eq.s32.totalorder %s52, 0
      %p139 = por %p137, %p138
      %p140 = scmp.ne.s32.totalorder %s126, %s127
      %p141 = scmp.eq.s32.totalorder %s53, 1
      %p142 = por %p140, %p141
      %p144 = scmp.ne.s32.totalorder %s127, %s143
      %p145 = scmp.eq.s32.totalorder %s53, 0
      %p146 = por %p144, %p145
      %s147 = ssub.s32 %s54, %s66
      %s148 = ssub.s32 %s55, %s62
      %s149 = sor.u32 %s147, %s148
      %p150 = scmp.eq.s32.totalorder %s149, 0
      %s152 = sadd.s32 %s151, 1
      %s153 = scalar_select %p150, %s151, %s152
      %p156 = pneg %p150
      %p157 = scmp.eq.s32.totalorder %s47, 1
      %p158 = por %p156, %p157
      %p159 = scmp.ne.s32.totalorder %s151, %s154
      %p160 = scmp.eq.s32.totalorder %s47, 0
      %p161 = por %p159, %p160
      %p162 = scmp.ne.s32.totalorder %s151, %s154
      %p163 = scmp.eq.s32.totalorder %s52, 1
      %p164 = por %p162, %p163
      %p165 = scmp.ne.s32.totalorder %s154, %s155
      %p166 = scmp.eq.s32.totalorder %s52, 0
      %p167 = por %p165, %p166
      %p168 = scmp.ne.s32.totalorder %s154, %s155
      %p169 = scmp.eq.s32.totalorder %s53, 1
      %p170 = por %p168, %p169
      %p172 = scmp.ne.s32.totalorder %s155, %s171
      %p173 = scmp.eq.s32.totalorder %s53, 0
      %p174 = por %p172, %p173
      %s175 = ssub.s32 %s54, %s66
      %p176 = scmp.eq.s32.totalorder %s175, 0
      %s178 = sadd.s32 %s177, 1
      %s179 = scalar_select %p176, %s177, %s178
      %p182 = pneg %p176
      %p183 = scmp.eq.s32.totalorder %s47, 1
      %p184 = por %p182, %p183
      %p185 = scmp.ne.s32.totalorder %s177, %s180
      %p186 = scmp.eq.s32.totalorder %s47, 0
      %p187 = por %p185, %p186
      %p188 = scmp.ne.s32.totalorder %s177, %s180
      %p189 = scmp.eq.s32.totalorder %s52, 1
      %p190 = por %p188, %p189
      %p191 = scmp.ne.s32.totalorder %s180, %s181
      %p192 = scmp.eq.s32.totalorder %s52, 0
      %p193 = por %p191, %p192
      %p194 = scmp.ne.s32.totalorder %s180, %s181
      %p195 = scmp.eq.s32.totalorder %s53, 1
      %p196 = por %p194, %p195
      %p198 = scmp.ne.s32.totalorder %s181, %s197
      %p199 = scmp.eq.s32.totalorder %s53, 0
      %p200 = por %p198, %p199
      %s202 = sadd.s32 %s201, 1
      %p205 = scmp.eq.s32.totalorder %s47, 1
      %p206 = scmp.ne.s32.totalorder %s201, %s203
      %p207 = scmp.eq.s32.totalorder %s47, 0
      %p208 = por %p206, %p207
      %p209 = scmp.ne.s32.totalorder %s201, %s203
      %p210 = scmp.eq.s32.totalorder %s52, 1
      %p211 = por %p209, %p210
      %p212 = scmp.ne.s32.totalorder %s203, %s204
      %p213 = scmp.eq.s32.totalorder %s52, 0
      %p214 = por %p212, %p213
      %p215 = scmp.ne.s32.totalorder %s203, %s204
      %p216 = scmp.eq.s32.totalorder %s53, 1
      %p217 = por %p215, %p216
      %p219 = scmp.ne.s32.totalorder %s204, %s218
      %p220 = scmp.eq.s32.totalorder %s53, 0
      %p221 = por %p219, %p220
      %s223 = sadd.s32 %s222, 1
      %p226 = scmp.eq.s32.totalorder %s47, 1
      %p227 = scmp.ne.s32.totalorder %s222, %s224
      %p228 = scmp.eq.s32.totalorder %s47, 0
      %p229 = por %p227, %p228
      %p230 = scmp.ne.s32.totalorder %s222, %s224
      %p231 = scmp.eq.s32.totalorder %s52, 1
      %p232 = por %p230, %p231
      %p233 = scmp.ne.s32.totalorder %s224, %s225
      %p234 = scmp.eq.s32.totalorder %s52, 0
      %p235 = por %p233, %p234
      %p236 = scmp.ne.s32.totalorder %s224, %s225
      %p237 = scmp.eq.s32.totalorder %s53, 1
      %p238 = por %p236, %p237
      %p240 = scmp.ne.s32.totalorder %s225, %s239
      %p241 = scmp.eq.s32.totalorder %s53, 0
      %p242 = por %p240, %p241
      %s244 = sadd.s32 %s243, 1
      %p247 = scmp.eq.s32.totalorder %s47, 1
      %p248 = scmp.ne.s32.totalorder %s243, %s245
      %p249 = scmp.eq.s32.totalorder %s47, 0
      %p250 = por %p248, %p249
      %p251 = scmp.ne.s32.totalorder %s243, %s245
      %p252 = scmp.eq.s32.totalorder %s52, 1
      %p253 = por %p251, %p252
      %p254 = scmp.ne.s32.totalorder %s245, %s246
      %p255 = scmp.eq.s32.totalorder %s52, 0
      %p256 = por %p254, %p255
      %p257 = scmp.ne.s32.totalorder %s245, %s246
      %p258 = scmp.eq.s32.totalorder %s53, 1
      %p259 = por %p257, %p258
      %p261 = scmp.ne.s32.totalorder %s246, %s260
      %p262 = scmp.eq.s32.totalorder %s53, 0
      %p263 = por %p261, %p262
      %s265 = sadd.s32 %s264, 1
      %p268 = scmp.eq.s32.totalorder %s47, 1
      %p269 = scmp.ne.s32.totalorder %s264, %s266
      %p270 = scmp.eq.s32.totalorder %s47, 0
      %p271 = por %p269, %p270
      %p272 = scmp.ne.s32.totalorder %s264, %s266
      %p273 = scmp.eq.s32.totalorder %s52, 1
      %p274 = por %p272, %p273
      %p275 = scmp.ne.s32.totalorder %s266, %s267
      %p276 = scmp.eq.s32.totalorder %s52, 0
      %p277 = por %p275, %p276
      %p278 = scmp.ne.s32.totalorder %s266, %s267
      %p279 = scmp.eq.s32.totalorder %s53, 1
      %p280 = por %p278, %p279
      %p282 = scmp.ne.s32.totalorder %s267, %s281
      %p283 = scmp.eq.s32.totalorder %s53, 0
      %p284 = por %p282, %p283
      %s286 = sadd.s32 %s285, 1
      %p289 = scmp.eq.s32.totalorder %s47, 1
      %p290 = scmp.ne.s32.totalorder %s285, %s287
      %p291 = scmp.eq.s32.totalorder %s47, 0
      %p292 = por %p290, %p291
      %p293 = scmp.ne.s32.totalorder %s285, %s287
      %p294 = scmp.eq.s32.totalorder %s52, 1
      %p295 = por %p293, %p294
      %p296 = scmp.ne.s32.totalorder %s287, %s288
      %p297 = scmp.eq.s32.totalorder %s52, 0
      %p298 = por %p296, %p297
      %p299 = scmp.ne.s32.totalorder %s287, %s288
      %p300 = scmp.eq.s32.totalorder %s53, 1
      %p301 = por %p299, %p300
      %p303 = scmp.ne.s32.totalorder %s288, %s302
      %p304 = scmp.eq.s32.totalorder %s53, 0
      %p305 = por %p303, %p304
      %s307 = sadd.s32 %s306, 1
      %p310 = scmp.eq.s32.totalorder %s47, 1
      %p311 = scmp.ne.s32.totalorder %s306, %s308
      %p312 = scmp.eq.s32.totalorder %s47, 0
      %p313 = por %p311, %p312
      %p314 = scmp.ne.s32.totalorder %s306, %s308
      %p315 = scmp.eq.s32.totalorder %s52, 1
      %p316 = por %p314, %p315
      %p317 = scmp.ne.s32.totalorder %s308, %s309
      %p318 = scmp.eq.s32.totalorder %s52, 0
      %p319 = por %p317, %p318
      %p320 = scmp.ne.s32.totalorder %s308, %s309
      %p321 = scmp.eq.s32.totalorder %s53, 1
      %p322 = por %p320, %p321
      %p324 = scmp.ne.s32.totalorder %s309, %s323
      %p325 = scmp.eq.s32.totalorder %s53, 0
      %p326 = por %p324, %p325
      %s328 = sadd.s32 %s327, 1
      %p331 = scmp.eq.s32.totalorder %s47, 1
      %p332 = scmp.ne.s32.totalorder %s327, %s329
      %p333 = scmp.eq.s32.totalorder %s47, 0
      %p334 = por %p332, %p333
      %p335 = scmp.ne.s32.totalorder %s327, %s329
      %p336 = scmp.eq.s32.totalorder %s52, 1
      %p337 = por %p335, %p336
      %p338 = scmp.ne.s32.totalorder %s329, %s330
      %p339 = scmp.eq.s32.totalorder %s52, 0
      %p340 = por %p338, %p339
      %p341 = scmp.ne.s32.totalorder %s329, %s330
      %p342 = scmp.eq.s32.totalorder %s53, 1
      %p343 = por %p341, %p342
      %p345 = scmp.ne.s32.totalorder %s330, %s344
      %p346 = scmp.eq.s32.totalorder %s53, 0
      %p347 = por %p345, %p346
      %s349 = sadd.s32 %s348, 1
      %p352 = scmp.eq.s32.totalorder %s47, 1
      %p353 = scmp.ne.s32.totalorder %s348, %s350
      %p354 = scmp.eq.s32.totalorder %s47, 0
      %p355 = por %p353, %p354
      %p356 = scmp.ne.s32.totalorder %s348, %s350
      %p357 = scmp.eq.s32.totalorder %s52, 1
      %p358 = por %p356, %p357
      %p359 = scmp.ne.s32.totalorder %s350, %s351
      %p360 = scmp.eq.s32.totalorder %s52, 0
      %p361 = por %p359, %p360
      %p362 = scmp.ne.s32.totalorder %s350, %s351
      %p363 = scmp.eq.s32.totalorder %s53, 1
      %p364 = por %p362, %p363
      %p366 = scmp.ne.s32.totalorder %s351, %s365
      %p367 = scmp.eq.s32.totalorder %s53, 0
      %p368 = por %p366, %p367
      %s370 = sadd.s32 %s369, 1
      %p373 = scmp.eq.s32.totalorder %s47, 1
      %p374 = scmp.ne.s32.totalorder %s369, %s371
      %p375 = scmp.eq.s32.totalorder %s47, 0
      %p376 = por %p374, %p375
      %p377 = scmp.ne.s32.totalorder %s369, %s371
      %p378 = scmp.eq.s32.totalorder %s52, 1
      %p379 = por %p377, %p378
      %p380 = scmp.ne.s32.totalorder %s371, %s372
      %p381 = scmp.eq.s32.totalorder %s52, 0
      %p382 = por %p380, %p381
      %p383 = scmp.ne.s32.totalorder %s371, %s372
      %p384 = scmp.eq.s32.totalorder %s53, 1
      %p385 = por %p383, %p384
      %p387 = scmp.ne.s32.totalorder %s372, %s386
      %p388 = scmp.eq.s32.totalorder %s53, 0
      %p389 = por %p387, %p388
      %s391 = sadd.s32 %s390, 1
      %p394 = scmp.eq.s32.totalorder %s47, 1
      %p395 = scmp.ne.s32.totalorder %s390, %s392
      %p396 = scmp.eq.s32.totalorder %s47, 0
      %p397 = por %p395, %p396
      %p398 = scmp.ne.s32.totalorder %s390, %s392
      %p399 = scmp.eq.s32.totalorder %s52, 1
      %p400 = por %p398, %p399
      %p401 = scmp.ne.s32.totalorder %s392, %s393
      %p402 = scmp.eq.s32.totalorder %s52, 0
      %p403 = por %p401, %p402
      %p404 = scmp.ne.s32.totalorder %s392, %s393
      %p405 = scmp.eq.s32.totalorder %s53, 1
      %p406 = por %p404, %p405
      %p408 = scmp.ne.s32.totalorder %s393, %s407
      %p409 = scmp.eq.s32.totalorder %s53, 0
      %p410 = por %p408, %p409
      %s412 = sadd.s32 %s411, 1
      %p415 = scmp.eq.s32.totalorder %s47, 1
      %p416 = scmp.ne.s32.totalorder %s411, %s413
      %p417 = scmp.eq.s32.totalorder %s47, 0
      %p418 = por %p416, %p417
      %p419 = scmp.ne.s32.totalorder %s411, %s413
      %p420 = scmp.eq.s32.totalorder %s52, 1
      %p421 = por %p419, %p420
      %p422 = scmp.ne.s32.totalorder %s413, %s414
      %p423 = scmp.eq.s32.totalorder %s52, 0
      %p424 = por %p422, %p423
      %p425 = scmp.ne.s32.totalorder %s413, %s414
      %p426 = scmp.eq.s32.totalorder %s53, 1
      %p427 = por %p425, %p426
      %p429 = scmp.ne.s32.totalorder %s414, %s428
      %p430 = scmp.eq.s32.totalorder %s53, 0
      %p431 = por %p429, %p430
      %s433 = sadd.s32 %s432, 1
      %p436 = scmp.eq.s32.totalorder %s47, 1
      %p437 = scmp.ne.s32.totalorder %s432, %s434
      %p438 = scmp.eq.s32.totalorder %s47, 0
      %p439 = por %p437, %p438
      %p440 = scmp.ne.s32.totalorder %s432, %s434
      %p441 = scmp.eq.s32.totalorder %s52, 1
      %p442 = por %p440, %p441
      %p443 = scmp.ne.s32.totalorder %s434, %s435
      %p444 = scmp.eq.s32.totalorder %s52, 0
      %p445 = por %p443, %p444
      %p446 = scmp.ne.s32.totalorder %s434, %s435
      %p447 = scmp.eq.s32.totalorder %s53, 1
      %p448 = por %p446, %p447
      %p450 = scmp.ne.s32.totalorder %s435, %s449
      %p451 = scmp.eq.s32.totalorder %s53, 0
      %p452 = por %p450, %p451
      %s454 = sadd.s32 %s453, 1
      %p457 = scmp.eq.s32.totalorder %s47, 1
      %p458 = scmp.ne.s32.totalorder %s453, %s455
      %p459 = scmp.eq.s32.totalorder %s47, 0
      %p460 = por %p458, %p459
      %p461 = scmp.ne.s32.totalorder %s453, %s455
      %p462 = scmp.eq.s32.totalorder %s52, 1
      %p463 = por %p461, %p462
      %p464 = scmp.ne.s32.totalorder %s455, %s456
      %p465 = scmp.eq.s32.totalorder %s52, 0
      %p466 = por %p464, %p465
      %p467 = scmp.ne.s32.totalorder %s455, %s456
      %p468 = scmp.eq.s32.totalorder %s53, 1
      %p469 = por %p467, %p468
      %p471 = scmp.ne.s32.totalorder %s456, %s470
      %p472 = scmp.eq.s32.totalorder %s53, 0
      %p473 = por %p471, %p472
      %s475 = sadd.s32 %s474, 1
      %p478 = scmp.eq.s32.totalorder %s47, 1
      %p479 = scmp.ne.s32.totalorder %s474, %s476
      %p480 = scmp.eq.s32.totalorder %s47, 0
      %p481 = por %p479, %p480
      %p482 = scmp.ne.s32.totalorder %s474, %s476
      %p483 = scmp.eq.s32.totalorder %s52, 1
      %p484 = por %p482, %p483
      %p485 = scmp.ne.s32.totalorder %s476, %s477
      %p486 = scmp.eq.s32.totalorder %s52, 0
      %p487 = por %p485, %p486
      %p488 = scmp.ne.s32.totalorder %s476, %s477
      %p489 = scmp.eq.s32.totalorder %s53, 1
      %p490 = por %p488, %p489
      %p492 = scmp.ne.s32.totalorder %s477, %s491
      %p493 = scmp.eq.s32.totalorder %s53, 0
      %p494 = por %p492, %p493
      %s496 = sadd.s32 %s495, 1
      %p499 = scmp.eq.s32.totalorder %s47, 1
      %p500 = scmp.ne.s32.totalorder %s495, %s497
      %p501 = scmp.eq.s32.totalorder %s47, 0
      %p502 = por %p500, %p501
      %p503 = scmp.ne.s32.totalorder %s495, %s497
      %p504 = scmp.eq.s32.totalorder %s52, 1
      %p505 = por %p503, %p504
      %p506 = scmp.ne.s32.totalorder %s497, %s498
      %p507 = scmp.eq.s32.totalorder %s52, 0
      %p508 = por %p506, %p507
      %p509 = scmp.ne.s32.totalorder %s497, %s498
      %p510 = scmp.eq.s32.totalorder %s53, 1
      %p511 = por %p509, %p510
      %p513 = scmp.ne.s32.totalorder %s498, %s512
      %p514 = scmp.eq.s32.totalorder %s53, 0
      %p515 = por %p513, %p514
      %s517 = sadd.s32 %s516, 1
      %p520 = scmp.eq.s32.totalorder %s47, 1
      %p521 = scmp.ne.s32.totalorder %s516, %s518
      %p522 = scmp.eq.s32.totalorder %s47, 0
      %p523 = por %p521, %p522
      %p524 = scmp.ne.s32.totalorder %s516, %s518
      %p525 = scmp.eq.s32.totalorder %s52, 1
      %p526 = por %p524, %p525
      %p527 = scmp.ne.s32.totalorder %s518, %s519
      %p528 = scmp.eq.s32.totalorder %s52, 0
      %p529 = por %p527, %p528
      %p530 = scmp.ne.s32.totalorder %s518, %s519
      %p531 = scmp.eq.s32.totalorder %s53, 1
      %p532 = por %p530, %p531
      %p534 = scmp.ne.s32.totalorder %s519, %s533
      %p535 = scmp.eq.s32.totalorder %s53, 0
      %p536 = por %p534, %p535
      %s538 = sadd.s32 %s537, 1
      %p541 = scmp.eq.s32.totalorder %s47, 1
      %p542 = scmp.ne.s32.totalorder %s537, %s539
      %p543 = scmp.eq.s32.totalorder %s47, 0
      %p544 = por %p542, %p543
      %p545 = scmp.ne.s32.totalorder %s537, %s539
      %p546 = scmp.eq.s32.totalorder %s52, 1
      %p547 = por %p545, %p546
      %p548 = scmp.ne.s32.totalorder %s539, %s540
      %p549 = scmp.eq.s32.totalorder %s52, 0
      %p550 = por %p548, %p549
      %p551 = scmp.ne.s32.totalorder %s539, %s540
      %p552 = scmp.eq.s32.totalorder %s53, 1
      %p553 = por %p551, %p552
      %p555 = scmp.ne.s32.totalorder %s540, %s554
      %p556 = scmp.eq.s32.totalorder %s53, 0
      %p557 = por %p555, %p556
      %s559 = sadd.s32 %s558, 1
      %p562 = scmp.eq.s32.totalorder %s47, 1
      %p563 = scmp.ne.s32.totalorder %s558, %s560
      %p564 = scmp.eq.s32.totalorder %s47, 0
      %p565 = por %p563, %p564
      %p566 = scmp.ne.s32.totalorder %s558, %s560
      %p567 = scmp.eq.s32.totalorder %s52, 1
      %p568 = por %p566, %p567
      %p569 = scmp.ne.s32.totalorder %s560, %s561
      %p570 = scmp.eq.s32.totalorder %s52, 0
      %p571 = por %p569, %p570
      %p572 = scmp.ne.s32.totalorder %s560, %s561
      %p573 = scmp.eq.s32.totalorder %s53, 1
      %p574 = por %p572, %p573
      %p576 = scmp.ne.s32.totalorder %s561, %s575
      %p577 = scmp.eq.s32.totalorder %s53, 0
      %p578 = por %p576, %p577
      %s579 = ssub.s32 %s54, %s66
      %s580 = ssub.s32 %s55, %s62
      %s581 = sor.u32 %s579, %s580
      %p582 = scmp.eq.s32.totalorder %s581, 0
      %s584 = sadd.s32 %s583, 1
      %s585 = scalar_select %p582, %s583, %s584
      %p588 = pneg %p582
      %p589 = scmp.eq.s32.totalorder %s47, 1
      %p590 = por %p588, %p589
      %p591 = scmp.ne.s32.totalorder %s583, %s586
      %p592 = scmp.eq.s32.totalorder %s47, 0
      %p593 = por %p591, %p592
      %p594 = scmp.ne.s32.totalorder %s583, %s586
      %p595 = scmp.eq.s32.totalorder %s52, 1
      %p596 = por %p594, %p595
      %p597 = scmp.ne.s32.totalorder %s586, %s587
      %p598 = scmp.eq.s32.totalorder %s52, 0
      %p599 = por %p597, %p598
      %p600 = scmp.ne.s32.totalorder %s586, %s587
      %p601 = scmp.eq.s32.totalorder %s53, 1
      %p602 = por %p600, %p601
      %p604 = scmp.ne.s32.totalorder %s587, %s603
      %p605 = scmp.eq.s32.totalorder %s53, 0
      %p606 = por %p604, %p605
      %s607 = ssub.s32 %s54, %s66
      %s608 = ssub.s32 %s55, %s62
      %s609 = sor.u32 %s607, %s608
      %p610 = scmp.eq.s32.totalorder %s609, 0
      %s612 = sadd.s32 %s611, 1
      %s613 = scalar_select %p610, %s611, %s612
      %p616 = pneg %p610
      %p617 = scmp.eq.s32.totalorder %s47, 1
      %p618 = por %p616, %p617
      %p619 = scmp.ne.s32.totalorder %s611, %s614
      %p620 = scmp.eq.s32.totalorder %s47, 0
      %p621 = por %p619, %p620
      %p622 = scmp.ne.s32.totalorder %s611, %s614
      %p623 = scmp.eq.s32.totalorder %s52, 1
      %p624 = por %p622, %p623
      %p625 = scmp.ne.s32.totalorder %s614, %s615
      %p626 = scmp.eq.s32.totalorder %s52, 0
      %p627 = por %p625, %p626
      %p628 = scmp.ne.s32.totalorder %s614, %s615
      %p629 = scmp.eq.s32.totalorder %s53, 1
      %p630 = por %p628, %p629
      %p632 = scmp.ne.s32.totalorder %s615, %s631
      %p633 = scmp.eq.s32.totalorder %s53, 0
      %p634 = por %p632, %p633
      %s635 = ssub.s32 %s54, %s66
      %s636 = ssub.s32 %s55, %s62
      %s637 = sor.u32 %s635, %s636
      %p638 = scmp.eq.s32.totalorder %s637, 0
      %s640 = sadd.s32 %s639, 1
      %s641 = scalar_select %p638, %s639, %s640
      %p644 = pneg %p638
      %p645 = scmp.eq.s32.totalorder %s47, 1
      %p646 = por %p644, %p645
      %p647 = scmp.ne.s32.totalorder %s639, %s642
      %p648 = scmp.eq.s32.totalorder %s47, 0
      %p649 = por %p647, %p648
      %p650 = scmp.ne.s32.totalorder %s639, %s642
      %p651 = scmp.eq.s32.totalorder %s52, 1
      %p652 = por %p650, %p651
      %p653 = scmp.ne.s32.totalorder %s642, %s643
      %p654 = scmp.eq.s32.totalorder %s52, 0
      %p655 = por %p653, %p654
      %p656 = scmp.ne.s32.totalorder %s642, %s643
      %p657 = scmp.eq.s32.totalorder %s53, 1
      %p658 = por %p656, %p657
      %p660 = scmp.ne.s32.totalorder %s643, %s659
      %p661 = scmp.eq.s32.totalorder %s53, 0
      %p662 = por %p660, %p661
      %p663 = scmp.le.s32.totalorder 1, %s47
      %p664 = scmp.lt.s32.totalorder %s47, 3
      %p665 = pnand %p663, %p664
      %p666 = pneg %p665
      // Predicated region
      $region9: #{tpu_custom_call.1} parent=5 // pred_check
        _
      $region10: #{tpu_custom_call.1} parent=5 // pred_check_branch
        %668 = sbr.rel (%p665) target = $region12
      $region11: #{tpu_custom_call.1} parent=5 // pred_region
        %s669 = ssub.s32 %s47, 1
        // Predicated region
        $region13: #{tpu_custom_call.1} parent=11 // pred_check
          %p670 = pneg %p214
        $region14: #{tpu_custom_call.1} parent=11 // pred_check_branch
          %672 = sbr.rel (%p670) target = $region16
        $region15: #{tpu_custom_call.1} parent=11 // pred_region
          _
        $region16: #{tpu_custom_call.1} parent=11 // pred_fallthru
          _
        // Predicated region
        $region17: #{tpu_custom_call.1} parent=11 // pred_check
          %p673 = pneg %p235
        $region18: #{tpu_custom_call.1} parent=11 // pred_check_branch
          %675 = sbr.rel (%p673) target = $region20
        $region19: #{tpu_custom_call.1} parent=11 // pred_region
          _
        $region20: #{tpu_custom_call.1} parent=11 // pred_fallthru
          _
        // Predicated region
        $region21: #{tpu_custom_call.1} parent=11 // pred_check
          %p676 = pneg %p256
        $region22: #{tpu_custom_call.1} parent=11 // pred_check_branch
          %678 = sbr.rel (%p676) target = $region24
        $region23: #{tpu_custom_call.1} parent=11 // pred_region
          _
        $region24: #{tpu_custom_call.1} parent=11 // pred_fallthru
          _
        // Predicated region
        $region25: #{tpu_custom_call.1} parent=11 // pred_check
          %p679 = pneg %p277
        $region26: #{tpu_custom_call.1} parent=11 // pred_check_branch
          %681 = sbr.rel (%p679) target = $region28
        $region27: #{tpu_custom_call.1} parent=11 // pred_region
          _
        $region28: #{tpu_custom_call.1} parent=11 // pred_fallthru
          _
        // Predicated region
        $region29: #{tpu_custom_call.1} parent=11 // pred_check
          %p682 = pneg %p298
        $region30: #{tpu_custom_call.1} parent=11 // pred_check_branch
          %684 = sbr.rel (%p682) target = $region32
        $region31: #{tpu_custom_call.1} parent=11 // pred_region
          _
        $region32: #{tpu_custom_call.1} parent=11 // pred_fallthru
          _
        // Predicated region
        $region33: #{tpu_custom_call.1} parent=11 // pred_check
          %p685 = pneg %p319
        $region34: #{tpu_custom_call.1} parent=11 // pred_check_branch
          %687 = sbr.rel (%p685) target = $region36
        $region35: #{tpu_custom_call.1} parent=11 // pred_region
          _
        $region36: #{tpu_custom_call.1} parent=11 // pred_fallthru
          _
        // Predicated region
        $region37: #{tpu_custom_call.1} parent=11 // pred_check
          %p688 = pneg %p340
        $region38: #{tpu_custom_call.1} parent=11 // pred_check_branch
          %690 = sbr.rel (%p688) target = $region40
        $region39: #{tpu_custom_call.1} parent=11 // pred_region
          %692 = vsyncadd [#allocation9], 0
          %s693 = sshll.u32 %s11, 4
          %s694 = int_to_ptr.hbm [resolvable:$true] %s693
          %s695 = sshll.u32 [#allocation8], 4
          %s696 = int_to_ptr.vmem [resolvable:$true] %s695
          %701 = dma.hbm_to_vmem [thread:$0]  %s694, 256, %s696, [#allocation9], 64, 64, 4
        $region40: #{tpu_custom_call.1} parent=11 // pred_fallthru
          _
        // Predicated region
        $region41: #{tpu_custom_call.1} parent=11 // pred_check
          %p702 = pneg %p361
        $region42: #{tpu_custom_call.1} parent=11 // pred_check_branch
          %704 = sbr.rel (%p702) target = $region44
        $region43: #{tpu_custom_call.1} parent=11 // pred_region
          %706 = vsyncadd [#allocation9], 0
          %s707 = sshll.u32 %s12, 4
          %s708 = int_to_ptr.hbm [resolvable:$true] %s707
          %s709 = sshll.u32 [#allocation10], 4
          %s710 = int_to_ptr.vmem [resolvable:$true] %s709
          %715 = dma.hbm_to_vmem [thread:$0]  %s708, 256, %s710, [#allocation9], 64, 64, 4
        $region44: #{tpu_custom_call.1} parent=11 // pred_fallthru
          _
        // Predicated region
        $region45: #{tpu_custom_call.1} parent=11 // pred_check
          %p716 = pneg %p382
        $region46: #{tpu_custom_call.1} parent=11 // pred_check_branch
          %718 = sbr.rel (%p716) target = $region48
        $region47: #{tpu_custom_call.1} parent=11 // pred_region
          %720 = vsyncadd [#allocation12], 0
          %s721 = sshll.u32 %s13, 4
          %s722 = int_to_ptr.hbm [resolvable:$true] %s721
          %s723 = sshll.u32 [#allocation11], 4
          %s724 = int_to_ptr.vmem [resolvable:$true] %s723
          %729 = dma.hbm_to_vmem [thread:$0]  %s722, 256, %s724, [#allocation12], 64, 64, 4
        $region48: #{tpu_custom_call.1} parent=11 // pred_fallthru
          _
        // Predicated region
        $region49: #{tpu_custom_call.1} parent=11 // pred_check
          %p730 = pneg %p403
        $region50: #{tpu_custom_call.1} parent=11 // pred_check_branch
          %732 = sbr.rel (%p730) target = $region52
        $region51: #{tpu_custom_call.1} parent=11 // pred_region
          %734 = vsyncadd [#allocation12], 0
          %s735 = sshll.u32 %s14, 4
          %s736 = int_to_ptr.hbm [resolvable:$true] %s735
          %s737 = sshll.u32 [#allocation13], 4
          %s738 = int_to_ptr.vmem [resolvable:$true] %s737
          %743 = dma.hbm_to_vmem [thread:$0]  %s736, 256, %s738, [#allocation12], 64, 64, 4
        $region52: #{tpu_custom_call.1} parent=11 // pred_fallthru
          _
        // Predicated region
        $region53: #{tpu_custom_call.1} parent=11 // pred_check
          %p744 = pneg %p424
        $region54: #{tpu_custom_call.1} parent=11 // pred_check_branch
          %746 = sbr.rel (%p744) target = $region56
        $region55: #{tpu_custom_call.1} parent=11 // pred_region
          _
        $region56: #{tpu_custom_call.1} parent=11 // pred_fallthru
          _
        // Predicated region
        $region57: #{tpu_custom_call.1} parent=11 // pred_check
          %p747 = pneg %p445
        $region58: #{tpu_custom_call.1} parent=11 // pred_check_branch
          %749 = sbr.rel (%p747) target = $region60
        $region59: #{tpu_custom_call.1} parent=11 // pred_region
          _
        $region60: #{tpu_custom_call.1} parent=11 // pred_fallthru
          _
        // Predicated region
        $region61: #{tpu_custom_call.1} parent=11 // pred_check
          %p750 = pneg %p466
        $region62: #{tpu_custom_call.1} parent=11 // pred_check_branch
          %752 = sbr.rel (%p750) target = $region64
        $region63: #{tpu_custom_call.1} parent=11 // pred_region
          %754 = vsyncadd [#allocation15], 0
          %s755 = sshll.u32 %s17, 4
          %s756 = int_to_ptr.hbm [resolvable:$true] %s755
          %s757 = sshll.u32 [#allocation14], 4
          %s758 = int_to_ptr.vmem [resolvable:$true] %s757
          %763 = dma.hbm_to_vmem [thread:$0]  %s756, 256, %s758, [#allocation15], 64, 64, 4
        $region64: #{tpu_custom_call.1} parent=11 // pred_fallthru
          _
        // Predicated region
        $region65: #{tpu_custom_call.1} parent=11 // pred_check
          %p764 = pneg %p487
        $region66: #{tpu_custom_call.1} parent=11 // pred_check_branch
          %766 = sbr.rel (%p764) target = $region68
        $region67: #{tpu_custom_call.1} parent=11 // pred_region
          _
        $region68: #{tpu_custom_call.1} parent=11 // pred_fallthru
          _
        // Predicated region
        $region69: #{tpu_custom_call.1} parent=11 // pred_check
          %p767 = pneg %p508
        $region70: #{tpu_custom_call.1} parent=11 // pred_check_branch
          %769 = sbr.rel (%p767) target = $region72
        $region71: #{tpu_custom_call.1} parent=11 // pred_region
          _
        $region72: #{tpu_custom_call.1} parent=11 // pred_fallthru
          _
        // Predicated region
        $region73: #{tpu_custom_call.1} parent=11 // pred_check
          %p770 = pneg %p529
        $region74: #{tpu_custom_call.1} parent=11 // pred_check_branch
          %772 = sbr.rel (%p770) target = $region76
        $region75: #{tpu_custom_call.1} parent=11 // pred_region
          _
        $region76: #{tpu_custom_call.1} parent=11 // pred_fallthru
          _
        // Predicated region
        $region77: #{tpu_custom_call.1} parent=11 // pred_check
          %p773 = pneg %p550
        $region78: #{tpu_custom_call.1} parent=11 // pred_check_branch
          %775 = sbr.rel (%p773) target = $region80
        $region79: #{tpu_custom_call.1} parent=11 // pred_region
          _
        $region80: #{tpu_custom_call.1} parent=11 // pred_fallthru
          _
        // Predicated region
        $region81: #{tpu_custom_call.1} parent=11 // pred_check
          %p776 = pneg %p571
        $region82: #{tpu_custom_call.1} parent=11 // pred_check_branch
          %778 = sbr.rel (%p776) target = $region84
        $region83: #{tpu_custom_call.1} parent=11 // pred_region
          _
        $region84: #{tpu_custom_call.1} parent=11 // pred_fallthru
          _
      $region12: #{tpu_custom_call.1} parent=5 // pred_fallthru
        _
      %p779 = scmp.lt.s32.totalorder %s47, 2
      // Predicated region
      $region85: #{tpu_custom_call.1} parent=5 // pred_check
        %p780 = pneg %p779
      $region86: #{tpu_custom_call.1} parent=5 // pred_check_branch
        %782 = sbr.rel (%p780) target = $region88
      $region87: #{tpu_custom_call.1} parent=5 // pred_region
        // Predicated region
        $region89: #{tpu_custom_call.1} parent=87 // pred_check
          %p783 = pneg %p81
        $region90: #{tpu_custom_call.1} parent=87 // pred_check_branch
          %785 = sbr.rel (%p783) target = $region92
        $region91: #{tpu_custom_call.1} parent=87 // pred_region
          %s786 = sand.u32 %s71, 1
          %s787 = scalar_lea.sflag [#allocation3], %s786
          %s788 = sand.u32 %s71, 1
          %s789 = smul.addr %s788, 4
          %s790 = scalar_lea.vmem [#allocation2], %s789
          %792 = vsyncadd %s787, 0
          %s793 = sadd.s32 %s55, %s54
          %s794 = smul.addr %s793, 4
          %s795 = scalar_lea.hbm %s0, %s794
          %s797 = sshll.u32 %s795, 4
          %s798 = int_to_ptr.hbm [resolvable:$true] %s797
          %s799 = sshll.u32 %s790, 4
          %s800 = int_to_ptr.vmem [resolvable:$true] %s799
          %802 = dma.hbm_to_vmem [thread:$0]  %s798, 64, %s800, %s787
        $region92: #{tpu_custom_call.1} parent=87 // pred_fallthru
          _
        // Predicated region
        $region93: #{tpu_custom_call.1} parent=87 // pred_check
          %p803 = pneg %p107
        $region94: #{tpu_custom_call.1} parent=87 // pred_check_branch
          %805 = sbr.rel (%p803) target = $region96
        $region95: #{tpu_custom_call.1} parent=87 // pred_region
          %s806 = sand.u32 %s47, 1
          %s807 = scalar_lea.sflag [#allocation6], %s806
          %s808 = sand.u32 %s97, 1
          %s809 = smul.addr %s808, 4
          %s810 = scalar_lea.vmem [#allocation5], %s809
          %812 = vsyncadd %s807, 0
          %s813 = smul.addr %s54, 4
          %s814 = scalar_lea.hbm %s1, %s813
          %s816 = sshll.u32 %s814, 4
          %s817 = int_to_ptr.hbm [resolvable:$true] %s816
          %s818 = sshll.u32 %s810, 4
          %s819 = int_to_ptr.vmem [resolvable:$true] %s818
          %821 = dma.hbm_to_vmem [thread:$0]  %s817, 64, %s819, %s807
        $region96: #{tpu_custom_call.1} parent=87 // pred_fallthru
          _
        // Predicated region
        $region97: #{tpu_custom_call.1} parent=87 // pred_check
          %p822 = pneg %p133
        $region98: #{tpu_custom_call.1} parent=87 // pred_check_branch
          %824 = sbr.rel (%p822) target = $region100
        $region99: #{tpu_custom_call.1} parent=87 // pred_region
          %p825 = scmp.lt.s32.totalorder %s54, 1
          %s826 = scalar_select %p825, %s54, 1
          %s827 = smul.addr %s826, 2
          %s828 = smul.addr %s827, 4
          %s829 = scalar_lea.vmem %s2, %s828
        $region100: #{tpu_custom_call.1} parent=87 // pred_fallthru
          _
        // Predicated region
        $region101: #{tpu_custom_call.1} parent=87 // pred_check
          %p830 = pneg %p161
        $region102: #{tpu_custom_call.1} parent=87 // pred_check_branch
          %832 = sbr.rel (%p830) target = $region104
        $region103: #{tpu_custom_call.1} parent=87 // pred_region
          %p833 = scmp.lt.s32.totalorder %s54, 1
          %s834 = scalar_select %p833, %s54, 1
          %p835 = scmp.lt.s32.totalorder %s55, 0
          %s836 = scalar_select %p835, %s55, 0
          %s837 = sadd.s32 %s836, %s834
          %s838 = smul.addr %s837, 8
          %s839 = scalar_lea.vmem %s3, %s838
        $region104: #{tpu_custom_call.1} parent=87 // pred_fallthru
          _
        // Predicated region
        $region105: #{tpu_custom_call.1} parent=87 // pred_check
          %p840 = pneg %p187
        $region106: #{tpu_custom_call.1} parent=87 // pred_check_branch
          %842 = sbr.rel (%p840) target = $region108
        $region107: #{tpu_custom_call.1} parent=87 // pred_region
          %s843 = sand.u32 %s47, 1
          %s844 = scalar_lea.sflag [#allocation6], %s843
          %s845 = sand.u32 %s177, 1
          %s846 = scalar_lea.vmem [#allocation7], %s845
          %848 = vsyncadd %s844, 0
          %s849 = scalar_lea.hbm %s4, %s54
          %s851 = sshll.u32 %s849, 4
          %s852 = int_to_ptr.hbm [resolvable:$true] %s851
          %s853 = sshll.u32 %s846, 4
          %s854 = int_to_ptr.vmem [resolvable:$true] %s853
          %856 = dma.hbm_to_vmem [thread:$0]  %s852, 16, %s854, %s844
        $region108: #{tpu_custom_call.1} parent=87 // pred_fallthru
          _
      $region88: #{tpu_custom_call.1} parent=5 // pred_fallthru
        _
      %p857 = scmp.le.s32.totalorder 1, %s47
      %p858 = scmp.lt.s32.totalorder %s47, 3
      %p859 = pnand %p857, %p858
      %p860 = pneg %p859
      // Predicated region
      $region109: #{tpu_custom_call.1} parent=5 // pred_check
        _
      $region110: #{tpu_custom_call.1} parent=5 // pred_check_branch
        %862 = sbr.rel (%p859) target = $region112
      $region111: #{tpu_custom_call.1} parent=5 // pred_region
        %s863 = ssub.s32 %s47, 1
        %s864 = sand.u32 %s74, 1
        %s865 = scalar_lea.sflag [#allocation3], %s864
        %s866 = sand.u32 %s74, 1
        %s867 = smul.addr %s866, 4
        %s868 = scalar_lea.vmem [#allocation2], %s867
        // Predicated region
        $region113: #{tpu_custom_call.1} parent=111 // pred_check
          %p869 = pneg %p87
        $region114: #{tpu_custom_call.1} parent=111 // pred_check_branch
          %871 = sbr.rel (%p869) target = $region116
        $region115: #{tpu_custom_call.1} parent=111 // pred_region
          %873 = dma.done %s865, 64
        $region116: #{tpu_custom_call.1} parent=111 // pred_fallthru
          _
        %s874 = sand.u32 %s52, 1
        %s875 = scalar_lea.sflag [#allocation6], %s874
        %s876 = sand.u32 %s100, 1
        %s877 = smul.addr %s876, 4
        %s878 = scalar_lea.vmem [#allocation5], %s877
        // Predicated region
        $region117: #{tpu_custom_call.1} parent=111 // pred_check
          %p879 = pneg %p113
        $region118: #{tpu_custom_call.1} parent=111 // pred_check_branch
          %881 = sbr.rel (%p879) target = $region120
        $region119: #{tpu_custom_call.1} parent=111 // pred_region
          %883 = dma.done %s875, 64
        $region120: #{tpu_custom_call.1} parent=111 // pred_fallthru
          _
        %s884 = sand.u32 %s52, 1
        %s885 = scalar_lea.sflag [#allocation6], %s884
        %s886 = sand.u32 %s180, 1
        %s887 = scalar_lea.vmem [#allocation7], %s886
        // Predicated region
        $region121: #{tpu_custom_call.1} parent=111 // pred_check
          %p888 = pneg %p193
        $region122: #{tpu_custom_call.1} parent=111 // pred_check_branch
          %890 = sbr.rel (%p888) target = $region124
        $region123: #{tpu_custom_call.1} parent=111 // pred_region
          %892 = dma.done %s885, 16
        $region124: #{tpu_custom_call.1} parent=111 // pred_fallthru
          _
        // Predicated region
        $region125: #{tpu_custom_call.1} parent=111 // pred_check
          %p893 = pneg %p340
        $region126: #{tpu_custom_call.1} parent=111 // pred_check_branch
          %895 = sbr.rel (%p893) target = $region128
        $region127: #{tpu_custom_call.1} parent=111 // pred_region
          %897 = dma.done [#allocation9], 256
        $region128: #{tpu_custom_call.1} parent=111 // pred_fallthru
          _
        // Predicated region
        $region129: #{tpu_custom_call.1} parent=111 // pred_check
          %p898 = pneg %p361
        $region130: #{tpu_custom_call.1} parent=111 // pred_check_branch
          %900 = sbr.rel (%p898) target = $region132
        $region131: #{tpu_custom_call.1} parent=111 // pred_region
          %902 = dma.done [#allocation9], 256
        $region132: #{tpu_custom_call.1} parent=111 // pred_fallthru
          _
        // Predicated region
        $region133: #{tpu_custom_call.1} parent=111 // pred_check
          %p903 = pneg %p382
        $region134: #{tpu_custom_call.1} parent=111 // pred_check_branch
          %905 = sbr.rel (%p903) target = $region136
        $region135: #{tpu_custom_call.1} parent=111 // pred_region
          %907 = dma.done [#allocation12], 256
        $region136: #{tpu_custom_call.1} parent=111 // pred_fallthru
          _
        // Predicated region
        $region137: #{tpu_custom_call.1} parent=111 // pred_check
          %p908 = pneg %p403
        $region138: #{tpu_custom_call.1} parent=111 // pred_check_branch
          %910 = sbr.rel (%p908) target = $region140
        $region139: #{tpu_custom_call.1} parent=111 // pred_region
          %912 = dma.done [#allocation12], 256
        $region140: #{tpu_custom_call.1} parent=111 // pred_fallthru
          _
        // Predicated region
        $region141: #{tpu_custom_call.1} parent=111 // pred_check
          %p913 = pneg %p466
        $region142: #{tpu_custom_call.1} parent=111 // pred_check_branch
          %915 = sbr.rel (%p913) target = $region144
        $region143: #{tpu_custom_call.1} parent=111 // pred_region
          %917 = dma.done [#allocation15], 256
        $region144: #{tpu_custom_call.1} parent=111 // pred_fallthru
          _
        %s918 = sand.u32 %s74, 1
        %s919 = scalar_lea.sflag [#allocation3], %s918
        %s920 = sand.u32 %s74, 1
        %s921 = smul.addr %s920, 4
        %s922 = scalar_lea.vmem [#allocation2], %s921
        %p923 = pneg %p87
        %p924 = pneg %p84
        %s925 = sand.u32 %s52, 1
        %s926 = scalar_lea.sflag [#allocation6], %s925
        %s927 = sand.u32 %s100, 1
        %s928 = smul.addr %s927, 4
        %s929 = scalar_lea.vmem [#allocation5], %s928
        %p930 = pneg %p113
        %p931 = pneg %p110
        %p932 = scmp.lt.s32.totalorder %s56, 1
        %s933 = scalar_select %p932, %s56, 1
        %s934 = smul.addr %s933, 2
        %s935 = smul.addr %s934, 4
        %s936 = scalar_lea.vmem %s2, %s935
        %p937 = pneg %p139
        %p938 = pneg %p136
        %p939 = scmp.lt.s32.totalorder %s56, 1
        %s940 = scalar_select %p939, %s56, 1
        %p941 = scmp.lt.s32.totalorder %s57, 0
        %s942 = scalar_select %p941, %s57, 0
        %s943 = sadd.s32 %s942, %s940
        %s944 = smul.addr %s943, 8
        %s945 = scalar_lea.vmem %s3, %s944
        %p946 = pneg %p167
        %p947 = pneg %p164
        %s948 = sand.u32 %s52, 1
        %s949 = scalar_lea.sflag [#allocation6], %s948
        %s950 = sand.u32 %s180, 1
        %s951 = scalar_lea.vmem [#allocation7], %s950
        %p952 = pneg %p193
        %p953 = pneg %p190
        %p954 = pneg %p214
        %p955 = pneg %p211
        %p956 = pneg %p235
        %p957 = pneg %p232
        %p958 = pneg %p256
        %p959 = pneg %p253
        %p960 = pneg %p277
        %p961 = pneg %p274
        %p962 = pneg %p298
        %p963 = pneg %p295
        %p964 = pneg %p319
        %p965 = pneg %p316
        %p966 = pneg %p340
        %p967 = pneg %p337
        %p968 = pneg %p361
        %p969 = pneg %p358
        %p970 = pneg %p382
        %p971 = pneg %p379
        %p972 = pneg %p403
        %p973 = pneg %p400
        %p974 = pneg %p424
        %p975 = pneg %p421
        %p976 = pneg %p445
        %p977 = pneg %p442
        %p978 = pneg %p466
        %p979 = pneg %p463
        %p980 = pneg %p487
        %p981 = pneg %p484
        %p982 = pneg %p508
        %p983 = pneg %p505
        %p984 = pneg %p529
        %p985 = pneg %p526
        %p986 = pneg %p550
        %p987 = pneg %p547
        %p988 = pneg %p571
        %p989 = pneg %p568
        %p990 = pneg %p599
        %p991 = pneg %p596
        %s992 = sand.u32 %s586, 1
        %s993 = scalar_lea.sflag [#allocation4], %s992
        %s994 = sand.u32 %s586, 1
        %s995 = smul.addr %s994, 8
        %s996 = scalar_lea.vmem [#allocation16], %s995
        %p997 = pneg %p627
        %p998 = pneg %p624
        %s999 = sand.u32 %s52, 1
        %s1000 = scalar_lea.sflag [#allocation18], %s999
        %s1001 = sand.u32 %s614, 1
        %s1002 = smul.addr %s1001, 16
        %s1003 = scalar_lea.vmem [#allocation17], %s1002
        %p1004 = pneg %p655
        %p1005 = pneg %p652
        %s1006 = sand.u32 %s52, 1
        %s1007 = scalar_lea.sflag [#allocation18], %s1006
        %s1008 = sand.u32 %s642, 1
        %s1009 = smul.addr %s1008, 16
        %s1010 = scalar_lea.vmem [#allocation19], %s1009
        %p1011 = scmp.lt.s32.totalorder %s56, 1
        %s1012 = scalar_select %p1011, %s56, 1
        %s1013 = smul.addr %s1012, 2
        %s1014 = smul.addr %s1013, 4
        %s1015 = scalar_lea.vmem %s2, %s1014
        %p1016 = scmp.lt.s32.totalorder %s56, 1
        %s1017 = scalar_select %p1016, %s56, 1
        %p1018 = scmp.lt.s32.totalorder %s57, 0
        %s1019 = scalar_select %p1018, %s57, 0
        %s1020 = sadd.s32 %s1019, %s1017
        %s1021 = smul.addr %s1020, 8
        %s1022 = scalar_lea.vmem %s3, %s1021
        %v1024 = vld [vmem:[%s868] sm:$0xf]
        %v1025 = vunpack.c.l.bf16 %v1024
        %v1026 = vld [vmem:[%s878] sm:$0xf]
        %v1027 = vld [vmem:[%s1015] sm:$0xf]
        %v1028 = vld [vmem:[%s1015 + $0x4] sm:$0x3]
        %v1029 = vld [vmem:[%s1022] sm:$0xff]
        %vm1030 = vcmp.eq.f32.partialorder %v1029, 0.0
        %v1031 = vsel %vm1030, -1e+09, 0.0
        %v1032 = vld [vmem:[%s887] sm:$0x1]
        %vm1033 = vcmp.eq.f32.partialorder %v1032, 0.0
        %v1034 = vsel %vm1033, -1e+09, 0.0
        %v1035 = vld [vmem:[%s5] sm:$0xf]
        %v1036 = vld [vmem:[%s5 + $0x4] sm:$0xf]
        %v1037 = vld [vmem:[%s5 + $0x8] sm:$0xf]
        %v1038 = vld [vmem:[%s5 + $0xc] sm:$0xf]
        %v1043 = vunpack.c.l.b16 %v1035
        %v1044 = vunpack.c.l.b16 %v1036
        %v1045 = vunpack.c.l.b16 %v1037
        %v1046 = vunpack.c.l.b16 %v1038
        %v1047 = vpack.c.b16 %v1044, %v1043
        %v1048 = vpack.c.b16 %v1046, %v1045
        %vm1051 = vcmask 261120
        %v1053 = vsel %vm1051, %v1024, 0
        %1055 = vmatpush.bf16.msra.mxu0 0
        %1056 = vmatpush.bf16.msra.mxu0 0
        %1057 = vmatpush.bf16.msra.mxu0 0
        %1058 = vmatpush.bf16.msra.mxu0 0
        %1059 = vmatpush.bf16.msra.mxu0 0
        %1060 = vmatpush.bf16.msra.mxu0 0
        %1061 = vmatpush.bf16.msra.mxu0 %v1048
        %1062 = vmatpush.bf16.msra.mxu0 %v1047
        %1063 = vmatmul.bf16.gmra.mxu0 %v1053
        %v1064 = vpop.f32.mrf.mxu0
        %v1065 = vadd.f32 0.0, %v1064
        %v1066 = vpop.f32.mrf.mxu0
        %1067 = vdwg.mxu0
        %v1068 = vld [vmem:[%s6] sm:$0xf]
        %v1069 = vld [vmem:[%s6 + $0x4] sm:$0xf]
        %v1070 = vld [vmem:[%s6 + $0x8] sm:$0xf]
        %v1071 = vld [vmem:[%s6 + $0xc] sm:$0xf]
        %v1076 = vunpack.c.l.b16 %v1068
        %v1077 = vunpack.c.l.b16 %v1069
        %v1078 = vunpack.c.l.b16 %v1070
        %v1079 = vunpack.c.l.b16 %v1071
        %v1080 = vpack.c.b16 %v1077, %v1076
        %v1081 = vpack.c.b16 %v1079, %v1078
        %v1085 = vsel %vm1051, %v1026, 0
        %1087 = vmatpush.bf16.msra.mxu0 0
        %1088 = vmatpush.bf16.msra.mxu0 0
        %1089 = vmatpush.bf16.msra.mxu0 0
        %1090 = vmatpush.bf16.msra.mxu0 0
        %1091 = vmatpush.bf16.msra.mxu0 0
        %1092 = vmatpush.bf16.msra.mxu0 0
        %1093 = vmatpush.bf16.msra.mxu0 %v1081
        %1094 = vmatpush.bf16.msra.mxu0 %v1080
        %1095 = vmatmul.bf16.gmra.mxu0 %v1085
        %v1096 = vpop.f32.mrf.mxu0
        %v1097 = vadd.f32 0.0, %v1096
        %v1098 = vpop.f32.mrf.mxu0
        %1099 = vdwg.mxu0
        %v1100 = vld [vmem:[%s7] sm:$0xf]
        %v1101 = vld [vmem:[%s7 + $0x4] sm:$0xf]
        %v1102 = vld [vmem:[%s7 + $0x8] sm:$0xf]
        %v1103 = vld [vmem:[%s7 + $0xc] sm:$0xf]
        %v1108 = vunpack.c.l.b16 %v1100
        %v1109 = vunpack.c.l.b16 %v1101
        %v1110 = vunpack.c.l.b16 %v1102
        %v1111 = vunpack.c.l.b16 %v1103
        %v1112 = vpack.c.b16 %v1109, %v1108
        %v1113 = vpack.c.b16 %v1111, %v1110
        %1116 = vmatpush.bf16.msra.mxu0 0
        %1117 = vmatpush.bf16.msra.mxu0 0
        %1118 = vmatpush.bf16.msra.mxu0 0
        %1119 = vmatpush.bf16.msra.mxu0 0
        %1120 = vmatpush.bf16.msra.mxu0 0
        %1121 = vmatpush.bf16.msra.mxu0 0
        %1122 = vmatpush.bf16.msra.mxu0 %v1113
        %1123 = vmatpush.bf16.msra.mxu0 %v1112
        %1124 = vmatmul.bf16.gmra.mxu0 %v1085
        %v1125 = vpop.f32.mrf.mxu0
        %v1126 = vadd.f32 0.0, %v1125
        %v1127 = vpop.f32.mrf.mxu0
        %1128 = vdwg.mxu0
        %1130 = vrot.lane.b32.xlu0 %v1065, 120
        %v1131 = vpop.permute.xlu0 %1130
        %1133 = vrot.lane.b32.xlu0 %v1065, 112
        %v1134 = vpop.permute.xlu0 %1133
        %1136 = vrot.lane.b32.xlu0 %v1065, 104
        %v1137 = vpop.permute.xlu0 %1136
        %v1139 = vpack.c.bf16 %v1065, %v1065
        %v1140 = vpack.c.bf16 %v1131, %v1131
        %v1141 = vpack.c.bf16 %v1134, %v1134
        %v1142 = vpack.c.bf16 %v1137, %v1137
        %1144 = vrot.lane.b32.xlu0 %v1097, 120
        %v1145 = vpop.permute.xlu0 %1144
        %1147 = vrot.lane.b32.xlu0 %v1097, 112
        %v1148 = vpop.permute.xlu0 %1147
        %1150 = vrot.lane.b32.xlu0 %v1097, 104
        %v1151 = vpop.permute.xlu0 %1150
        %v1153 = vpack.c.bf16 %v1097, %v1097
        %v1154 = vpack.c.bf16 %v1145, %v1145
        %v1155 = vpack.c.bf16 %v1148, %v1148
        %v1156 = vpack.c.bf16 %v1151, %v1151
        %1158 = vrot.lane.b32.xlu0 %v1126, 120
        %v1159 = vpop.permute.xlu0 %1158
        %1161 = vrot.lane.b32.xlu0 %v1126, 112
        %v1162 = vpop.permute.xlu0 %1161
        %1164 = vrot.lane.b32.xlu0 %v1126, 104
        %v1165 = vpop.permute.xlu0 %1164
        %v1167 = vpack.c.bf16 %v1126, %v1126
        %v1168 = vpack.c.bf16 %v1159, %v1159
        %v1169 = vpack.c.bf16 %v1162, %v1162
        %v1170 = vpack.c.bf16 %v1165, %v1165
        %vm1171 = vcmask 64512
        %v1173 = vsel %vm1171, %v1139, 0
        %v1176 = vsel %vm1171, %v1153, 0
        %1178 = vmatpush.bf16.xpose.msra.mxu0 0
        %1179 = vmatpush.bf16.xpose.msra.mxu0 0
        %1180 = vmatpush.bf16.xpose.msra.mxu0 0
        %1181 = vmatpush.bf16.xpose.msra.mxu0 0
        %1182 = vmatpush.bf16.xpose.msra.mxu0 0
        %1183 = vmatpush.bf16.xpose.msra.mxu0 0
        %1184 = vmatpush.bf16.xpose.msra.mxu0 0
        %1185 = vmatpush.bf16.xpose.msra.mxu0 %v1176
        %1186 = vmatmul.bf16.gmra.mxu0 %v1173
        %v1187 = vpop.f32.mrf.mxu0
        %v1188 = vadd.f32 %v1031, %v1187
        %v1189 = vpop.f32.mrf.mxu0
        %1190 = vdwg.mxu0
        %v1192 = vsel %vm1171, %v1140, 0
        %v1195 = vsel %vm1171, %v1154, 0
        %1197 = vmatpush.bf16.xpose.msra.mxu0 0
        %1198 = vmatpush.bf16.xpose.msra.mxu0 0
        %1199 = vmatpush.bf16.xpose.msra.mxu0 0
        %1200 = vmatpush.bf16.xpose.msra.mxu0 0
        %1201 = vmatpush.bf16.xpose.msra.mxu0 0
        %1202 = vmatpush.bf16.xpose.msra.mxu0 0
        %1203 = vmatpush.bf16.xpose.msra.mxu0 0
        %1204 = vmatpush.bf16.xpose.msra.mxu0 %v1195
        %1205 = vmatmul.bf16.gmra.mxu0 %v1192
        %v1206 = vpop.f32.mrf.mxu0
        %v1207 = vadd.f32 %v1031, %v1206
        %v1208 = vpop.f32.mrf.mxu0
        %1209 = vdwg.mxu0
        %v1211 = vsel %vm1171, %v1141, 0
        %v1214 = vsel %vm1171, %v1155, 0
        %1216 = vmatpush.bf16.xpose.msra.mxu0 0
        %1217 = vmatpush.bf16.xpose.msra.mxu0 0
        %1218 = vmatpush.bf16.xpose.msra.mxu0 0
        %1219 = vmatpush.bf16.xpose.msra.mxu0 0
        %1220 = vmatpush.bf16.xpose.msra.mxu0 0
        %1221 = vmatpush.bf16.xpose.msra.mxu0 0
        %1222 = vmatpush.bf16.xpose.msra.mxu0 0
        %1223 = vmatpush.bf16.xpose.msra.mxu0 %v1214
        %1224 = vmatmul.bf16.gmra.mxu0 %v1211
        %v1225 = vpop.f32.mrf.mxu0
        %v1226 = vadd.f32 %v1031, %v1225
        %v1227 = vpop.f32.mrf.mxu0
        %1228 = vdwg.mxu0
        %v1230 = vsel %vm1171, %v1142, 0
        %v1233 = vsel %vm1171, %v1156, 0
        %1235 = vmatpush.bf16.xpose.msra.mxu0 0
        %1236 = vmatpush.bf16.xpose.msra.mxu0 0
        %1237 = vmatpush.bf16.xpose.msra.mxu0 0
        %1238 = vmatpush.bf16.xpose.msra.mxu0 0
        %1239 = vmatpush.bf16.xpose.msra.mxu0 0
        %1240 = vmatpush.bf16.xpose.msra.mxu0 0
        %1241 = vmatpush.bf16.xpose.msra.mxu0 0
        %1242 = vmatpush.bf16.xpose.msra.mxu0 %v1233
        %1243 = vmatmul.bf16.gmra.mxu0 %v1230
        %v1244 = vpop.f32.mrf.mxu0
        %v1245 = vadd.f32 %v1031, %v1244
        %v1246 = vpop.f32.mrf.mxu0
        %1247 = vdwg.mxu0
        %v1248 = vsel %vm1171, %v1188, -inf
        %1249 = vmax.xlane.f32.xlu0 %v1248
        %v1250 = vpop.xlane.xlu0 %1249
        %v1251 = vsel %vm1171, %v1207, -inf
        %1252 = vmax.xlane.f32.xlu0 %v1251
        %v1253 = vpop.xlane.xlu0 %1252
        %v1254 = vsel %vm1171, %v1226, -inf
        %1255 = vmax.xlane.f32.xlu0 %v1254
        %v1256 = vpop.xlane.xlu0 %1255
        %v1257 = vsel %vm1171, %v1245, -inf
        %1258 = vmax.xlane.f32.xlu0 %v1257
        %v1259 = vpop.xlane.xlu0 %1258
        %v1260 = vsub.f32 %v1188, %v1250
        %v1261 = vsub.f32 %v1207, %v1253
        %v1262 = vsub.f32 %v1226, %v1256
        %v1263 = vsub.f32 %v1245, %v1259
        %v1264 = vmul.f32 %v1260, 1.442695
        %v1265 = vpow.pop %v1264
        %v1266 = vmul.f32 %v1261, 1.442695
        %v1267 = vpow.pop %v1266
        %v1268 = vmul.f32 %v1262, 1.442695
        %v1269 = vpow.pop %v1268
        %v1270 = vmul.f32 %v1263, 1.442695
        %v1271 = vpow.pop %v1270
        %v1272 = vsel %vm1171, %v1265, 0.0
        %1273 = vadd.xlane.f32.xlu0 %v1272
        %v1274 = vpop.xlane.xlu0 %1273
        %v1275 = vsel %vm1171, %v1267, 0.0
        %1276 = vadd.xlane.f32.xlu0 %v1275
        %v1277 = vpop.xlane.xlu0 %1276
        %v1278 = vsel %vm1171, %v1269, 0.0
        %1279 = vadd.xlane.f32.xlu0 %v1278
        %v1280 = vpop.xlane.xlu0 %1279
        %v1281 = vsel %vm1171, %v1271, 0.0
        %1282 = vadd.xlane.f32.xlu0 %v1281
        %v1283 = vpop.xlane.xlu0 %1282
        %v1284 = vrcp.pop %v1274
        %v1285 = vrcp.pop %v1277
        %v1286 = vrcp.pop %v1280
        %v1287 = vrcp.pop %v1283
        %v1288 = vmul.f32 %v1265, %v1284
        %v1289 = vmul.f32 %v1267, %v1285
        %v1290 = vmul.f32 %v1269, %v1286
        %v1291 = vmul.f32 %v1271, %v1287
        %v1292 = vpack.c.bf16 %v1288, %v1288
        %v1293 = vpack.c.bf16 %v1289, %v1289
        %v1294 = vpack.c.bf16 %v1290, %v1290
        %v1295 = vpack.c.bf16 %v1291, %v1291
        %v1297 = vsel %vm1171, %v1292, 0
        %vm1299 = vcmask 1043456
        %v1301 = vsel %vm1299, %v1167, 0
        %1303 = vmatpush.bf16.msra.mxu0 0
        %1304 = vmatpush.bf16.msra.mxu0 0
        %1305 = vmatpush.bf16.msra.mxu0 0
        %1306 = vmatpush.bf16.msra.mxu0 0
        %1307 = vmatpush.bf16.msra.mxu0 0
        %1308 = vmatpush.bf16.msra.mxu0 0
        %1309 = vmatpush.bf16.msra.mxu0 0
        %1310 = vmatpush.bf16.msra.mxu0 %v1301
        %1311 = vmatmul.bf16.gmra.mxu0 %v1297
        %v1312 = vpop.f32.mrf.mxu0
        %v1313 = vadd.f32 0.0, %v1312
        %v1314 = vpop.f32.mrf.mxu0
        %1315 = vdwg.mxu0
        %v1317 = vsel %vm1171, %v1293, 0
        %v1320 = vsel %vm1299, %v1168, 0
        %1322 = vmatpush.bf16.msra.mxu0 0
        %1323 = vmatpush.bf16.msra.mxu0 0
        %1324 = vmatpush.bf16.msra.mxu0 0
        %1325 = vmatpush.bf16.msra.mxu0 0
        %1326 = vmatpush.bf16.msra.mxu0 0
        %1327 = vmatpush.bf16.msra.mxu0 0
        %1328 = vmatpush.bf16.msra.mxu0 0
        %1329 = vmatpush.bf16.msra.mxu0 %v1320
        %1330 = vmatmul.bf16.gmra.mxu0 %v1317
        %v1331 = vpop.f32.mrf.mxu0
        %v1332 = vadd.f32 0.0, %v1331
        %v1333 = vpop.f32.mrf.mxu0
        %1334 = vdwg.mxu0
        %v1336 = vsel %vm1171, %v1294, 0
        %v1339 = vsel %vm1299, %v1169, 0
        %1341 = vmatpush.bf16.msra.mxu0 0
        %1342 = vmatpush.bf16.msra.mxu0 0
        %1343 = vmatpush.bf16.msra.mxu0 0
        %1344 = vmatpush.bf16.msra.mxu0 0
        %1345 = vmatpush.bf16.msra.mxu0 0
        %1346 = vmatpush.bf16.msra.mxu0 0
        %1347 = vmatpush.bf16.msra.mxu0 0
        %1348 = vmatpush.bf16.msra.mxu0 %v1339
        %1349 = vmatmul.bf16.gmra.mxu0 %v1336
        %v1350 = vpop.f32.mrf.mxu0
        %v1351 = vadd.f32 0.0, %v1350
        %v1352 = vpop.f32.mrf.mxu0
        %1353 = vdwg.mxu0
        %v1355 = vsel %vm1171, %v1295, 0
        %v1358 = vsel %vm1299, %v1170, 0
        %1360 = vmatpush.bf16.msra.mxu0 0
        %1361 = vmatpush.bf16.msra.mxu0 0
        %1362 = vmatpush.bf16.msra.mxu0 0
        %1363 = vmatpush.bf16.msra.mxu0 0
        %1364 = vmatpush.bf16.msra.mxu0 0
        %1365 = vmatpush.bf16.msra.mxu0 0
        %1366 = vmatpush.bf16.msra.mxu0 0
        %1367 = vmatpush.bf16.msra.mxu0 %v1358
        %1368 = vmatmul.bf16.gmra.mxu0 %v1355
        %v1369 = vpop.f32.mrf.mxu0
        %v1370 = vadd.f32 0.0, %v1369
        %v1371 = vpop.f32.mrf.mxu0
        %1372 = vdwg.mxu0
        %1374 = vrot.lane.b32.xlu0 %v1332, 8
        %v1375 = vpop.permute.xlu0 %1374
        %1378 = vrot.lane.b32.xlu0 %v1351, 16
        %v1379 = vpop.permute.xlu0 %1378
        %1382 = vrot.lane.b32.xlu0 %v1370, 24
        %v1383 = vpop.permute.xlu0 %1382
        %v1385 = vsel %vm1171, %v1313, %v1375
        %vm1386 = vcmask 130048
        %v1387 = vsel %vm1386, %v1385, %v1379
        %vm1388 = vcmask 195584
        %v1389 = vsel %vm1388, %v1387, %v1383
        %v1390 = vpack.c.bf16 %v1389, %v1389
        %v1391 = vld [vmem:[%s8] sm:$0xf]
        %v1392 = vld [vmem:[%s8 + $0x4] sm:$0xf]
        %v1393 = vld [vmem:[%s8 + $0x8] sm:$0xf]
        %v1394 = vld [vmem:[%s8 + $0xc] sm:$0xf]
        %v1399 = vunpack.c.l.b16 %v1391
        %v1400 = vunpack.c.l.b16 %v1392
        %v1401 = vunpack.c.l.b16 %v1393
        %v1402 = vunpack.c.l.b16 %v1394
        %v1403 = vpack.c.b16 %v1400, %v1399
        %v1404 = vpack.c.b16 %v1402, %v1401
        %v1408 = vsel %vm1051, %v1390, 0
        %1410 = vmatpush.bf16.msra.mxu0 0
        %1411 = vmatpush.bf16.msra.mxu0 0
        %1412 = vmatpush.bf16.msra.mxu0 0
        %1413 = vmatpush.bf16.msra.mxu0 0
        %1414 = vmatpush.bf16.msra.mxu0 0
        %1415 = vmatpush.bf16.msra.mxu0 0
        %1416 = vmatpush.bf16.msra.mxu0 %v1404
        %1417 = vmatpush.bf16.msra.mxu0 %v1403
        %1418 = vmatmul.bf16.gmra.mxu0 %v1408
        %v1419 = vpop.f32.mrf.mxu0
        %v1420 = vadd.f32 %v1025, %v1419
        %v1421 = vpop.f32.mrf.mxu0
        %1422 = vdwg.mxu0
        %v1423 = vld [vmem:[%s9] sm:$0x1]
        %v1424 = vld [vmem:[%s10] sm:$0x1]
        %v1425 = vsel %vm1051, %v1420, 0.0
        %1426 = vadd.xlane.f32.xlu0 %v1425
        %v1427 = vpop.xlane.xlu0 %1426
        %v1428 = vrcp.pop 32.0
        %v1429 = vmul.f32 32.0, %v1428
        %v1430 = vsub.f32 1.0, %v1429
        %v1431 = vmul.f32 %v1428, %v1430
        %v1432 = vadd.f32 %v1428, %v1431
        %vm1433 = vweird.f32 %v1428
        %v1434 = vsel %vm1433, %v1428, %v1432
        %v1435 = vmul.f32 %v1427, %v1434
        %v1436 = vsub.f32 %v1420, %v1435
        %v1437 = vmul.f32 %v1436, %v1436
        %v1438 = vsel %vm1051, %v1437, 0.0
        %1439 = vadd.xlane.f32.xlu0 %v1438
        %v1440 = vpop.xlane.xlu0 %1439
        %v1441 = vmul.f32 %v1440, %v1434
        %v1442 = vadd.f32 %v1441, 1e-06
        %v1443 = vrsqrt.pop %v1442
        %v1444 = vmul.f32 %v1443, %v1442
        %v1445 = vmul.f32 %v1444, %v1443
        %v1446 = vmul.f32 0.5, %v1445
        %v1447 = vsub.f32 1.5, %v1446
        %v1448 = vmul.f32 %v1443, %v1447
        %vm1449 = vweird.f32 %v1442
        %vm1450 = vweird.f32 %v1443
        %vm1451 = vmor %vm1449, %vm1450
        %v1452 = vsel %vm1451, %v1443, %v1448
        %v1453 = vmul.f32 %v1436, %v1452
        %v1455 = vperm.slane %v1423, 0
        %v1457 = vmul.f32 %v1453, %v1455
        %v1459 = vperm.slane %v1424, 0
        %v1461 = vadd.f32 %v1457, %v1459
        %v1462 = vpack.c.bf16 %v1461, %v1461
        %v1463 = vld [vmem:[#allocation8] sm:$0xf]
        %v1464 = vld [vmem:[#allocation8 + $0x4] sm:$0xf]
        %v1465 = vld [vmem:[#allocation8 + $0x8] sm:$0xf]
        %v1466 = vld [vmem:[#allocation8 + $0xc] sm:$0xf]
        %v1471 = vunpack.c.l.b16 %v1463
        %v1472 = vunpack.c.l.b16 %v1464
        %v1473 = vunpack.c.l.b16 %v1465
        %v1474 = vunpack.c.l.b16 %v1466
        %v1475 = vpack.c.b16 %v1472, %v1471
        %v1476 = vpack.c.b16 %v1474, %v1473
        %v1480 = vsel %vm1051, %v1462, 0
        %1482 = vmatpush.bf16.msra.mxu0 0
        %1483 = vmatpush.bf16.msra.mxu0 0
        %1484 = vmatpush.bf16.msra.mxu0 0
        %1485 = vmatpush.bf16.msra.mxu0 0
        %1486 = vmatpush.bf16.msra.mxu0 0
        %1487 = vmatpush.bf16.msra.mxu0 0
        %1488 = vmatpush.bf16.msra.mxu0 %v1476
        %1489 = vmatpush.bf16.msra.mxu0 %v1475
        %1490 = vmatmul.bf16.gmra.mxu0 %v1480
        %v1491 = vpop.f32.mrf.mxu0
        %v1492 = vadd.f32 0.0, %v1491
        %v1493 = vpop.f32.mrf.mxu0
        %1494 = vdwg.mxu0
        %v1495 = vld [vmem:[#allocation10] sm:$0xf]
        %v1496 = vld [vmem:[#allocation10 + $0x4] sm:$0xf]
        %v1497 = vld [vmem:[#allocation10 + $0x8] sm:$0xf]
        %v1498 = vld [vmem:[#allocation10 + $0xc] sm:$0xf]
        %v1501 = vunpack.c.l.b16 %v1027
        %v1502 = vunpack.c.l.b16 %v1028
        %v1503 = vpack.c.b16 %v1502, %v1501
        %v1508 = vunpack.c.l.b16 %v1495
        %v1509 = vunpack.c.l.b16 %v1496
        %v1510 = vunpack.c.l.b16 %v1497
        %v1511 = vunpack.c.l.b16 %v1498
        %v1512 = vpack.c.b16 %v1509, %v1508
        %v1513 = vpack.c.b16 %v1511, %v1510
        %v1517 = vsel %vm1051, %v1503, 0
        %1519 = vmatpush.bf16.msra.mxu0 0
        %1520 = vmatpush.bf16.msra.mxu0 0
        %1521 = vmatpush.bf16.msra.mxu0 0
        %1522 = vmatpush.bf16.msra.mxu0 0
        %1523 = vmatpush.bf16.msra.mxu0 0
        %1524 = vmatpush.bf16.msra.mxu0 0
        %1525 = vmatpush.bf16.msra.mxu0 %v1513
        %1526 = vmatpush.bf16.msra.mxu0 %v1512
        %1527 = vmatmul.bf16.gmra.mxu0 %v1517
        %v1528 = vpop.f32.mrf.mxu0
        %v1529 = vadd.f32 0.0, %v1528
        %v1530 = vpop.f32.mrf.mxu0
        %v1531 = vadd.f32 0.0, %v1530
        %1532 = vdwg.mxu0
        %v1533 = vld [vmem:[#allocation11] sm:$0xf]
        %v1534 = vld [vmem:[#allocation11 + $0x4] sm:$0xf]
        %v1535 = vld [vmem:[#allocation11 + $0x8] sm:$0xf]
        %v1536 = vld [vmem:[#allocation11 + $0xc] sm:$0xf]
        %v1541 = vunpack.c.l.b16 %v1533
        %v1542 = vunpack.c.l.b16 %v1534
        %v1543 = vunpack.c.l.b16 %v1535
        %v1544 = vunpack.c.l.b16 %v1536
        %v1545 = vpack.c.b16 %v1542, %v1541
        %v1546 = vpack.c.b16 %v1544, %v1543
        %1549 = vmatpush.bf16.msra.mxu0 0
        %1550 = vmatpush.bf16.msra.mxu0 0
        %1551 = vmatpush.bf16.msra.mxu0 0
        %1552 = vmatpush.bf16.msra.mxu0 0
        %1553 = vmatpush.bf16.msra.mxu0 0
        %1554 = vmatpush.bf16.msra.mxu0 0
        %1555 = vmatpush.bf16.msra.mxu0 %v1546
        %1556 = vmatpush.bf16.msra.mxu0 %v1545
        %1557 = vmatmul.bf16.gmra.mxu0 %v1517
        %v1558 = vpop.f32.mrf.mxu0
        %v1559 = vadd.f32 0.0, %v1558
        %v1560 = vpop.f32.mrf.mxu0
        %v1561 = vadd.f32 0.0, %v1560
        %1562 = vdwg.mxu0
        %1564 = vrot.lane.b32.xlu0 %v1492, 120
        %v1565 = vpop.permute.xlu0 %1564
        %1567 = vrot.lane.b32.xlu0 %v1492, 112
        %v1568 = vpop.permute.xlu0 %1567
        %1570 = vrot.lane.b32.xlu0 %v1492, 104
        %v1571 = vpop.permute.xlu0 %1570
        %v1573 = vpack.c.bf16 %v1492, %v1492
        %v1574 = vpack.c.bf16 %v1565, %v1565
        %v1575 = vpack.c.bf16 %v1568, %v1568
        %v1576 = vpack.c.bf16 %v1571, %v1571
        %1579 = vrot.lane.b32.xlu0 %v1529, 120
        %v1580 = vpop.permute.xlu0 %1579
        %1581 = vrot.lane.b32.xlu0 %v1531, 120
        %v1582 = vpop.permute.xlu0 %1581
        %1585 = vrot.lane.b32.xlu0 %v1529, 112
        %v1586 = vpop.permute.xlu0 %1585
        %1587 = vrot.lane.b32.xlu0 %v1531, 112
        %v1588 = vpop.permute.xlu0 %1587
        %1591 = vrot.lane.b32.xlu0 %v1529, 104
        %v1592 = vpop.permute.xlu0 %1591
        %1593 = vrot.lane.b32.xlu0 %v1531, 104
        %v1594 = vpop.permute.xlu0 %1593
        %v1597 = vpack.c.bf16 %v1529, %v1529
        %v1598 = vpack.c.bf16 %v1531, %v1531
        %v1599 = vpack.c.bf16 %v1580, %v1580
        %v1600 = vpack.c.bf16 %v1582, %v1582
        %v1601 = vpack.c.bf16 %v1586, %v1586
        %v1602 = vpack.c.bf16 %v1588, %v1588
        %v1603 = vpack.c.bf16 %v1592, %v1592
        %v1604 = vpack.c.bf16 %v1594, %v1594
        %1607 = vrot.lane.b32.xlu0 %v1559, 120
        %v1608 = vpop.permute.xlu0 %1607
        %1609 = vrot.lane.b32.xlu0 %v1561, 120
        %v1610 = vpop.permute.xlu0 %1609
        %1613 = vrot.lane.b32.xlu0 %v1559, 112
        %v1614 = vpop.permute.xlu0 %1613
        %1615 = vrot.lane.b32.xlu0 %v1561, 112
        %v1616 = vpop.permute.xlu0 %1615
        %1619 = vrot.lane.b32.xlu0 %v1559, 104
        %v1620 = vpop.permute.xlu0 %1619
        %1621 = vrot.lane.b32.xlu0 %v1561, 104
        %v1622 = vpop.permute.xlu0 %1621
        %v1625 = vpack.c.bf16 %v1559, %v1559
        %v1626 = vpack.c.bf16 %v1561, %v1561
        %v1627 = vpack.c.bf16 %v1608, %v1608
        %v1628 = vpack.c.bf16 %v1610, %v1610
        %v1629 = vpack.c.bf16 %v1614, %v1614
        %v1630 = vpack.c.bf16 %v1616, %v1616
        %v1631 = vpack.c.bf16 %v1620, %v1620
        %v1632 = vpack.c.bf16 %v1622, %v1622
        %v1634 = vperm.slane %v1034, 0
        %v1638 = vunpack.c.l.b16 %v1597
        %v1639 = vunpack.c.l.b16 %v1598
        %v1640 = vpack.c.b16 %v1639, %v1638
        %v1642 = vsel %vm1171, %v1573, 0
        %v1645 = vsel %vm1171, %v1640, 0
        %1647 = vmatpush.bf16.xpose.msra.mxu0 0
        %1648 = vmatpush.bf16.xpose.msra.mxu0 0
        %1649 = vmatpush.bf16.xpose.msra.mxu0 0
        %1650 = vmatpush.bf16.xpose.msra.mxu0 0
        %1651 = vmatpush.bf16.xpose.msra.mxu0 0
        %1652 = vmatpush.bf16.xpose.msra.mxu0 0
        %1653 = vmatpush.bf16.xpose.msra.mxu0 0
        %1654 = vmatpush.bf16.xpose.msra.mxu0 %v1645
        %1655 = vmatmul.bf16.gmra.mxu0 %v1642
        %v1656 = vpop.f32.mrf.mxu0
        %v1657 = vadd.f32 %v1634, %v1656
        %v1658 = vpop.f32.mrf.mxu0
        %1659 = vdwg.mxu0
        %v1662 = vunpack.c.l.b16 %v1599
        %v1663 = vunpack.c.l.b16 %v1600
        %v1664 = vpack.c.b16 %v1663, %v1662
        %v1666 = vsel %vm1171, %v1574, 0
        %v1669 = vsel %vm1171, %v1664, 0
        %1671 = vmatpush.bf16.xpose.msra.mxu0 0
        %1672 = vmatpush.bf16.xpose.msra.mxu0 0
        %1673 = vmatpush.bf16.xpose.msra.mxu0 0
        %1674 = vmatpush.bf16.xpose.msra.mxu0 0
        %1675 = vmatpush.bf16.xpose.msra.mxu0 0
        %1676 = vmatpush.bf16.xpose.msra.mxu0 0
        %1677 = vmatpush.bf16.xpose.msra.mxu0 0
        %1678 = vmatpush.bf16.xpose.msra.mxu0 %v1669
        %1679 = vmatmul.bf16.gmra.mxu0 %v1666
        %v1680 = vpop.f32.mrf.mxu0
        %v1681 = vadd.f32 %v1634, %v1680
        %v1682 = vpop.f32.mrf.mxu0
        %1683 = vdwg.mxu0
        %v1686 = vunpack.c.l.b16 %v1601
        %v1687 = vunpack.c.l.b16 %v1602
        %v1688 = vpack.c.b16 %v1687, %v1686
        %v1690 = vsel %vm1171, %v1575, 0
        %v1693 = vsel %vm1171, %v1688, 0
        %1695 = vmatpush.bf16.xpose.msra.mxu0 0
        %1696 = vmatpush.bf16.xpose.msra.mxu0 0
        %1697 = vmatpush.bf16.xpose.msra.mxu0 0
        %1698 = vmatpush.bf16.xpose.msra.mxu0 0
        %1699 = vmatpush.bf16.xpose.msra.mxu0 0
        %1700 = vmatpush.bf16.xpose.msra.mxu0 0
        %1701 = vmatpush.bf16.xpose.msra.mxu0 0
        %1702 = vmatpush.bf16.xpose.msra.mxu0 %v1693
        %1703 = vmatmul.bf16.gmra.mxu0 %v1690
        %v1704 = vpop.f32.mrf.mxu0
        %v1705 = vadd.f32 %v1634, %v1704
        %v1706 = vpop.f32.mrf.mxu0
        %1707 = vdwg.mxu0
        %v1710 = vunpack.c.l.b16 %v1603
        %v1711 = vunpack.c.l.b16 %v1604
        %v1712 = vpack.c.b16 %v1711, %v1710
        %v1714 = vsel %vm1171, %v1576, 0
        %v1717 = vsel %vm1171, %v1712, 0
        %1719 = vmatpush.bf16.xpose.msra.mxu0 0
        %1720 = vmatpush.bf16.xpose.msra.mxu0 0
        %1721 = vmatpush.bf16.xpose.msra.mxu0 0
        %1722 = vmatpush.bf16.xpose.msra.mxu0 0
        %1723 = vmatpush.bf16.xpose.msra.mxu0 0
        %1724 = vmatpush.bf16.xpose.msra.mxu0 0
        %1725 = vmatpush.bf16.xpose.msra.mxu0 0
        %1726 = vmatpush.bf16.xpose.msra.mxu0 %v1717
        %1727 = vmatmul.bf16.gmra.mxu0 %v1714
        %v1728 = vpop.f32.mrf.mxu0
        %v1729 = vadd.f32 %v1634, %v1728
        %v1730 = vpop.f32.mrf.mxu0
        %1731 = vdwg.mxu0
        %vm1732 = vcmask 97280
        %v1733 = vsel %vm1732, %v1657, -inf
        %1734 = vmax.xlane.f32.xlu0 %v1733
        %v1735 = vpop.xlane.xlu0 %1734
        %v1736 = vsel %vm1732, %v1681, -inf
        %1737 = vmax.xlane.f32.xlu0 %v1736
        %v1738 = vpop.xlane.xlu0 %1737
        %v1739 = vsel %vm1732, %v1705, -inf
        %1740 = vmax.xlane.f32.xlu0 %v1739
        %v1741 = vpop.xlane.xlu0 %1740
        %v1742 = vsel %vm1732, %v1729, -inf
        %1743 = vmax.xlane.f32.xlu0 %v1742
        %v1744 = vpop.xlane.xlu0 %1743
        %v1745 = vsub.f32 %v1657, %v1735
        %v1746 = vsub.f32 %v1681, %v1738
        %v1747 = vsub.f32 %v1705, %v1741
        %v1748 = vsub.f32 %v1729, %v1744
        %v1749 = vmul.f32 %v1745, 1.442695
        %v1750 = vpow.pop %v1749
        %v1751 = vmul.f32 %v1746, 1.442695
        %v1752 = vpow.pop %v1751
        %v1753 = vmul.f32 %v1747, 1.442695
        %v1754 = vpow.pop %v1753
        %v1755 = vmul.f32 %v1748, 1.442695
        %v1756 = vpow.pop %v1755
        %v1757 = vsel %vm1732, %v1750, 0.0
        %1758 = vadd.xlane.f32.xlu0 %v1757
        %v1759 = vpop.xlane.xlu0 %1758
        %v1760 = vsel %vm1732, %v1752, 0.0
        %1761 = vadd.xlane.f32.xlu0 %v1760
        %v1762 = vpop.xlane.xlu0 %1761
        %v1763 = vsel %vm1732, %v1754, 0.0
        %1764 = vadd.xlane.f32.xlu0 %v1763
        %v1765 = vpop.xlane.xlu0 %1764
        %v1766 = vsel %vm1732, %v1756, 0.0
        %1767 = vadd.xlane.f32.xlu0 %v1766
        %v1768 = vpop.xlane.xlu0 %1767
        %v1769 = vrcp.pop %v1759
        %v1770 = vrcp.pop %v1762
        %v1771 = vrcp.pop %v1765
        %v1772 = vrcp.pop %v1768
        %v1773 = vmul.f32 %v1750, %v1769
        %v1774 = vmul.f32 %v1752, %v1770
        %v1775 = vmul.f32 %v1754, %v1771
        %v1776 = vmul.f32 %v1756, %v1772
        %v1777 = vpack.c.bf16 %v1773, %v1773
        %v1778 = vpack.c.bf16 %v1774, %v1774
        %v1779 = vpack.c.bf16 %v1775, %v1775
        %v1780 = vpack.c.bf16 %v1776, %v1776
        %v1783 = vunpack.c.l.b16 %v1625
        %v1784 = vunpack.c.l.b16 %v1626
        %v1785 = vpack.c.b16 %v1784, %v1783
        %v1787 = vsel %vm1732, %v1777, 0
        %vm1789 = vcmask 1045504
        %v1791 = vsel %vm1789, %v1785, 0
        %1793 = vmatpush.bf16.msra.mxu0 0
        %1794 = vmatpush.bf16.msra.mxu0 0
        %1795 = vmatpush.bf16.msra.mxu0 0
        %1796 = vmatpush.bf16.msra.mxu0 0
        %1797 = vmatpush.bf16.msra.mxu0 0
        %1798 = vmatpush.bf16.msra.mxu0 0
        %1799 = vmatpush.bf16.msra.mxu0 0
        %1800 = vmatpush.bf16.msra.mxu0 %v1791
        %1801 = vmatmul.bf16.gmra.mxu0 %v1787
        %v1802 = vpop.f32.mrf.mxu0
        %v1803 = vadd.f32 0.0, %v1802
        %v1804 = vpop.f32.mrf.mxu0
        %1805 = vdwg.mxu0
        %v1808 = vunpack.c.l.b16 %v1627
        %v1809 = vunpack.c.l.b16 %v1628
        %v1810 = vpack.c.b16 %v1809, %v1808
        %v1812 = vsel %vm1732, %v1778, 0
        %v1815 = vsel %vm1789, %v1810, 0
        %1817 = vmatpush.bf16.msra.mxu0 0
        %1818 = vmatpush.bf16.msra.mxu0 0
        %1819 = vmatpush.bf16.msra.mxu0 0
        %1820 = vmatpush.bf16.msra.mxu0 0
        %1821 = vmatpush.bf16.msra.mxu0 0
        %1822 = vmatpush.bf16.msra.mxu0 0
        %1823 = vmatpush.bf16.msra.mxu0 0
        %1824 = vmatpush.bf16.msra.mxu0 %v1815
        %1825 = vmatmul.bf16.gmra.mxu0 %v1812
        %v1826 = vpop.f32.mrf.mxu0
        %v1827 = vadd.f32 0.0, %v1826
        %v1828 = vpop.f32.mrf.mxu0
        %1829 = vdwg.mxu0
        %v1832 = vunpack.c.l.b16 %v1629
        %v1833 = vunpack.c.l.b16 %v1630
        %v1834 = vpack.c.b16 %v1833, %v1832
        %v1836 = vsel %vm1732, %v1779, 0
        %v1839 = vsel %vm1789, %v1834, 0
        %1841 = vmatpush.bf16.msra.mxu0 0
        %1842 = vmatpush.bf16.msra.mxu0 0
        %1843 = vmatpush.bf16.msra.mxu0 0
        %1844 = vmatpush.bf16.msra.mxu0 0
        %1845 = vmatpush.bf16.msra.mxu0 0
        %1846 = vmatpush.bf16.msra.mxu0 0
        %1847 = vmatpush.bf16.msra.mxu0 0
        %1848 = vmatpush.bf16.msra.mxu0 %v1839
        %1849 = vmatmul.bf16.gmra.mxu0 %v1836
        %v1850 = vpop.f32.mrf.mxu0
        %v1851 = vadd.f32 0.0, %v1850
        %v1852 = vpop.f32.mrf.mxu0
        %1853 = vdwg.mxu0
        %v1856 = vunpack.c.l.b16 %v1631
        %v1857 = vunpack.c.l.b16 %v1632
        %v1858 = vpack.c.b16 %v1857, %v1856
        %v1860 = vsel %vm1732, %v1780, 0
        %v1863 = vsel %vm1789, %v1858, 0
        %1865 = vmatpush.bf16.msra.mxu0 0
        %1866 = vmatpush.bf16.msra.mxu0 0
        %1867 = vmatpush.bf16.msra.mxu0 0
        %1868 = vmatpush.bf16.msra.mxu0 0
        %1869 = vmatpush.bf16.msra.mxu0 0
        %1870 = vmatpush.bf16.msra.mxu0 0
        %1871 = vmatpush.bf16.msra.mxu0 0
        %1872 = vmatpush.bf16.msra.mxu0 %v1863
        %1873 = vmatmul.bf16.gmra.mxu0 %v1860
        %v1874 = vpop.f32.mrf.mxu0
        %v1875 = vadd.f32 0.0, %v1874
        %v1876 = vpop.f32.mrf.mxu0
        %1877 = vdwg.mxu0
        %1879 = vrot.lane.b32.xlu0 %v1827, 8
        %v1880 = vpop.permute.xlu0 %1879
        %1883 = vrot.lane.b32.xlu0 %v1851, 16
        %v1884 = vpop.permute.xlu0 %1883
        %1887 = vrot.lane.b32.xlu0 %v1875, 24
        %v1888 = vpop.permute.xlu0 %1887
        %v1890 = vsel %vm1171, %v1803, %v1880
        %v1891 = vsel %vm1386, %v1890, %v1884
        %v1892 = vsel %vm1388, %v1891, %v1888
        %v1893 = vpack.c.bf16 %v1892, %v1892
        %v1894 = vld [vmem:[#allocation13] sm:$0xf]
        %v1895 = vld [vmem:[#allocation13 + $0x4] sm:$0xf]
        %v1896 = vld [vmem:[#allocation13 + $0x8] sm:$0xf]
        %v1897 = vld [vmem:[#allocation13 + $0xc] sm:$0xf]
        %v1902 = vunpack.c.l.b16 %v1894
        %v1903 = vunpack.c.l.b16 %v1895
        %v1904 = vunpack.c.l.b16 %v1896
        %v1905 = vunpack.c.l.b16 %v1897
        %v1906 = vpack.c.b16 %v1903, %v1902
        %v1907 = vpack.c.b16 %v1905, %v1904
        %v1911 = vsel %vm1051, %v1893, 0
        %1913 = vmatpush.bf16.msra.mxu0 0
        %1914 = vmatpush.bf16.msra.mxu0 0
        %1915 = vmatpush.bf16.msra.mxu0 0
        %1916 = vmatpush.bf16.msra.mxu0 0
        %1917 = vmatpush.bf16.msra.mxu0 0
        %1918 = vmatpush.bf16.msra.mxu0 0
        %1919 = vmatpush.bf16.msra.mxu0 %v1907
        %1920 = vmatpush.bf16.msra.mxu0 %v1906
        %1921 = vmatmul.bf16.gmra.mxu0 %v1911
        %v1922 = vpop.f32.mrf.mxu0
        %v1923 = vadd.f32 %v1461, %v1922
        %v1924 = vpop.f32.mrf.mxu0
        %1925 = vdwg.mxu0
        %v1926 = vld [vmem:[%s15] sm:$0x1]
        %v1927 = vld [vmem:[%s16] sm:$0x1]
        %v1928 = vsel %vm1051, %v1923, 0.0
        %1929 = vadd.xlane.f32.xlu0 %v1928
        %v1930 = vpop.xlane.xlu0 %1929
        %v1931 = vmul.f32 %v1930, %v1434
        %v1932 = vsub.f32 %v1923, %v1931
        %v1933 = vmul.f32 %v1932, %v1932
        %v1934 = vsel %vm1051, %v1933, 0.0
        %1935 = vadd.xlane.f32.xlu0 %v1934
        %v1936 = vpop.xlane.xlu0 %1935
        %v1937 = vmul.f32 %v1936, %v1434
        %v1938 = vadd.f32 %v1937, 1e-06
        %v1939 = vrsqrt.pop %v1938
        %v1940 = vmul.f32 %v1939, %v1938
        %v1941 = vmul.f32 %v1940, %v1939
        %v1942 = vmul.f32 0.5, %v1941
        %v1943 = vsub.f32 1.5, %v1942
        %v1944 = vmul.f32 %v1939, %v1943
        %vm1945 = vweird.f32 %v1938
        %vm1946 = vweird.f32 %v1939
        %vm1947 = vmor %vm1945, %vm1946
        %v1948 = vsel %vm1947, %v1939, %v1944
        %v1949 = vmul.f32 %v1932, %v1948
        %v1951 = vperm.slane %v1926, 0
        %v1953 = vmul.f32 %v1949, %v1951
        %v1955 = vperm.slane %v1927, 0
        %v1957 = vadd.f32 %v1953, %v1955
        %v1958 = vpack.c.bf16 %v1957, %v1957
        %v1959 = vld [vmem:[#allocation14] sm:$0xf]
        %v1960 = vld [vmem:[#allocation14 + $0x4] sm:$0xf]
        %v1961 = vld [vmem:[#allocation14 + $0x8] sm:$0xf]
        %v1962 = vld [vmem:[#allocation14 + $0xc] sm:$0xf]
        %v1963 = vld [vmem:[%s18] sm:$0x1]
        %v1965 = vperm.slane %v1963, 0
        %v1971 = vunpack.c.l.b16 %v1959
        %v1972 = vunpack.c.l.b16 %v1960
        %v1973 = vunpack.c.l.b16 %v1961
        %v1974 = vunpack.c.l.b16 %v1962
        %v1975 = vpack.c.b16 %v1972, %v1971
        %v1976 = vpack.c.b16 %v1974, %v1973
        %v1980 = vsel %vm1051, %v1958, 0
        %1982 = vmatpush.bf16.msra.mxu0 0
        %1983 = vmatpush.bf16.msra.mxu0 0
        %1984 = vmatpush.bf16.msra.mxu0 0
        %1985 = vmatpush.bf16.msra.mxu0 0
        %1986 = vmatpush.bf16.msra.mxu0 0
        %1987 = vmatpush.bf16.msra.mxu0 0
        %1988 = vmatpush.bf16.msra.mxu0 %v1976
        %1989 = vmatpush.bf16.msra.mxu0 %v1975
        %1990 = vmatmul.bf16.gmra.mxu0 %v1980
        %v1991 = vpop.f32.mrf.mxu0
        %v1992 = vadd.f32 %v1965, %v1991
        %v1993 = vpop.f32.mrf.mxu0
        %1994 = vdwg.mxu0
        %v1995 = vmax.f32 %v1992, 0.0
        %v1996 = vpack.c.bf16 %v1995, %v1995
        %v1997 = vld [vmem:[%s19] sm:$0xf]
        %v1998 = vld [vmem:[%s19 + $0x4] sm:$0xf]
        %v1999 = vld [vmem:[%s19 + $0x8] sm:$0xf]
        %v2000 = vld [vmem:[%s19 + $0xc] sm:$0xf]
        %v2001 = vld [vmem:[%s19 + $0x10] sm:$0xf]
        %v2002 = vld [vmem:[%s19 + $0x14] sm:$0xf]
        %v2003 = vld [vmem:[%s19 + $0x18] sm:$0xf]
        %v2004 = vld [vmem:[%s19 + $0x1c] sm:$0xf]
        %v2005 = vld [vmem:[%s20] sm:$0x1]
        %v2007 = vperm.slane %v2005, 0
        %v2017 = vunpack.c.l.b16 %v1997
        %v2018 = vunpack.c.l.b16 %v1998
        %v2019 = vunpack.c.l.b16 %v1999
        %v2020 = vunpack.c.l.b16 %v2000
        %v2021 = vunpack.c.l.b16 %v2001
        %v2022 = vunpack.c.l.b16 %v2002
        %v2023 = vunpack.c.l.b16 %v2003
        %v2024 = vunpack.c.l.b16 %v2004
        %v2025 = vpack.c.b16 %v2018, %v2017
        %v2026 = vpack.c.b16 %v2020, %v2019
        %v2027 = vpack.c.b16 %v2022, %v2021
        %v2028 = vpack.c.b16 %v2024, %v2023
        %vm2033 = vcmask 523264
        %v2035 = vsel %vm2033, %v1996, 0
        %2037 = vmatpush.bf16.msra.mxu0 0
        %2038 = vmatpush.bf16.msra.mxu0 0
        %2039 = vmatpush.bf16.msra.mxu0 0
        %2040 = vmatpush.bf16.msra.mxu0 0
        %2041 = vmatpush.bf16.msra.mxu0 %v2028
        %2042 = vmatpush.bf16.msra.mxu0 %v2027
        %2043 = vmatpush.bf16.msra.mxu0 %v2026
        %2044 = vmatpush.bf16.msra.mxu0 %v2025
        %2045 = vmatmul.bf16.gmra.mxu0 %v2035
        %v2046 = vpop.f32.mrf.mxu0
        %v2047 = vadd.f32 %v2007, %v2046
        %v2048 = vpop.f32.mrf.mxu0
        %2049 = vdwg.mxu0
        %v2050 = vadd.f32 %v2047, %v1957
        %v2051 = vld [vmem:[%s21] sm:$0x1]
        %v2052 = vld [vmem:[%s22] sm:$0x1]
        %v2053 = vsel %vm1051, %v2050, 0.0
        %2054 = vadd.xlane.f32.xlu0 %v2053
        %v2055 = vpop.xlane.xlu0 %2054
        %v2056 = vmul.f32 %v2055, %v1434
        %v2057 = vsub.f32 %v2050, %v2056
        %v2058 = vmul.f32 %v2057, %v2057
        %v2059 = vsel %vm1051, %v2058, 0.0
        %2060 = vadd.xlane.f32.xlu0 %v2059
        %v2061 = vpop.xlane.xlu0 %2060
        %v2062 = vmul.f32 %v2061, %v1434
        %v2063 = vadd.f32 %v2062, 1e-06
        %v2064 = vrsqrt.pop %v2063
        %v2065 = vmul.f32 %v2064, %v2063
        %v2066 = vmul.f32 %v2065, %v2064
        %v2067 = vmul.f32 0.5, %v2066
        %v2068 = vsub.f32 1.5, %v2067
        %v2069 = vmul.f32 %v2064, %v2068
        %vm2070 = vweird.f32 %v2063
        %vm2071 = vweird.f32 %v2064
        %vm2072 = vmor %vm2070, %vm2071
        %v2073 = vsel %vm2072, %v2064, %v2069
        %v2074 = vmul.f32 %v2057, %v2073
        %v2076 = vperm.slane %v2051, 0
        %v2078 = vmul.f32 %v2074, %v2076
        %v2080 = vperm.slane %v2052, 0
        %v2082 = vadd.f32 %v2078, %v2080
        %2083 = vst.msk [vmem:[%s996] sm:$0xff] %vm1051, %v2082
        %vm2084 = vcmask 60416
        %2085 = vst.msk [vmem:[%s1003] sm:$0xf] %vm2084, %v1292
        %2086 = vst.msk [vmem:[%s1003 + $0x4] sm:$0xf] %vm2084, %v1293
        %2087 = vst.msk [vmem:[%s1003 + $0x8] sm:$0xf] %vm2084, %v1294
        %2088 = vst.msk [vmem:[%s1003 + $0xc] sm:$0xf] %vm2084, %v1295
        %vm2089 = vcmask 93184
        %2090 = vst.msk [vmem:[%s1010] sm:$0xf] %vm2089, %v1777
        %2091 = vst.msk [vmem:[%s1010 + $0x4] sm:$0xf] %vm2089, %v1778
        %2092 = vst.msk [vmem:[%s1010 + $0x8] sm:$0xf] %vm2089, %v1779
        %2093 = vst.msk [vmem:[%s1010 + $0xc] sm:$0xf] %vm2089, %v1780
        %s2094 = sand.u32 %s586, 1
        %s2095 = scalar_lea.sflag [#allocation4], %s2094
        %s2096 = sand.u32 %s586, 1
        %s2097 = smul.addr %s2096, 8
        %s2098 = scalar_lea.vmem [#allocation16], %s2097
        %s2099 = sand.u32 %s52, 1
        %s2100 = scalar_lea.sflag [#allocation18], %s2099
        %s2101 = sand.u32 %s614, 1
        %s2102 = smul.addr %s2101, 16
        %s2103 = scalar_lea.vmem [#allocation17], %s2102
        %s2104 = sand.u32 %s52, 1
        %s2105 = scalar_lea.sflag [#allocation18], %s2104
        %s2106 = sand.u32 %s642, 1
        %s2107 = smul.addr %s2106, 16
        %s2108 = scalar_lea.vmem [#allocation19], %s2107
        // Predicated region
        $region145: #{tpu_custom_call.1} parent=111 // pred_check
          %p2109 = pneg %p596
        $region146: #{tpu_custom_call.1} parent=111 // pred_check_branch
          %2111 = sbr.rel (%p2109) target = $region148
        $region147: #{tpu_custom_call.1} parent=111 // pred_region
          %2113 = vsyncadd %s2095, 0
          %s2114 = sadd.s32 %s57, %s56
          %s2115 = smul.addr %s2114, 8
          %s2116 = scalar_lea.hbm %s23, %s2115
          %s2118 = sshll.u32 %s2098, 4
          %s2119 = int_to_ptr.vmem [resolvable:$true] %s2118
          %s2120 = sshll.u32 %s2116, 4
          %s2121 = int_to_ptr.hbm [resolvable:$true] %s2120
          %2123 = dma.vmem_to_hbm [thread:$0]  %s2119, 128, %s2121, %s2095
        $region148: #{tpu_custom_call.1} parent=111 // pred_fallthru
          _
        // Predicated region
        $region149: #{tpu_custom_call.1} parent=111 // pred_check
          %p2124 = pneg %p624
        $region150: #{tpu_custom_call.1} parent=111 // pred_check_branch
          %2126 = sbr.rel (%p2124) target = $region152
        $region151: #{tpu_custom_call.1} parent=111 // pred_region
          %2128 = vsyncadd %s2100, 0
          %s2129 = smul.addr %s56, 4
          %s2130 = sadd.s32 %s57, %s2129
          %s2131 = smul.addr %s2130, 4
          %s2132 = scalar_lea.hbm %s24, %s2131
          %s2133 = sshll.u32 %s2103, 4
          %s2134 = int_to_ptr.vmem [resolvable:$true] %s2133
          %s2135 = sshll.u32 %s2132, 4
          %s2136 = int_to_ptr.hbm [resolvable:$true] %s2135
          %2141 = dma.vmem_to_hbm [thread:$0]  %s2134, 256, %s2136, %s2100, 64, 64, 4
        $region152: #{tpu_custom_call.1} parent=111 // pred_fallthru
          _
        // Predicated region
        $region153: #{tpu_custom_call.1} parent=111 // pred_check
          %p2142 = pneg %p652
        $region154: #{tpu_custom_call.1} parent=111 // pred_check_branch
          %2144 = sbr.rel (%p2142) target = $region156
        $region155: #{tpu_custom_call.1} parent=111 // pred_region
          %2146 = vsyncadd %s2105, 0
          %s2147 = smul.addr %s56, 4
          %s2148 = sadd.s32 %s57, %s2147
          %s2149 = smul.addr %s2148, 4
          %s2150 = scalar_lea.hbm %s25, %s2149
          %s2151 = sshll.u32 %s2108, 4
          %s2152 = int_to_ptr.vmem [resolvable:$true] %s2151
          %s2153 = sshll.u32 %s2150, 4
          %s2154 = int_to_ptr.hbm [resolvable:$true] %s2153
          %2159 = dma.vmem_to_hbm [thread:$0]  %s2152, 256, %s2154, %s2105, 64, 64, 4
        $region156: #{tpu_custom_call.1} parent=111 // pred_fallthru
          _
      $region112: #{tpu_custom_call.1} parent=5 // pred_fallthru
        _
      %p2160 = scmp.le.s32.totalorder 2, %s47
      // Predicated region
      $region157: #{tpu_custom_call.1} parent=5 // pred_check
        %p2161 = pneg %p2160
      $region158: #{tpu_custom_call.1} parent=5 // pred_check_branch
        %2163 = sbr.rel (%p2161) target = $region160
      $region159: #{tpu_custom_call.1} parent=5 // pred_region
        %s2164 = ssub.s32 %s47, 2
        // Predicated region
        $region161: #{tpu_custom_call.1} parent=159 // pred_check
          %p2165 = pneg %p602
        $region162: #{tpu_custom_call.1} parent=159 // pred_check_branch
          %2167 = sbr.rel (%p2165) target = $region164
        $region163: #{tpu_custom_call.1} parent=159 // pred_region
          %s2168 = sand.u32 %s587, 1
          %s2169 = scalar_lea.sflag [#allocation4], %s2168
          %s2170 = sand.u32 %s587, 1
          %s2171 = smul.addr %s2170, 8
          %s2172 = scalar_lea.vmem [#allocation16], %s2171
          %2174 = dma.done %s2169, 128
        $region164: #{tpu_custom_call.1} parent=159 // pred_fallthru
          _
        // Predicated region
        $region165: #{tpu_custom_call.1} parent=159 // pred_check
          %p2175 = pneg %p630
        $region166: #{tpu_custom_call.1} parent=159 // pred_check_branch
          %2177 = sbr.rel (%p2175) target = $region168
        $region167: #{tpu_custom_call.1} parent=159 // pred_region
          %s2178 = sand.u32 %s53, 1
          %s2179 = scalar_lea.sflag [#allocation18], %s2178
          %s2180 = sand.u32 %s615, 1
          %s2181 = smul.addr %s2180, 16
          %s2182 = scalar_lea.vmem [#allocation17], %s2181
          %2184 = dma.done %s2179, 256
        $region168: #{tpu_custom_call.1} parent=159 // pred_fallthru
          _
        // Predicated region
        $region169: #{tpu_custom_call.1} parent=159 // pred_check
          %p2185 = pneg %p658
        $region170: #{tpu_custom_call.1} parent=159 // pred_check_branch
          %2187 = sbr.rel (%p2185) target = $region172
        $region171: #{tpu_custom_call.1} parent=159 // pred_region
          %s2188 = sand.u32 %s53, 1
          %s2189 = scalar_lea.sflag [#allocation18], %s2188
          %s2190 = sand.u32 %s643, 1
          %s2191 = smul.addr %s2190, 16
          %s2192 = scalar_lea.vmem [#allocation19], %s2191
          %2194 = dma.done %s2189, 256
        $region172: #{tpu_custom_call.1} parent=159 // pred_fallthru
          _
      $region160: #{tpu_custom_call.1} parent=5 // pred_fallthru
        _
    $region6: #{tpu_custom_call.1} parent=1 // loop_footer
      %s51 = sadd.s32 1, %s47
    $region7: #{tpu_custom_call.1} parent=1 // loop_footer_branch
      %46 = sbr.rel target = $region3
    $region8: #{tpu_custom_call.1} parent=1 // loop_exit
      _
    %2195 = vsyncpa [#allocation3], 1
    %s2196 = scalar_lea.sflag [#allocation3], 1
    %2197 = vsyncpa %s2196, 1
    %2198 = vsyncpa [#allocation6], 1
    %s2199 = scalar_lea.sflag [#allocation6], 1
    %2200 = vsyncpa %s2199, 1
    %2201 = vsyncpa [#allocation9], 1
    %2202 = vsyncpa [#allocation12], 1
    %2203 = vsyncpa [#allocation15], 1
    %2204 = vsyncpa [#allocation4], 1
    %s2205 = scalar_lea.sflag [#allocation4], 1
    %2206 = vsyncpa %s2205, 1
    %2207 = vsyncpa [#allocation18], 1
    %s2208 = scalar_lea.sflag [#allocation18], 1
    %2209 = vsyncpa %s2208, 1

</llo_original>
